<compile_context>
chip_gen: v5e
topology: v5e:2x2
jax: 0.10.0
libtpu: 0.0.40
codegen_flags: <defaults>
</compile_context>

<pallas_src>
import jax
import jax.numpy as jnp
from jax import lax
from jax.experimental import pallas as pl
from jax.experimental.pallas import tpu as pltpu

EPS = 1e-5
LANE = 128                      # channel dims padded to a multiple of this
ACT_DTYPE = jnp.bfloat16        # HBM storage dtype for input / activations
MATMUL_DTYPE = jnp.bfloat16     # MXU operand dtype (f32 accumulation)


def _round_up(x, m):
    return (x + m - 1) // m * m


def _pad_last(a, target):
    pad = target - a.shape[-1]
    if pad == 0:
        return a
    return jnp.pad(a, [(0, 0)] * (a.ndim - 1) + [(0, pad)])


def _pick_tile_h(H, W):
    """Largest divisor of H with tile_h*W <= 512 (MXU-friendly M, modest VMEM)."""
    best = 1
    for t in range(1, H + 1):
        if H % t == 0 and t * W <= 512:
            best = t
    return best


# ---------------------------------------------------------------------------
# Kernel: (previous BN folded in) -> conv3x3 -> bias -> ReLU -> BN batch stats
# ---------------------------------------------------------------------------
def _conv_bn_relu_kernel(x_any, x_core, w3_ref, b_ref, sc_ref, sh_ref,
                         act_ref, sum_ref, ssq_ref, halo_buf, sem):
    n = pl.program_id(0)                       # batch axis      ("parallel")
    i = pl.program_id(1)                       # row-tile axis   ("arbitrary": BN reduction)
    n_tiles = pl.num_programs(1)

    _, th, W, Cout = act_ref.shape
    Cin = x_core.shape[-1]
    M = th * W                                 # matmul rows per tile
    Mtot = (th + 2) * W                        # including the two halo rows
    row0 = i * th

    # ---- 1-row top/bottom halos: start BOTH DMAs before waiting on either ----
    @pl.when(i > 0)
    def _():
        pltpu.make_async_copy(x_any.at[n, row0 - 1], halo_buf.at[0], sem.at[0]).start()

    @pl.when(i < n_tiles - 1)
    def _():
        pltpu.make_async_copy(x_any.at[n, row0 + th], halo_buf.at[1], sem.at[1]).start()

    # Previous layer's BatchNorm folded in as a per-channel affine (f32 VPU
    # math on the bf16 tile).  The big core block goes first so it overlaps the
    # small halo DMAs issued above.
    sc = sc_ref[...]
    sh = sh_ref[...]
    core = x_core[0].reshape(M, Cin) * sc + sh                      # (M, Cin) f32

    @pl.when(i > 0)
    def _():
        pltpu.make_async_copy(x_any.at[n, row0 - 1], halo_buf.at[0], sem.at[0]).wait()

    @pl.when(i < n_tiles - 1)
    def _():
        pltpu.make_async_copy(x_any.at[n, row0 + th], halo_buf.at[1], sem.at[1]).wait()

    # Halo rows: affine + zero outside the image (conv zero-padding applies to
    # the *normalized* input).  Only these 2 rows are ever masked.
    top = jnp.where(i > 0, halo_buf[0] * sc + sh, 0.0)              # (W, Cin) f32
    bot = jnp.where(i < n_tiles - 1, halo_buf[1] * sc + sh, 0.0)

    # Row-flattened haloed tile.  The kx = +-1 taps become XLU sublane
    # rotations of the flattened array (no sublane-misaligned slices), with the
    # wrapped / out-of-image column zeroed.  All 3 kx taps are folded into the
    # contraction dim: K = 3*Cin, 3 matmuls per tile (one per ky).
    xf = jnp.concatenate([top, core, bot], axis=0)                  # (Mtot, Cin) f32
    xl = pltpu.roll(xf, 1, 0)                                       # input col x-1 at col x
    xr = pltpu.roll(xf, Mtot - 1, 0)                                # input col x+1 at col x
    col = lax.broadcasted_iota(jnp.int32, (Mtot, 1), 0) % W
    xl = jnp.where(col == 0, 0.0, xl)
    xr = jnp.where(col == W - 1, 0.0, xr)
    xcat = jnp.concatenate([xl.astype(MATMUL_DTYPE),
                            xf.astype(MATMUL_DTYPE),
                            xr.astype(MATMUL_DTYPE)], axis=-1)      # (Mtot, 3*Cin) bf16

    # ---- conv3x3: 3 bf16 MXU matmuls (M, 3*Cin) x (3*Cin, Cout), f32 acc.
    # The ky taps are 8-aligned row offsets of the flattened haloed tile.
    # TODO(synk): on v7x, a single chained contraction (K = 9*Cin) would keep
    # the accumulation inside the MRB; kept at 3 dots here for simplicity.
    acc = jnp.zeros((M, Cout), jnp.float32)
    for ky in range(3):
        acc = acc + jnp.dot(xcat[ky * W:ky * W + M], w3_ref[ky],
                            preferred_element_type=jnp.float32)

    y = jnp.maximum(acc + b_ref[...], 0.0)                          # bias + ReLU (f32)

    act_ref[...] = y.reshape(1, th, W, Cout).astype(act_ref.dtype)  # lane-dense bf16 store

    # ---- BatchNorm pass 1: per-channel batch statistics in f32, accumulated
    # across the row-tile ("arbitrary") axis into a per-sample resident block.
    @pl.when(i == 0)
    def _():
        sum_ref[...] = jnp.zeros_like(sum_ref)
        ssq_ref[...] = jnp.zeros_like(ssq_ref)

    sum_ref[...] += jnp.sum(y, axis=0).reshape(1, 1, Cout)
    ssq_ref[...] += jnp.sum(y * y, axis=0).reshape(1, 1, Cout)


def _conv_bn_relu_stats(x, w3, b, in_scale, in_shift, tile_h):
    """x: (N,H,W,Cin_p) bf16; w3: (3, 3*Cin_p, Cout_p) bf16.

    Returns (relu(conv(bn_fold(x)) + b) as bf16, per-sample channel sum,
    per-sample channel sum of squares).
    """
    N, H, W, Cin = x.shape
    Cout = w3.shape[-1]
    n_tiles = H // tile_h

    return pl.pallas_call(
        _conv_bn_relu_kernel,
        out_shape=(
            jax.ShapeDtypeStruct((N, H, W, Cout), ACT_DTYPE),       # activations (bf16)
            jax.ShapeDtypeStruct((N, 1, Cout), jnp.float32),        # per-sample sum
            jax.ShapeDtypeStruct((N, 1, Cout), jnp.float32),        # per-sample sum of squares
        ),
        grid=(N, n_tiles),
        in_specs=[
            pl.BlockSpec(memory_space=pl.ANY),                              # HBM view (halo rows)
            pl.BlockSpec((1, tile_h, W, Cin), lambda n, i: (n, i, 0, 0)),   # auto-pipelined core rows
            pl.BlockSpec((3, 3 * Cin, Cout), lambda n, i: (0, 0, 0)),       # resident bf16 weights
            pl.BlockSpec((1, Cout), lambda n, i: (0, 0)),                   # bias
            pl.BlockSpec((1, Cin), lambda n, i: (0, 0)),                    # folded-BN scale
            pl.BlockSpec((1, Cin), lambda n, i: (0, 0)),                    # folded-BN shift
        ],
        out_specs=(
            pl.BlockSpec((1, tile_h, W, Cout), lambda n, i: (n, i, 0, 0)),
            pl.BlockSpec((1, 1, Cout), lambda n, i: (n, 0, 0)),             # accumulator over i
            pl.BlockSpec((1, 1, Cout), lambda n, i: (n, 0, 0)),             # accumulator over i
        ),
        scratch_shapes=[
            pltpu.VMEM((2, W, Cin), x.dtype),                       # top / bottom halo rows
            pltpu.SemaphoreType.DMA((2,)),
        ],
        compiler_params=pltpu.CompilerParams(
            dimension_semantics=("parallel", "arbitrary"),
            vmem_limit_bytes=48 * 1024 * 1024),
        # TODO(synk): for very large channel counts add a Cout-tile grid axis
        # (also gives a second parallel axis for v7x when batch N is 1 / odd).
    )(x, x, w3, b, in_scale, in_shift)


# ---------------------------------------------------------------------------
# Host-side helpers and the ConvBlock forward pass
# ---------------------------------------------------------------------------
def _bn_scale_shift(s, ss, count, gamma_p, beta_p):
    """Fold batch statistics + BN params into a per-channel affine (tiny O(C))."""
    s = jnp.sum(s, axis=0).reshape(-1)
    ss = jnp.sum(ss, axis=0).reshape(-1)
    mean = s / count
    var = jnp.maximum(ss / count - mean * mean, 0.0)   # f32; guard tiny fp negatives
    inv = lax.rsqrt(var + EPS)
    scale = gamma_p * inv
    shift = beta_p - mean * scale
    return scale, shift


def _prep_weight(w_hwio, cin_p, cout_p):
    """HWIO (3,3,Cin,Cout) -> (ky, kx*Cin_p + ci, Cout_p) in bf16 (MXU layout).

    The K ordering matches the in-kernel lane concat [x(w-1) | x(w) | x(w+1)].
    """
    kh, kw, cin, cout = w_hwio.shape
    w = jnp.pad(w_hwio.astype(jnp.float32),
                ((0, 0), (0, 0), (0, cin_p - cin), (0, cout_p - cout)))
    return w.reshape(kh, kw * cin_p, cout_p).astype(MATMUL_DTYPE)


def conv_block_forward(x_nchw, params, tile_h=None):
    """ConvBlock.forward: bnd2(relu(conv2(bnd1(relu(conv1(x)))))), NCHW in/out."""
    N, Cin, H, W = x_nchw.shape
    Cout = params["w1"].shape[-1]
    Cin_p, Cout_p = _round_up(Cin, LANE), _round_up(Cout, LANE)
    # TODO(synk): support W % 8 != 0 (host-pad W and mask the BN statistics).
    assert W % 8 == 0, "W must be a multiple of 8 (sublane tiling)"
    if tile_h is None:
        tile_h = _pick_tile_h(H, W)
    assert H % tile_h == 0, (H, tile_h)

    # NCHW -> NHWC, channels zero-padded to the lane width, stored bf16 in HBM.
    x = jnp.transpose(x_nchw, (0, 2, 3, 1)).astype(jnp.float32)
    x = _pad_last(x, Cin_p).astype(ACT_DTYPE)

    w1 = _prep_weight(params["w1"], Cin_p, Cout_p)
    w2 = _prep_weight(params["w2"], Cout_p, Cout_p)
    b1 = _pad_last(params["b1"].astype(jnp.float32).reshape(1, -1), Cout_p)
    b2 = _pad_last(params["b2"].astype(jnp.float32).reshape(1, -1), Cout_p)
    g1 = _pad_last(params["g1"].astype(jnp.float32), Cout_p)
    g2 = _pad_last(params["g2"].astype(jnp.float32), Cout_p)
    be1 = _pad_last(params["beta1"].astype(jnp.float32), Cout_p)
    be2 = _pad_last(params["beta2"].astype(jnp.float32), Cout_p)

    count = N * H * W
    sc0 = jnp.ones((1, Cin_p), jnp.float32)     # layer-1 input: nothing to fold
    sh0 = jnp.zeros((1, Cin_p), jnp.float32)

    # Layer 1: conv1 + bias + ReLU (bf16 activations), BN1 batch statistics.
    act1, s1, ss1 = _conv_bn_relu_stats(x, w1, b1, sc0, sh0, tile_h)
    sc1, sh1 = _bn_scale_shift(s1, ss1, count, g1, be1)

    # Layer 2: BN1 folded into the input affine, conv2 + bias + ReLU, BN2 stats.
    act2, s2, ss2 = _conv_bn_relu_stats(act1, w2, b2,
                                        sc1.reshape(1, -1), sh1.reshape(1, -1),
                                        tile_h)
    sc2, sh2 = _bn_scale_shift(s2, ss2, count, g2, be2)

    # Final BN2 affine fused (by XLA) with the channel-unpad + NHWC->NCHW
    # transpose -- a mem-bound elementwise epilogue that needs no extra kernel.
    y = act2[..., :Cout].astype(jnp.float32) * sc2[:Cout] + sh2[:Cout]
    # TODO(synk): nn.BatchNorm2d running_mean/running_var updates (train-mode
    # buffers) are not produced; only the forward output is computed.
    return jnp.transpose(y, (0, 3, 1, 2))


def init_params(key, n_in, n_out):
    k1, k2, k3, k4 = jax.random.split(key, 4)
    # Conv weights stored directly in HWIO = (3, 3, Cin, Cout).
    w1 = 0.1 * jax.random.normal(k1, (3, 3, n_in, n_out), jnp.float32)
    b1 = 0.1 * jax.random.normal(k2, (n_out,), jnp.float32)
    w2 = 0.1 * jax.random.normal(k3, (3, 3, n_out, n_out), jnp.float32)
    b2 = 0.1 * jax.random.normal(k4, (n_out,), jnp.float32)
    # BatchNorm2d default init: weight=1, bias=0.
    return dict(
        w1=w1, b1=b1, g1=jnp.ones((n_out,), jnp.float32),
        beta1=jnp.zeros((n_out,), jnp.float32),
        w2=w2, b2=b2, g2=jnp.ones((n_out,), jnp.float32),
        beta2=jnp.zeros((n_out,), jnp.float32),
    )


def _reference(x_nchw, params):
    """Pure-JAX f32 reference (lax conv + ReLU + batch-stat BN) for verification."""
    def layer(x, w, b, g, beta):
        w_oihw = jnp.transpose(w, (3, 2, 0, 1))
        y = lax.conv_general_dilated(x, w_oihw, (1, 1), ((1, 1), (1, 1)),
                                     dimension_numbers=("NCHW", "OIHW", "NCHW"))
        y = y + b[None, :, None, None]
        y = jnp.maximum(y, 0.0)
        mean = jnp.mean(y, axis=(0, 2, 3), keepdims=True)
        var = jnp.mean((y - mean) ** 2, axis=(0, 2, 3), keepdims=True)
        return (y - mean) * lax.rsqrt(var + EPS) * g[None, :, None, None] \
            + beta[None, :, None, None]

    x = layer(x_nchw, params["w1"], params["b1"], params["g1"], params["beta1"])
    x = layer(x, params["w2"], params["b2"], params["g2"], params["beta2"])
    return x


if __name__ == "__main__":
    N, C_IN, C_OUT, H, W = 2, 4, 8, 16, 16
    key = jax.random.PRNGKey(0)
    kx_, kp = jax.random.split(key)
    x = jax.random.normal(kx_, (N, C_IN, H, W), jnp.float32)
    params = init_params(kp, C_IN, C_OUT)

    ref = jax.block_until_ready(_reference(x, params))

    fwd = jax.jit(conv_block_forward, static_argnames=("tile_h",))

    # Default tiling (single row tile at this size: M = H*W = 256 rows/matmul).
    out = jax.block_until_ready(fwd(x, params))
    assert out.shape == (N, C_OUT, H, W), out.shape
    err = float(jnp.max(jnp.abs(out - ref)))
    # Tolerance reflects bf16 matmuls + bf16 activation storage vs f32 reference.
    assert err < 1.5e-1, err

    # Smaller row tiles: exercises the halo DMAs and cross-tile BN accumulation.
    out2 = jax.block_until_ready(fwd(x, params, tile_h=4))
    err2 = float(jnp.max(jnp.abs(out2 - ref)))
    assert err2 < 1.5e-1, err2

    print("KERNEL_OK")
</pallas_src>

<mosaic_0001>
module attributes {stable_mosaic.version = 11 : i64} {
  func.func @_conv_bn_relu_kernel(%arg0: i32, %arg1: i32, %arg2: memref<2x16x16x128xbf16, #tpu.memory_space<any>>, %arg3: memref<1x16x16x128xbf16, #tpu.memory_space<vmem>>, %arg4: memref<3x384x128xbf16, #tpu.memory_space<vmem>>, %arg5: memref<1x128xf32, #tpu.memory_space<vmem>>, %arg6: memref<1x128xf32, #tpu.memory_space<vmem>>, %arg7: memref<1x128xf32, #tpu.memory_space<vmem>>, %arg8: memref<1x16x16x128xbf16, #tpu.memory_space<vmem>>, %arg9: memref<1x1x128xf32, #tpu.memory_space<vmem>>, %arg10: memref<1x1x128xf32, #tpu.memory_space<vmem>>, %arg11: memref<2x16x128xbf16, #tpu.memory_space<vmem>>, %arg12: memref<2x!tpu.dma_semaphore, #tpu.memory_space<semaphore_mem>>) attributes {dimension_semantics = [#tpu.dimension_semantics<parallel>, #tpu.dimension_semantics<arbitrary>], iteration_bounds = array<i64: 2, 1>, scalar_prefetch = 0 : i64, scratch_operands = 2 : i64, tpu.core_type = #tpu.core_type<tc>, window_params = [{}, {transform_indices = @transform_1, window_bounds = array<i64: 1, 16, 16, 128>}, {pipeline_mode = #tpu.pipeline_mode<synchronous>, transform_indices = @transform_2, window_bounds = array<i64: 3, 384, 128>}, {pipeline_mode = #tpu.pipeline_mode<synchronous>, transform_indices = @transform_3, window_bounds = array<i64: 1, 128>}, {pipeline_mode = #tpu.pipeline_mode<synchronous>, transform_indices = @transform_4, window_bounds = array<i64: 1, 128>}, {pipeline_mode = #tpu.pipeline_mode<synchronous>, transform_indices = @transform_5, window_bounds = array<i64: 1, 128>}, {transform_indices = @transform_6, window_bounds = array<i64: 1, 16, 16, 128>}, {transform_indices = @transform_7, window_bounds = array<i64: 1, 1, 128>}, {transform_indices = @transform_8, window_bounds = array<i64: 1, 1, 128>}]} {
    %c16_i32 = arith.constant 16 : i32
    %0 = arith.muli %arg1, %c16_i32 : i32
    %c0_i32 = arith.constant 0 : i32
    %1 = arith.cmpi sgt, %arg1, %c0_i32 : i32
    %2 = arith.extui %1 : i1 to i32
    %c0_i32_0 = arith.constant 0 : i32
    %3 = arith.cmpi ne, %2, %c0_i32_0 : i32
    scf.if %3 {
      %c1_i32_66 = arith.constant 1 : i32
      %117 = arith.subi %0, %c1_i32_66 : i32
      %c0_i32_67 = arith.constant 0 : i32
      %c0_i32_68 = arith.constant 0 : i32
      %c0_i32_69 = arith.constant 0 : i32
      %c0_i32_70 = arith.constant 0 : i32
      %118 = tpu.memref_slice %arg2[%arg0, %117, %c0_i32_69, %c0_i32_70] : memref<2x16x16x128xbf16, #tpu.memory_space<any>> -> memref<1x1x16x128xbf16, #tpu.memory_space<any>>
      %119 = tpu.memref_squeeze %118 : memref<1x1x16x128xbf16, #tpu.memory_space<any>> -> memref<16x128xbf16, #tpu.memory_space<any>>
      %c0_i32_71 = arith.constant 0 : i32
      %c0_i32_72 = arith.constant 0 : i32
      %120 = tpu.memref_slice %arg11[%c0_i32_67, %c0_i32_71, %c0_i32_72] : memref<2x16x128xbf16, #tpu.memory_space<vmem>> -> memref<1x16x128xbf16, #tpu.memory_space<vmem>>
      %121 = tpu.memref_squeeze %120 : memref<1x16x128xbf16, #tpu.memory_space<vmem>> -> memref<16x128xbf16, #tpu.memory_space<vmem>>
      %122 = tpu.memref_slice %arg12[%c0_i32_68] : memref<2x!tpu.dma_semaphore, #tpu.memory_space<semaphore_mem>> -> memref<1x!tpu.dma_semaphore, #tpu.memory_space<semaphore_mem>>
      %123 = tpu.memref_squeeze %122 : memref<1x!tpu.dma_semaphore, #tpu.memory_space<semaphore_mem>> -> memref<!tpu.dma_semaphore, #tpu.memory_space<semaphore_mem>>
      tpu.enqueue_dma source(%119 : memref<16x128xbf16, #tpu.memory_space<any>>) target(%121 : memref<16x128xbf16, #tpu.memory_space<vmem>>) target_semaphore(%123 : memref<!tpu.dma_semaphore, #tpu.memory_space<semaphore_mem>>)
    } else {
    }
    %c0_i32_1 = arith.constant 0 : i32
    %4 = arith.cmpi slt, %arg1, %c0_i32_1 : i32
    %5 = arith.extui %4 : i1 to i32
    %c0_i32_2 = arith.constant 0 : i32
    %6 = arith.cmpi ne, %5, %c0_i32_2 : i32
    scf.if %6 {
      %c16_i32_66 = arith.constant 16 : i32
      %117 = arith.addi %0, %c16_i32_66 : i32
      %c1_i32_67 = arith.constant 1 : i32
      %c1_i32_68 = arith.constant 1 : i32
      %c0_i32_69 = arith.constant 0 : i32
      %c0_i32_70 = arith.constant 0 : i32
      %118 = tpu.memref_slice %arg2[%arg0, %117, %c0_i32_69, %c0_i32_70] : memref<2x16x16x128xbf16, #tpu.memory_space<any>> -> memref<1x1x16x128xbf16, #tpu.memory_space<any>>
      %119 = tpu.memref_squeeze %118 : memref<1x1x16x128xbf16, #tpu.memory_space<any>> -> memref<16x128xbf16, #tpu.memory_space<any>>
      %c0_i32_71 = arith.constant 0 : i32
      %c0_i32_72 = arith.constant 0 : i32
      %120 = tpu.memref_slice %arg11[%c1_i32_67, %c0_i32_71, %c0_i32_72] : memref<2x16x128xbf16, #tpu.memory_space<vmem>> -> memref<1x16x128xbf16, #tpu.memory_space<vmem>>
      %121 = tpu.memref_squeeze %120 : memref<1x16x128xbf16, #tpu.memory_space<vmem>> -> memref<16x128xbf16, #tpu.memory_space<vmem>>
      %122 = tpu.memref_slice %arg12[%c1_i32_68] : memref<2x!tpu.dma_semaphore, #tpu.memory_space<semaphore_mem>> -> memref<1x!tpu.dma_semaphore, #tpu.memory_space<semaphore_mem>>
      %123 = tpu.memref_squeeze %122 : memref<1x!tpu.dma_semaphore, #tpu.memory_space<semaphore_mem>> -> memref<!tpu.dma_semaphore, #tpu.memory_space<semaphore_mem>>
      tpu.enqueue_dma source(%119 : memref<16x128xbf16, #tpu.memory_space<any>>) target(%121 : memref<16x128xbf16, #tpu.memory_space<vmem>>) target_semaphore(%123 : memref<!tpu.dma_semaphore, #tpu.memory_space<semaphore_mem>>)
    } else {
    }
    %c0 = arith.constant 0 : index
    %c0_3 = arith.constant 0 : index
    %7 = vector.load %arg6[%c0, %c0_3] : memref<1x128xf32, #tpu.memory_space<vmem>>, vector<1x128xf32>
    %c0_4 = arith.constant 0 : index
    %c0_5 = arith.constant 0 : index
    %8 = vector.load %arg7[%c0_4, %c0_5] : memref<1x128xf32, #tpu.memory_space<vmem>>, vector<1x128xf32>
    %c0_6 = arith.constant 0 : index
    %c0_7 = arith.constant 0 : index
    %c0_8 = arith.constant 0 : index
    %c0_9 = arith.constant 0 : index
    %9 = vector.load %arg3[%c0_6, %c0_7, %c0_8, %c0_9] : memref<1x16x16x128xbf16, #tpu.memory_space<vmem>>, vector<1x16x16x128xbf16>
    %10 = vector.shape_cast %9 : vector<1x16x16x128xbf16> to vector<16x16x128xbf16>
    %11 = vector.shape_cast %10 : vector<16x16x128xbf16> to vector<256x128xbf16>
    %12 = arith.extf %11 : vector<256x128xbf16> to vector<256x128xf32>
    %13 = vector.broadcast %7 : vector<1x128xf32> to vector<256x128xf32>
    %14 = arith.mulf %12, %13 : vector<256x128xf32>
    %15 = vector.broadcast %8 : vector<1x128xf32> to vector<256x128xf32>
    %16 = arith.addf %14, %15 : vector<256x128xf32>
    %c0_i32_10 = arith.constant 0 : i32
    %17 = arith.cmpi sgt, %arg1, %c0_i32_10 : i32
    %18 = arith.extui %17 : i1 to i32
    %c0_i32_11 = arith.constant 0 : i32
    %19 = arith.cmpi ne, %18, %c0_i32_11 : i32
    scf.if %19 {
      %c1_i32_66 = arith.constant 1 : i32
      %117 = arith.subi %0, %c1_i32_66 : i32
      %c0_i32_67 = arith.constant 0 : i32
      %c0_i32_68 = arith.constant 0 : i32
      %c0_i32_69 = arith.constant 0 : i32
      %c0_i32_70 = arith.constant 0 : i32
      %118 = tpu.memref_slice %arg2[%arg0, %117, %c0_i32_69, %c0_i32_70] : memref<2x16x16x128xbf16, #tpu.memory_space<any>> -> memref<1x1x16x128xbf16, #tpu.memory_space<any>>
      %119 = tpu.memref_squeeze %118 : memref<1x1x16x128xbf16, #tpu.memory_space<any>> -> memref<16x128xbf16, #tpu.memory_space<any>>
      %c0_i32_71 = arith.constant 0 : i32
      %c0_i32_72 = arith.constant 0 : i32
      %120 = tpu.memref_slice %arg11[%c0_i32_67, %c0_i32_71, %c0_i32_72] : memref<2x16x128xbf16, #tpu.memory_space<vmem>> -> memref<1x16x128xbf16, #tpu.memory_space<vmem>>
      %121 = tpu.memref_squeeze %120 : memref<1x16x128xbf16, #tpu.memory_space<vmem>> -> memref<16x128xbf16, #tpu.memory_space<vmem>>
      %122 = tpu.memref_slice %arg12[%c0_i32_68] : memref<2x!tpu.dma_semaphore, #tpu.memory_space<semaphore_mem>> -> memref<1x!tpu.dma_semaphore, #tpu.memory_space<semaphore_mem>>
      %123 = tpu.memref_squeeze %122 : memref<1x!tpu.dma_semaphore, #tpu.memory_space<semaphore_mem>> -> memref<!tpu.dma_semaphore, #tpu.memory_space<semaphore_mem>>
      tpu.wait_dma2 semaphore(%123 : memref<!tpu.dma_semaphore, #tpu.memory_space<semaphore_mem>>) src(%119 : memref<16x128xbf16, #tpu.memory_space<any>>) dst(%121 : memref<16x128xbf16, #tpu.memory_space<vmem>>)
    } else {
    }
    %c0_i32_12 = arith.constant 0 : i32
    %20 = arith.cmpi slt, %arg1, %c0_i32_12 : i32
    %21 = arith.extui %20 : i1 to i32
    %c0_i32_13 = arith.constant 0 : i32
    %22 = arith.cmpi ne, %21, %c0_i32_13 : i32
    scf.if %22 {
      %c16_i32_66 = arith.constant 16 : i32
      %117 = arith.addi %0, %c16_i32_66 : i32
      %c1_i32_67 = arith.constant 1 : i32
      %c1_i32_68 = arith.constant 1 : i32
      %c0_i32_69 = arith.constant 0 : i32
      %c0_i32_70 = arith.constant 0 : i32
      %118 = tpu.memref_slice %arg2[%arg0, %117, %c0_i32_69, %c0_i32_70] : memref<2x16x16x128xbf16, #tpu.memory_space<any>> -> memref<1x1x16x128xbf16, #tpu.memory_space<any>>
      %119 = tpu.memref_squeeze %118 : memref<1x1x16x128xbf16, #tpu.memory_space<any>> -> memref<16x128xbf16, #tpu.memory_space<any>>
      %c0_i32_71 = arith.constant 0 : i32
      %c0_i32_72 = arith.constant 0 : i32
      %120 = tpu.memref_slice %arg11[%c1_i32_67, %c0_i32_71, %c0_i32_72] : memref<2x16x128xbf16, #tpu.memory_space<vmem>> -> memref<1x16x128xbf16, #tpu.memory_space<vmem>>
      %121 = tpu.memref_squeeze %120 : memref<1x16x128xbf16, #tpu.memory_space<vmem>> -> memref<16x128xbf16, #tpu.memory_space<vmem>>
      %122 = tpu.memref_slice %arg12[%c1_i32_68] : memref<2x!tpu.dma_semaphore, #tpu.memory_space<semaphore_mem>> -> memref<1x!tpu.dma_semaphore, #tpu.memory_space<semaphore_mem>>
      %123 = tpu.memref_squeeze %122 : memref<1x!tpu.dma_semaphore, #tpu.memory_space<semaphore_mem>> -> memref<!tpu.dma_semaphore, #tpu.memory_space<semaphore_mem>>
      tpu.wait_dma2 semaphore(%123 : memref<!tpu.dma_semaphore, #tpu.memory_space<semaphore_mem>>) src(%119 : memref<16x128xbf16, #tpu.memory_space<any>>) dst(%121 : memref<16x128xbf16, #tpu.memory_space<vmem>>)
    } else {
    }
    %c0_i32_14 = arith.constant 0 : i32
    %23 = arith.cmpi sgt, %arg1, %c0_i32_14 : i32
    %c0_15 = arith.constant 0 : index
    %c0_16 = arith.constant 0 : index
    %c0_17 = arith.constant 0 : index
    %24 = vector.load %arg11[%c0_15, %c0_16, %c0_17] : memref<2x16x128xbf16, #tpu.memory_space<vmem>>, vector<1x16x128xbf16>
    %25 = vector.shape_cast %24 : vector<1x16x128xbf16> to vector<16x128xbf16>
    %26 = arith.extf %25 : vector<16x128xbf16> to vector<16x128xf32>
    %27 = vector.broadcast %7 : vector<1x128xf32> to vector<16x128xf32>
    %28 = arith.mulf %26, %27 : vector<16x128xf32>
    %29 = vector.broadcast %8 : vector<1x128xf32> to vector<16x128xf32>
    %30 = arith.addf %28, %29 : vector<16x128xf32>
    %cst = arith.constant 0.000000e+00 : f32
    %31 = vector.broadcast %cst : f32 to vector<16x128xf32>
    %32 = arith.select %23, %30, %31 : vector<16x128xf32>
    %c0_i32_18 = arith.constant 0 : i32
    %33 = arith.cmpi slt, %arg1, %c0_i32_18 : i32
    %c1 = arith.constant 1 : index
    %c0_19 = arith.constant 0 : index
    %c0_20 = arith.constant 0 : index
    %34 = vector.load %arg11[%c1, %c0_19, %c0_20] : memref<2x16x128xbf16, #tpu.memory_space<vmem>>, vector<1x16x128xbf16>
    %35 = vector.shape_cast %34 : vector<1x16x128xbf16> to vector<16x128xbf16>
    %36 = arith.extf %35 : vector<16x128xbf16> to vector<16x128xf32>
    %37 = vector.broadcast %7 : vector<1x128xf32> to vector<16x128xf32>
    %38 = arith.mulf %36, %37 : vector<16x128xf32>
    %39 = vector.broadcast %8 : vector<1x128xf32> to vector<16x128xf32>
    %40 = arith.addf %38, %39 : vector<16x128xf32>
    %cst_21 = arith.constant 0.000000e+00 : f32
    %41 = vector.broadcast %cst_21 : f32 to vector<16x128xf32>
    %42 = arith.select %33, %40, %41 : vector<16x128xf32>
    %43 = tpu.concatenate %32, %16, %42 in 0 : vector<16x128xf32>, vector<256x128xf32>, vector<16x128xf32> -> vector<288x128xf32>
    %c1_i32 = arith.constant 1 : i32
    %44 = tpu.dynamic_rotate %43 by %c1_i32 dim 0 : vector<288x128xf32>, i32 -> vector<288x128xf32>
    %c287_i32 = arith.constant 287 : i32
    %45 = tpu.dynamic_rotate %43 by %c287_i32 dim 0 : vector<288x128xf32>, i32 -> vector<288x128xf32>
    %46 = tpu.iota {dimensions = array<i32: 0>} : vector<288x1xi32>
    %c16_i32_22 = arith.constant 16 : i32
    %c0_i32_23 = arith.constant 0 : i32
    %47 = arith.cmpi eq, %c16_i32_22, %c0_i32_23 : i32
    %c1_i32_24 = arith.constant 1 : i32
    %48 = arith.select %47, %c1_i32_24, %c16_i32_22 : i32
    %49 = vector.broadcast %48 : i32 to vector<288x1xi32>
    %50 = arith.remsi %46, %49 : vector<288x1xi32>
    %c0_i32_25 = arith.constant 0 : i32
    %51 = vector.broadcast %c0_i32_25 : i32 to vector<288x1xi32>
    %52 = arith.cmpi ne, %50, %51 : vector<288x1xi32>
    %c0_i32_26 = arith.constant 0 : i32
    %53 = vector.broadcast %c0_i32_26 : i32 to vector<288x1xi32>
    %54 = arith.cmpi slt, %50, %53 : vector<288x1xi32>
    %c0_i32_27 = arith.constant 0 : i32
    %55 = arith.cmpi slt, %48, %c0_i32_27 : i32
    %56 = vector.broadcast %55 : i1 to vector<288x1xi1>
    %57 = vector.broadcast %56 : vector<288x1xi1> to vector<288x1xi1>
    %58 = arith.xori %54, %57 : vector<288x1xi1>
    %59 = arith.andi %58, %52 : vector<288x1xi1>
    %60 = vector.broadcast %48 : i32 to vector<288x1xi32>
    %61 = arith.addi %50, %60 : vector<288x1xi32>
    %62 = arith.select %59, %61, %50 : vector<288x1xi1>, vector<288x1xi32>
    %c0_i32_28 = arith.constant 0 : i32
    %63 = vector.broadcast %c0_i32_28 : i32 to vector<288x1xi32>
    %64 = arith.cmpi eq, %62, %63 : vector<288x1xi32>
    %cst_29 = arith.constant 0.000000e+00 : f32
    %65 = vector.shape_cast %64 : vector<288x1xi1> to vector<288x1xi1>
    %66 = vector.broadcast %65 : vector<288x1xi1> to vector<288x128xi1>
    %67 = vector.broadcast %cst_29 : f32 to vector<288x128xf32>
    %68 = arith.select %66, %67, %44 : vector<288x128xi1>, vector<288x128xf32>
    %c15_i32 = arith.constant 15 : i32
    %69 = vector.broadcast %c15_i32 : i32 to vector<288x1xi32>
    %70 = arith.cmpi eq, %62, %69 : vector<288x1xi32>
    %cst_30 = arith.constant 0.000000e+00 : f32
    %71 = vector.shape_cast %70 : vector<288x1xi1> to vector<288x1xi1>
    %72 = vector.broadcast %71 : vector<288x1xi1> to vector<288x128xi1>
    %73 = vector.broadcast %cst_30 : f32 to vector<288x128xf32>
    %74 = arith.select %72, %73, %45 : vector<288x128xi1>, vector<288x128xf32>
    %75 = arith.truncf %68 : vector<288x128xf32> to vector<288x128xbf16>
    %76 = arith.truncf %43 : vector<288x128xf32> to vector<288x128xbf16>
    %77 = arith.truncf %74 : vector<288x128xf32> to vector<288x128xbf16>
    %78 = tpu.concatenate %75, %76, %77 in 1 : vector<288x128xbf16>, vector<288x128xbf16>, vector<288x128xbf16> -> vector<288x384xbf16>
    %cst_31 = arith.constant 0.000000e+00 : f32
    %79 = vector.broadcast %cst_31 : f32 to vector<256x128xf32>
    %80 = vector.extract_strided_slice %78 {offsets = [0, 0], sizes = [256, 384], strides = [1, 1]} : vector<288x384xbf16> to vector<256x384xbf16>
    %c0_32 = arith.constant 0 : index
    %c0_33 = arith.constant 0 : index
    %c0_34 = arith.constant 0 : index
    %81 = vector.load %arg4[%c0_32, %c0_33, %c0_34] : memref<3x384x128xbf16, #tpu.memory_space<vmem>>, vector<1x384x128xbf16>
    %82 = vector.shape_cast %81 : vector<1x384x128xbf16> to vector<384x128xbf16>
    %cst_35 = arith.constant dense<0.000000e+00> : vector<256x128xf32>
    %83 = tpu.matmul %80, %82, %cst_35 {dimension_numbers = #tpu.dot_dimension_numbers<[1], [0], [0], [1], [0, 0, 1, 1], [], []>} : vector<256x384xbf16>, vector<384x128xbf16>, vector<256x128xf32> -> vector<256x128xf32>
    %84 = arith.addf %79, %83 : vector<256x128xf32>
    %85 = vector.extract_strided_slice %78 {offsets = [16, 0], sizes = [256, 384], strides = [1, 1]} : vector<288x384xbf16> to vector<256x384xbf16>
    %c1_36 = arith.constant 1 : index
    %c0_37 = arith.constant 0 : index
    %c0_38 = arith.constant 0 : index
    %86 = vector.load %arg4[%c1_36, %c0_37, %c0_38] : memref<3x384x128xbf16, #tpu.memory_space<vmem>>, vector<1x384x128xbf16>
    %87 = vector.shape_cast %86 : vector<1x384x128xbf16> to vector<384x128xbf16>
    %cst_39 = arith.constant dense<0.000000e+00> : vector<256x128xf32>
    %88 = tpu.matmul %85, %87, %cst_39 {dimension_numbers = #tpu.dot_dimension_numbers<[1], [0], [0], [1], [0, 0, 1, 1], [], []>} : vector<256x384xbf16>, vector<384x128xbf16>, vector<256x128xf32> -> vector<256x128xf32>
    %89 = arith.addf %84, %88 : vector<256x128xf32>
    %90 = vector.extract_strided_slice %78 {offsets = [32, 0], sizes = [256, 384], strides = [1, 1]} : vector<288x384xbf16> to vector<256x384xbf16>
    %c2 = arith.constant 2 : index
    %c0_40 = arith.constant 0 : index
    %c0_41 = arith.constant 0 : index
    %91 = vector.load %arg4[%c2, %c0_40, %c0_41] : memref<3x384x128xbf16, #tpu.memory_space<vmem>>, vector<1x384x128xbf16>
    %92 = vector.shape_cast %91 : vector<1x384x128xbf16> to vector<384x128xbf16>
    %cst_42 = arith.constant dense<0.000000e+00> : vector<256x128xf32>
    %93 = tpu.matmul %90, %92, %cst_42 {dimension_numbers = #tpu.dot_dimension_numbers<[1], [0], [0], [1], [0, 0, 1, 1], [], []>} : vector<256x384xbf16>, vector<384x128xbf16>, vector<256x128xf32> -> vector<256x128xf32>
    %94 = arith.addf %89, %93 : vector<256x128xf32>
    %c0_43 = arith.constant 0 : index
    %c0_44 = arith.constant 0 : index
    %95 = vector.load %arg5[%c0_43, %c0_44] : memref<1x128xf32, #tpu.memory_space<vmem>>, vector<1x128xf32>
    %96 = vector.broadcast %95 : vector<1x128xf32> to vector<256x128xf32>
    %97 = arith.addf %94, %96 : vector<256x128xf32>
    %cst_45 = arith.constant 0.000000e+00 : f32
    %98 = vector.broadcast %cst_45 : f32 to vector<256x128xf32>
    %99 = arith.maximumf %97, %98 : vector<256x128xf32>
    %100 = vector.shape_cast %99 : vector<256x128xf32> to vector<1x16x16x128xf32>
    %101 = arith.truncf %100 : vector<1x16x16x128xf32> to vector<1x16x16x128xbf16>
    %c0_46 = arith.constant 0 : index
    %c0_47 = arith.constant 0 : index
    %c0_48 = arith.constant 0 : index
    %c0_49 = arith.constant 0 : index
    %102 = vector.load %arg8[%c0_46, %c0_47, %c0_48, %c0_49] : memref<1x16x16x128xbf16, #tpu.memory_space<vmem>>, vector<1x16x16x128xbf16>
    tpu.vector_store %arg8[%c0_46, %c0_47, %c0_48, %c0_49], %101 {strides = array<i32>} : memref<1x16x16x128xbf16, #tpu.memory_space<vmem>>, vector<1x16x16x128xbf16>,
    %c0_i32_50 = arith.constant 0 : i32
    %103 = arith.cmpi eq, %arg1, %c0_i32_50 : i32
    %104 = arith.extui %103 : i1 to i32
    %c0_i32_51 = arith.constant 0 : i32
    %105 = arith.cmpi ne, %104, %c0_i32_51 : i32
    scf.if %105 {
      %cst_66 = arith.constant 0.000000e+00 : f32
      %117 = vector.broadcast %cst_66 : f32 to vector<1x1x128xf32>
      %c0_67 = arith.constant 0 : index
      %c0_68 = arith.constant 0 : index
      %c0_69 = arith.constant 0 : index
      %118 = vector.load %arg9[%c0_67, %c0_68, %c0_69] : memref<1x1x128xf32, #tpu.memory_space<vmem>>, vector<1x1x128xf32>
      tpu.vector_store %arg9[%c0_67, %c0_68, %c0_69], %117 {strides = array<i32>} : memref<1x1x128xf32, #tpu.memory_space<vmem>>, vector<1x1x128xf32>,
      %cst_70 = arith.constant 0.000000e+00 : f32
      %119 = vector.broadcast %cst_70 : f32 to vector<1x1x128xf32>
      %c0_71 = arith.constant 0 : index
      %c0_72 = arith.constant 0 : index
      %c0_73 = arith.constant 0 : index
      %120 = vector.load %arg10[%c0_71, %c0_72, %c0_73] : memref<1x1x128xf32, #tpu.memory_space<vmem>>, vector<1x1x128xf32>
      tpu.vector_store %arg10[%c0_71, %c0_72, %c0_73], %119 {strides = array<i32>} : memref<1x1x128xf32, #tpu.memory_space<vmem>>, vector<1x1x128xf32>,
    } else {
    }
    %c0_52 = arith.constant 0 : index
    %c0_53 = arith.constant 0 : index
    %c0_54 = arith.constant 0 : index
    %106 = vector.load %arg9[%c0_52, %c0_53, %c0_54] : memref<1x1x128xf32, #tpu.memory_space<vmem>>, vector<1x1x128xf32>
    %cst_55 = arith.constant dense<0.000000e+00> : vector<128xf32>
    %107 = vector.multi_reduction <add>, %99, %cst_55 [0] : vector<256x128xf32> to vector<128xf32>
    %108 = vector.shape_cast %107 : vector<128xf32> to vector<1x1x128xf32>
    %109 = arith.addf %106, %108 : vector<1x1x128xf32>
    %c0_56 = arith.constant 0 : index
    %c0_57 = arith.constant 0 : index
    %c0_58 = arith.constant 0 : index
    %110 = vector.load %arg9[%c0_56, %c0_57, %c0_58] : memref<1x1x128xf32, #tpu.memory_space<vmem>>, vector<1x1x128xf32>
    tpu.vector_store %arg9[%c0_56, %c0_57, %c0_58], %109 {strides = array<i32>} : memref<1x1x128xf32, #tpu.memory_space<vmem>>, vector<1x1x128xf32>,
    %c0_59 = arith.constant 0 : index
    %c0_60 = arith.constant 0 : index
    %c0_61 = arith.constant 0 : index
    %111 = vector.load %arg10[%c0_59, %c0_60, %c0_61] : memref<1x1x128xf32, #tpu.memory_space<vmem>>, vector<1x1x128xf32>
    %112 = arith.mulf %99, %99 : vector<256x128xf32>
    %cst_62 = arith.constant dense<0.000000e+00> : vector<128xf32>
    %113 = vector.multi_reduction <add>, %112, %cst_62 [0] : vector<256x128xf32> to vector<128xf32>
    %114 = vector.shape_cast %113 : vector<128xf32> to vector<1x1x128xf32>
    %115 = arith.addf %111, %114 : vector<1x1x128xf32>
    %c0_63 = arith.constant 0 : index
    %c0_64 = arith.constant 0 : index
    %c0_65 = arith.constant 0 : index
    %116 = vector.load %arg10[%c0_63, %c0_64, %c0_65] : memref<1x1x128xf32, #tpu.memory_space<vmem>>, vector<1x1x128xf32>
    tpu.vector_store %arg10[%c0_63, %c0_64, %c0_65], %115 {strides = array<i32>} : memref<1x1x128xf32, #tpu.memory_space<vmem>>, vector<1x1x128xf32>,
    return
  }
  func.func @transform_1(%arg0: i32, %arg1: i32) -> (i32, i32, i32, i32) {
    %c0_i32 = arith.constant 0 : i32
    %c0_i32_0 = arith.constant 0 : i32
    %c0_i32_1 = arith.constant 0 : i32
    return %arg0, %arg1, %c0_i32, %c0_i32_0 : i32, i32, i32, i32
  }
  func.func @transform_2(%arg0: i32, %arg1: i32) -> (i32, i32, i32) {
    %c0_i32 = arith.constant 0 : i32
    %c0_i32_0 = arith.constant 0 : i32
    %c0_i32_1 = arith.constant 0 : i32
    %c0_i32_2 = arith.constant 0 : i32
    return %c0_i32, %c0_i32_0, %c0_i32_1 : i32, i32, i32
  }
  func.func @transform_3(%arg0: i32, %arg1: i32) -> (i32, i32) {
    %c0_i32 = arith.constant 0 : i32
    %c0_i32_0 = arith.constant 0 : i32
    %c0_i32_1 = arith.constant 0 : i32
    return %c0_i32, %c0_i32_0 : i32, i32
  }
  func.func @transform_4(%arg0: i32, %arg1: i32) -> (i32, i32) {
    %c0_i32 = arith.constant 0 : i32
    %c0_i32_0 = arith.constant 0 : i32
    %c0_i32_1 = arith.constant 0 : i32
    return %c0_i32, %c0_i32_0 : i32, i32
  }
  func.func @transform_5(%arg0: i32, %arg1: i32) -> (i32, i32) {
    %c0_i32 = arith.constant 0 : i32
    %c0_i32_0 = arith.constant 0 : i32
    %c0_i32_1 = arith.constant 0 : i32
    return %c0_i32, %c0_i32_0 : i32, i32
  }
  func.func @transform_6(%arg0: i32, %arg1: i32) -> (i32, i32, i32, i32) {
    %c0_i32 = arith.constant 0 : i32
    %c0_i32_0 = arith.constant 0 : i32
    %c0_i32_1 = arith.constant 0 : i32
    return %arg0, %arg1, %c0_i32, %c0_i32_0 : i32, i32, i32, i32
  }
  func.func @transform_7(%arg0: i32, %arg1: i32) -> (i32, i32, i32) {
    %c0_i32 = arith.constant 0 : i32
    %c0_i32_0 = arith.constant 0 : i32
    %c0_i32_1 = arith.constant 0 : i32
    return %arg0, %c0_i32, %c0_i32_0 : i32, i32, i32
  }
  func.func @transform_8(%arg0: i32, %arg1: i32) -> (i32, i32, i32) {
    %c0_i32 = arith.constant 0 : i32
    %c0_i32_0 = arith.constant 0 : i32
    %c0_i32_1 = arith.constant 0 : i32
    return %arg0, %c0_i32, %c0_i32_0 : i32, i32, i32
  }
}

</mosaic_0001>

<llo_original>
// kernel: conv_block_forward.2
$region0: #{conv_block_forward.2}
  #allocation0 [shape = 'u32[]', space=smem, size = 0x4, offset = 0x4, fixed_abs, tag = 'smem constant byte address 0x4 - core index']
  #allocation1 [shape = 'u32[72,128]{1,0:T(1,128)}', space=vmem, size = 0x9000, scoped, tag = 'internal scratch']
  #allocation2 [shape = 'bf16[2,16,128]{2,1,0:T(8,128)(2,1)}', space=vmem, size = 0x2000, scoped, tag = 'scratch operand']
  #allocation3 [shape = 's32[2]{0}', space=sflag, size = 0x8, scoped, tag = 'scratch operand']
  #allocation4 [shape = 's32[]', space=sflag, size = 0x4, offset = 0, fixed_abs, tag = 'sflag constant byte address 0x0 - dummy sync flag']
  #allocation5 [shape = 's32[]', space=sflag, size = 0x4, offset = 0, fixed_abs, tag = 'sflag constant byte address 0x0 - dummy sync flag']
  %s0 = inlined_call_operand.vmem [shape: bf16[2,16,16,128], index: 0, kind: input, shape index: {}, may-alias: {0,1}]
  %s1 = inlined_call_operand.vmem [shape: bf16[2,16,16,128], index: 1, kind: input, shape index: {}, may-alias: {0,1}]
  %s2 = inlined_call_operand.vmem [shape: bf16[3,384,128], index: 2, kind: input, shape index: {}]
  %s3 = inlined_call_operand.vmem [shape: f32[1,128], index: 3, kind: input, shape index: {}]
  %s4 = inlined_call_operand.vmem [shape: f32[1,128], index: 4, kind: input, shape index: {}]
  %s5 = inlined_call_operand.vmem [shape: f32[1,128], index: 5, kind: input, shape index: {}]
  %s6 = inlined_call_operand.vmem [shape: bf16[2,16,16,128], index: 6, kind: output, shape index: {0}]
  %s7 = inlined_call_operand.vmem [shape: f32[2,1,128], index: 7, kind: output, shape index: {1}]
  %s8 = inlined_call_operand.vmem [shape: f32[2,1,128], index: 8, kind: output, shape index: {2}]
  %9 = xla_tuple %s6, %s7, %s8
  %s10 = sld [smem:[#allocation0]]
  $region157: #{conv_block_forward.2} parent=0
    _
  %s12 = ssub.s32 1, %s10
  %s13 = scalar_select 0, %s12, %s10
  loop: start=0, step=1, limit=4
  $region2: #{conv_block_forward.2} parent=0 // loop_pre_header
    _
  $region3: #{conv_block_forward.2} parent=0 // loop_header
    %s15 = sphi 0, %s19
    %p16 = scmp.ge.s32.totalorder %s15, 4
    %s22 = sphi 0, %s34
    %s23 = sphi 0, %s30
    %s24 = sphi 0, %s22
    %s25 = sphi 0, %s23
    %s26 = sphi 0, %s24
    %s27 = sphi 0, %s25
    %s39 = sphi 0, %s41
    %s42 = sphi 0, %s39
    %s43 = sphi 0, %s42
    %s59 = sphi 0, %s43
    %s63 = sphi 0, %s63
    %s65 = sphi 0, %s63
    %s66 = sphi 0, %s65
    %s80 = sphi 0, %s66
    %s84 = sphi 0, %s84
    %s86 = sphi 0, %s84
    %s87 = sphi 0, %s86
    %s101 = sphi 0, %s87
    %s105 = sphi 0, %s105
    %s107 = sphi 0, %s105
    %s108 = sphi 0, %s107
    %s122 = sphi 0, %s108
    %s126 = sphi 0, %s126
    %s128 = sphi 0, %s126
    %s129 = sphi 0, %s128
    %s143 = sphi 0, %s129
    %s151 = sphi 0, %s153
    %s154 = sphi 0, %s151
    %s155 = sphi 0, %s154
    %s171 = sphi 0, %s155
    %s177 = sphi 0, %s179
    %s180 = sphi 0, %s177
    %s181 = sphi 0, %s180
    %s197 = sphi 0, %s181
    %s203 = sphi 0, %s205
    %s206 = sphi 0, %s203
    %s207 = sphi 0, %s206
    %s223 = sphi 0, %s207
  $region4: #{conv_block_forward.2} parent=0 // loop_header_branch
    %18 = sbr.rel (%p16) target = $region8
  $region5: #{conv_block_forward.2} parent=0 // loop_body
    %s20 = ssub.s32 %s15, 1
    %s21 = ssub.s32 %s15, 2
    %s28 = sadd.s32 1, %s23
    %p29 = scmp.ge.s32.totalorder %s28, 1
    %s30 = scalar_select %p29, 0, %s28
    %s31 = sadd.s32 1, %s22
    %s32 = scalar_select %p29, %s31, %s22
    %p33 = scmp.ge.s32.totalorder %s32, 2
    %s34 = scalar_select %p33, 0, %s32
    %s35 = ssub.s32 %s22, %s34
    %s36 = ssub.s32 %s23, %s30
    %s37 = sor.u32 %s35, %s36
    %p38 = scmp.eq.s32.totalorder %s37, 0
    %s40 = sadd.s32 %s39, 1
    %s41 = scalar_select %p38, %s39, %s40
    %p44 = pneg %p38
    %p45 = scmp.eq.s32.totalorder %s15, 1
    %p46 = por %p44, %p45
    %p47 = scmp.ne.s32.totalorder %s39, %s42
    %p48 = scmp.eq.s32.totalorder %s15, 0
    %p49 = por %p47, %p48
    %p50 = scmp.ne.s32.totalorder %s39, %s42
    %p51 = scmp.eq.s32.totalorder %s20, 1
    %p52 = por %p50, %p51
    %p53 = scmp.ne.s32.totalorder %s42, %s43
    %p54 = scmp.eq.s32.totalorder %s20, 0
    %p55 = por %p53, %p54
    %p56 = scmp.ne.s32.totalorder %s42, %s43
    %p57 = scmp.eq.s32.totalorder %s21, 1
    %p58 = por %p56, %p57
    %p60 = scmp.ne.s32.totalorder %s43, %s59
    %p61 = scmp.eq.s32.totalorder %s21, 0
    %p62 = por %p60, %p61
    %s64 = sadd.s32 %s63, 1
    %p67 = scmp.eq.s32.totalorder %s15, 1
    %p68 = scmp.ne.s32.totalorder %s63, %s65
    %p69 = scmp.eq.s32.totalorder %s15, 0
    %p70 = por %p68, %p69
    %p71 = scmp.ne.s32.totalorder %s63, %s65
    %p72 = scmp.eq.s32.totalorder %s20, 1
    %p73 = por %p71, %p72
    %p74 = scmp.ne.s32.totalorder %s65, %s66
    %p75 = scmp.eq.s32.totalorder %s20, 0
    %p76 = por %p74, %p75
    %p77 = scmp.ne.s32.totalorder %s65, %s66
    %p78 = scmp.eq.s32.totalorder %s21, 1
    %p79 = por %p77, %p78
    %p81 = scmp.ne.s32.totalorder %s66, %s80
    %p82 = scmp.eq.s32.totalorder %s21, 0
    %p83 = por %p81, %p82
    %s85 = sadd.s32 %s84, 1
    %p88 = scmp.eq.s32.totalorder %s15, 1
    %p89 = scmp.ne.s32.totalorder %s84, %s86
    %p90 = scmp.eq.s32.totalorder %s15, 0
    %p91 = por %p89, %p90
    %p92 = scmp.ne.s32.totalorder %s84, %s86
    %p93 = scmp.eq.s32.totalorder %s20, 1
    %p94 = por %p92, %p93
    %p95 = scmp.ne.s32.totalorder %s86, %s87
    %p96 = scmp.eq.s32.totalorder %s20, 0
    %p97 = por %p95, %p96
    %p98 = scmp.ne.s32.totalorder %s86, %s87
    %p99 = scmp.eq.s32.totalorder %s21, 1
    %p100 = por %p98, %p99
    %p102 = scmp.ne.s32.totalorder %s87, %s101
    %p103 = scmp.eq.s32.totalorder %s21, 0
    %p104 = por %p102, %p103
    %s106 = sadd.s32 %s105, 1
    %p109 = scmp.eq.s32.totalorder %s15, 1
    %p110 = scmp.ne.s32.totalorder %s105, %s107
    %p111 = scmp.eq.s32.totalorder %s15, 0
    %p112 = por %p110, %p111
    %p113 = scmp.ne.s32.totalorder %s105, %s107
    %p114 = scmp.eq.s32.totalorder %s20, 1
    %p115 = por %p113, %p114
    %p116 = scmp.ne.s32.totalorder %s107, %s108
    %p117 = scmp.eq.s32.totalorder %s20, 0
    %p118 = por %p116, %p117
    %p119 = scmp.ne.s32.totalorder %s107, %s108
    %p120 = scmp.eq.s32.totalorder %s21, 1
    %p121 = por %p119, %p120
    %p123 = scmp.ne.s32.totalorder %s108, %s122
    %p124 = scmp.eq.s32.totalorder %s21, 0
    %p125 = por %p123, %p124
    %s127 = sadd.s32 %s126, 1
    %p130 = scmp.eq.s32.totalorder %s15, 1
    %p131 = scmp.ne.s32.totalorder %s126, %s128
    %p132 = scmp.eq.s32.totalorder %s15, 0
    %p133 = por %p131, %p132
    %p134 = scmp.ne.s32.totalorder %s126, %s128
    %p135 = scmp.eq.s32.totalorder %s20, 1
    %p136 = por %p134, %p135
    %p137 = scmp.ne.s32.totalorder %s128, %s129
    %p138 = scmp.eq.s32.totalorder %s20, 0
    %p139 = por %p137, %p138
    %p140 = scmp.ne.s32.totalorder %s128, %s129
    %p141 = scmp.eq.s32.totalorder %s21, 1
    %p142 = por %p140, %p141
    %p144 = scmp.ne.s32.totalorder %s129, %s143
    %p145 = scmp.eq.s32.totalorder %s21, 0
    %p146 = por %p144, %p145
    %s147 = ssub.s32 %s22, %s34
    %s148 = ssub.s32 %s23, %s30
    %s149 = sor.u32 %s147, %s148
    %p150 = scmp.eq.s32.totalorder %s149, 0
    %s152 = sadd.s32 %s151, 1
    %s153 = scalar_select %p150, %s151, %s152
    %p156 = pneg %p150
    %p157 = scmp.eq.s32.totalorder %s15, 1
    %p158 = por %p156, %p157
    %p159 = scmp.ne.s32.totalorder %s151, %s154
    %p160 = scmp.eq.s32.totalorder %s15, 0
    %p161 = por %p159, %p160
    %p162 = scmp.ne.s32.totalorder %s151, %s154
    %p163 = scmp.eq.s32.totalorder %s20, 1
    %p164 = por %p162, %p163
    %p165 = scmp.ne.s32.totalorder %s154, %s155
    %p166 = scmp.eq.s32.totalorder %s20, 0
    %p167 = por %p165, %p166
    %p168 = scmp.ne.s32.totalorder %s154, %s155
    %p169 = scmp.eq.s32.totalorder %s21, 1
    %p170 = por %p168, %p169
    %p172 = scmp.ne.s32.totalorder %s155, %s171
    %p173 = scmp.eq.s32.totalorder %s21, 0
    %p174 = por %p172, %p173
    %s175 = ssub.s32 %s22, %s34
    %p176 = scmp.eq.s32.totalorder %s175, 0
    %s178 = sadd.s32 %s177, 1
    %s179 = scalar_select %p176, %s177, %s178
    %p182 = pneg %p176
    %p183 = scmp.eq.s32.totalorder %s15, 1
    %p184 = por %p182, %p183
    %p185 = scmp.ne.s32.totalorder %s177, %s180
    %p186 = scmp.eq.s32.totalorder %s15, 0
    %p187 = por %p185, %p186
    %p188 = scmp.ne.s32.totalorder %s177, %s180
    %p189 = scmp.eq.s32.totalorder %s20, 1
    %p190 = por %p188, %p189
    %p191 = scmp.ne.s32.totalorder %s180, %s181
    %p192 = scmp.eq.s32.totalorder %s20, 0
    %p193 = por %p191, %p192
    %p194 = scmp.ne.s32.totalorder %s180, %s181
    %p195 = scmp.eq.s32.totalorder %s21, 1
    %p196 = por %p194, %p195
    %p198 = scmp.ne.s32.totalorder %s181, %s197
    %p199 = scmp.eq.s32.totalorder %s21, 0
    %p200 = por %p198, %p199
    %s201 = ssub.s32 %s22, %s34
    %p202 = scmp.eq.s32.totalorder %s201, 0
    %s204 = sadd.s32 %s203, 1
    %s205 = scalar_select %p202, %s203, %s204
    %p208 = pneg %p202
    %p209 = scmp.eq.s32.totalorder %s15, 1
    %p210 = por %p208, %p209
    %p211 = scmp.ne.s32.totalorder %s203, %s206
    %p212 = scmp.eq.s32.totalorder %s15, 0
    %p213 = por %p211, %p212
    %p214 = scmp.ne.s32.totalorder %s203, %s206
    %p215 = scmp.eq.s32.totalorder %s20, 1
    %p216 = por %p214, %p215
    %p217 = scmp.ne.s32.totalorder %s206, %s207
    %p218 = scmp.eq.s32.totalorder %s20, 0
    %p219 = por %p217, %p218
    %p220 = scmp.ne.s32.totalorder %s206, %s207
    %p221 = scmp.eq.s32.totalorder %s21, 1
    %p222 = por %p220, %p221
    %p224 = scmp.ne.s32.totalorder %s207, %s223
    %p225 = scmp.eq.s32.totalorder %s21, 0
    %p226 = por %p224, %p225
    %p227 = scmp.le.s32.totalorder 1, %s15
    %p228 = scmp.lt.s32.totalorder %s15, 3
    %p229 = pnand %p227, %p228
    %p230 = pneg %p229
    // Predicated region
    $region9: #{conv_block_forward.2} parent=5 // pred_check
      _
    $region10: #{conv_block_forward.2} parent=5 // pred_check_branch
      %232 = sbr.rel (%p229) target = $region12
    $region11: #{conv_block_forward.2} parent=5 // pred_region
      %s233 = ssub.s32 %s15, 1
      // Predicated region
      $region13: #{conv_block_forward.2} parent=11 // pred_check
        %p234 = pneg %p76
      $region14: #{conv_block_forward.2} parent=11 // pred_check_branch
        %236 = sbr.rel (%p234) target = $region16
      $region15: #{conv_block_forward.2} parent=11 // pred_region
        _
      $region16: #{conv_block_forward.2} parent=11 // pred_fallthru
        _
      // Predicated region
      $region17: #{conv_block_forward.2} parent=11 // pred_check
        %p237 = pneg %p97
      $region18: #{conv_block_forward.2} parent=11 // pred_check_branch
        %239 = sbr.rel (%p237) target = $region20
      $region19: #{conv_block_forward.2} parent=11 // pred_region
        _
      $region20: #{conv_block_forward.2} parent=11 // pred_fallthru
        _
      // Predicated region
      $region21: #{conv_block_forward.2} parent=11 // pred_check
        %p240 = pneg %p118
      $region22: #{conv_block_forward.2} parent=11 // pred_check_branch
        %242 = sbr.rel (%p240) target = $region24
      $region23: #{conv_block_forward.2} parent=11 // pred_region
        _
      $region24: #{conv_block_forward.2} parent=11 // pred_fallthru
        _
      // Predicated region
      $region25: #{conv_block_forward.2} parent=11 // pred_check
        %p243 = pneg %p139
      $region26: #{conv_block_forward.2} parent=11 // pred_check_branch
        %245 = sbr.rel (%p243) target = $region28
      $region27: #{conv_block_forward.2} parent=11 // pred_region
        _
      $region28: #{conv_block_forward.2} parent=11 // pred_fallthru
        _
    $region12: #{conv_block_forward.2} parent=5 // pred_fallthru
      _
    %p246 = scmp.lt.s32.totalorder %s15, 2
    // Predicated region
    $region29: #{conv_block_forward.2} parent=5 // pred_check
      %p247 = pneg %p246
    $region30: #{conv_block_forward.2} parent=5 // pred_check_branch
      %249 = sbr.rel (%p247) target = $region32
    $region31: #{conv_block_forward.2} parent=5 // pred_region
      // Predicated region
      $region33: #{conv_block_forward.2} parent=31 // pred_check
        %p250 = pneg %p49
      $region34: #{conv_block_forward.2} parent=31 // pred_check_branch
        %252 = sbr.rel (%p250) target = $region36
      $region35: #{conv_block_forward.2} parent=31 // pred_region
        %s253 = smul.u32 16, %s23
        %p254 = scmp.lt.s32.totalorder %s22, 1
        %s255 = scalar_select %p254, %s22, 1
        %p256 = scmp.lt.s32.totalorder %s253, 15
        %s257 = scalar_select %p256, %s253, 15
        %s258 = smul.addr %s257, 2
        %s259 = smul.addr %s255, 32
        %s260 = sadd.s32 %s258, %s259
        %s261 = smul.addr %s260, 4
        %s262 = scalar_lea.vmem %s1, %s261
        %s263 = smul.u32 16, %s23
      $region36: #{conv_block_forward.2} parent=31 // pred_fallthru
        _
    $region32: #{conv_block_forward.2} parent=5 // pred_fallthru
      _
    %p264 = scmp.le.s32.totalorder 1, %s15
    %p265 = scmp.lt.s32.totalorder %s15, 3
    %p266 = pnand %p264, %p265
    %p267 = pneg %p266
    // Predicated region
    $region37: #{conv_block_forward.2} parent=5 // pred_check
      _
    $region38: #{conv_block_forward.2} parent=5 // pred_check_branch
      %269 = sbr.rel (%p266) target = $region40
    $region39: #{conv_block_forward.2} parent=5 // pred_region
      %s270 = ssub.s32 %s15, 1
      %s271 = smul.u32 16, %s25
      %p272 = scmp.lt.s32.totalorder %s24, 1
      %s273 = scalar_select %p272, %s24, 1
      %p274 = scmp.lt.s32.totalorder %s271, 15
      %s275 = scalar_select %p274, %s271, 15
      %s276 = smul.addr %s275, 2
      %s277 = smul.addr %s273, 32
      %s278 = sadd.s32 %s276, %s277
      %s279 = smul.addr %s278, 4
      %s280 = scalar_lea.vmem %s1, %s279
      %p281 = pneg %p55
      %p282 = pneg %p52
      %p283 = pneg %p76
      %p284 = pneg %p73
      %p285 = pneg %p97
      %p286 = pneg %p94
      %p287 = pneg %p118
      %p288 = pneg %p115
      %p289 = pneg %p139
      %p290 = pneg %p136
      %p291 = pneg %p167
      %p292 = pneg %p164
      %s293 = smul.u32 16, %s25
      %p294 = scmp.lt.s32.totalorder %s24, 1
      %s295 = scalar_select %p294, %s24, 1
      %p296 = scmp.lt.s32.totalorder %s293, 15
      %s297 = scalar_select %p296, %s293, 15
      %s298 = smul.addr %s297, 2
      %s299 = smul.addr %s295, 32
      %s300 = sadd.s32 %s298, %s299
      %s301 = smul.addr %s300, 4
      %s302 = scalar_lea.vmem %s6, %s301
      %p303 = pneg %p193
      %p304 = pneg %p190
      %p305 = scmp.lt.s32.totalorder %s24, 1
      %s306 = scalar_select %p305, %s24, 1
      %s307 = scalar_lea.vmem %s7, %s306
      %p308 = pneg %p219
      %p309 = pneg %p216
      %p310 = scmp.lt.s32.totalorder %s24, 1
      %s311 = scalar_select %p310, %s24, 1
      %s312 = scalar_lea.vmem %s8, %s311
      %s313 = smul.u32 16, %s25
      %p314 = scmp.lt.s32.totalorder %s24, 1
      %s315 = scalar_select %p314, %s24, 1
      %p316 = scmp.lt.s32.totalorder %s313, 15
      %s317 = scalar_select %p316, %s313, 15
      %s318 = smul.addr %s317, 2
      %s319 = smul.addr %s315, 32
      %s320 = sadd.s32 %s318, %s319
      %s321 = smul.addr %s320, 4
      %s322 = scalar_lea.vmem %s1, %s321
      %s323 = smul.u32 16, %s25
      %s324 = smul.u32 16, %s25
      %p325 = scmp.lt.s32.totalorder %s24, 1
      %s326 = scalar_select %p325, %s24, 1
      %p327 = scmp.lt.s32.totalorder %s324, 15
      %s328 = scalar_select %p327, %s324, 15
      %s329 = smul.addr %s328, 2
      %s330 = smul.addr %s326, 32
      %s331 = sadd.s32 %s329, %s330
      %s332 = smul.addr %s331, 4
      %s333 = scalar_lea.vmem %s6, %s332
      %s334 = smul.u32 16, %s25
      %p335 = scmp.lt.s32.totalorder %s24, 1
      %s336 = scalar_select %p335, %s24, 1
      %s337 = scalar_lea.vmem %s7, %s336
      %p338 = scmp.lt.s32.totalorder %s24, 1
      %s339 = scalar_select %p338, %s24, 1
      %s340 = scalar_lea.vmem %s8, %s339
      %s341 = smul.u32 %s25, 16
      %p342 = scmp.gt.s32.totalorder %s25, 0
      // Predicated region
      $region41: #{conv_block_forward.2} parent=39 // pred_check
        %p343 = pneg %p342
      $region42: #{conv_block_forward.2} parent=39 // pred_check_branch
        %345 = sbr.rel (%p343) target = $region44
      $region43: #{conv_block_forward.2} parent=39 // pred_region
        %s346 = ssub.s32 %s341, 1
        %s347 = smul.u32 %s346, 2
        %s348 = smul.u32 %s24, 32
        %s349 = sadd.s32 %s347, %s348
        %s350 = smul.addr %s349, 4
        %s351 = scalar_lea.vmem %s0, %s350
        // Predicated region
        $region45: #{conv_block_forward.2} parent=43 // pred_check
          _
        $region46: #{conv_block_forward.2} parent=43 // pred_check_branch
          %353 = sbr.rel (0) target = $region48
        $region47: #{conv_block_forward.2} parent=43 // pred_region
          // Predicated region
          $region60: #{conv_block_forward.2} parent=47 // pred_check
            _
          $region61: #{conv_block_forward.2} parent=47 // pred_check_branch
            %369 = sbr.rel (0) target = $region63
          $region62: #{conv_block_forward.2} parent=47 // pred_region
            loop: start=0, step=1, limit=1
            $region64: #{conv_block_forward.2} parent=62 // loop_pre_header
              _
            $region65: #{conv_block_forward.2} parent=62 // loop_header
              %s371 = sphi 0, %s375
              %p372 = scmp.ge.s32.totalorder %s371, 1
              %s376 = sphi %s351, %s351
              %s377 = sphi [#allocation2], [#allocation2]
            $region66: #{conv_block_forward.2} parent=62 // loop_header_branch
              %374 = sbr.rel (%p372) target = $region70
            $region67: #{conv_block_forward.2} parent=62 // loop_body
              %v378 = vld [vmem:[%s376] sm:$0xff]
              %379 = vst [vmem:[%s377] sm:$0xff] %v378
            $region68: #{conv_block_forward.2} parent=62 // loop_footer
              %s375 = sadd.s32 1, %s371
            $region69: #{conv_block_forward.2} parent=62 // loop_footer_branch
              %370 = sbr.rel target = $region65
            $region70: #{conv_block_forward.2} parent=62 // loop_exit
              _
          $region63: #{conv_block_forward.2} parent=47 // pred_fallthru
            _
          // Predicated region
          $region71: #{conv_block_forward.2} parent=47 // pred_check
            _
          $region72: #{conv_block_forward.2} parent=47 // pred_check_branch
            %381 = sbr.rel target = $region74
          $region73: #{conv_block_forward.2} parent=47 // pred_region
            _
          $region74: #{conv_block_forward.2} parent=47 // pred_fallthru
            _
        $region48: #{conv_block_forward.2} parent=43 // pred_fallthru
          _
        // Predicated region
        $region49: #{conv_block_forward.2} parent=43 // pred_check
          _
        $region50: #{conv_block_forward.2} parent=43 // pred_check_branch
          %355 = sbr.rel target = $region52
        $region51: #{conv_block_forward.2} parent=43 // pred_region
          %s357 = ssub.s32 256, 1
          loop: start=0, step=1, limit=1
          $region53: #{conv_block_forward.2} parent=51 // loop_pre_header
            _
          $region54: #{conv_block_forward.2} parent=51 // loop_header
            %s359 = sphi 0, %s363
            %p360 = scmp.ge.s32.totalorder %s359, 1
            %s364 = sphi %s351, %s351
            %s365 = sphi [#allocation2], [#allocation2]
          $region55: #{conv_block_forward.2} parent=51 // loop_header_branch
            %362 = sbr.rel (%p360) target = $region59
          $region56: #{conv_block_forward.2} parent=51 // loop_body
            %v366 = vld [vmem:[%s364] sm:%s357]
            %367 = vst [vmem:[%s365] sm:%s357] %v366
          $region57: #{conv_block_forward.2} parent=51 // loop_footer
            %s363 = sadd.s32 1, %s359
          $region58: #{conv_block_forward.2} parent=51 // loop_footer_branch
            %358 = sbr.rel target = $region54
          $region59: #{conv_block_forward.2} parent=51 // loop_exit
            _
        $region52: #{conv_block_forward.2} parent=43 // pred_fallthru
          _
        // Predicated region
        $region75: #{conv_block_forward.2} parent=43 // pred_check
          _
        $region76: #{conv_block_forward.2} parent=43 // pred_check_branch
          %384 = sbr.rel (0) target = $region78
        $region77: #{conv_block_forward.2} parent=43 // pred_region
          %385 = vsyncadd [#allocation3], 128
        $region78: #{conv_block_forward.2} parent=43 // pred_fallthru
          _
      $region44: #{conv_block_forward.2} parent=39 // pred_fallthru
        _
      %p386 = scmp.lt.s32.totalorder %s25, 0
      // Predicated region
      $region79: #{conv_block_forward.2} parent=39 // pred_check
        %p387 = pneg %p386
      $region80: #{conv_block_forward.2} parent=39 // pred_check_branch
        %389 = sbr.rel (%p387) target = $region82
      $region81: #{conv_block_forward.2} parent=39 // pred_region
        %s390 = sadd.s32 %s341, 16
        %s391 = smul.u32 %s390, 2
        %s392 = smul.u32 %s24, 32
        %s393 = sadd.s32 %s391, %s392
        %s394 = smul.addr %s393, 4
        %s395 = scalar_lea.vmem %s0, %s394
        %s396 = scalar_lea.vmem [#allocation2], 8
        %s397 = scalar_lea.sflag [#allocation3], 1
        // Predicated region
        $region83: #{conv_block_forward.2} parent=81 // pred_check
          _
        $region84: #{conv_block_forward.2} parent=81 // pred_check_branch
          %399 = sbr.rel (0) target = $region86
        $region85: #{conv_block_forward.2} parent=81 // pred_region
          // Predicated region
          $region98: #{conv_block_forward.2} parent=85 // pred_check
            _
          $region99: #{conv_block_forward.2} parent=85 // pred_check_branch
            %415 = sbr.rel (0) target = $region101
          $region100: #{conv_block_forward.2} parent=85 // pred_region
            loop: start=0, step=1, limit=1
            $region102: #{conv_block_forward.2} parent=100 // loop_pre_header
              _
            $region103: #{conv_block_forward.2} parent=100 // loop_header
              %s417 = sphi 0, %s421
              %p418 = scmp.ge.s32.totalorder %s417, 1
              %s422 = sphi %s395, %s395
              %s423 = sphi %s396, %s396
            $region104: #{conv_block_forward.2} parent=100 // loop_header_branch
              %420 = sbr.rel (%p418) target = $region108
            $region105: #{conv_block_forward.2} parent=100 // loop_body
              %v424 = vld [vmem:[%s422] sm:$0xff]
              %425 = vst [vmem:[%s423] sm:$0xff] %v424
            $region106: #{conv_block_forward.2} parent=100 // loop_footer
              %s421 = sadd.s32 1, %s417
            $region107: #{conv_block_forward.2} parent=100 // loop_footer_branch
              %416 = sbr.rel target = $region103
            $region108: #{conv_block_forward.2} parent=100 // loop_exit
              _
          $region101: #{conv_block_forward.2} parent=85 // pred_fallthru
            _
          // Predicated region
          $region109: #{conv_block_forward.2} parent=85 // pred_check
            _
          $region110: #{conv_block_forward.2} parent=85 // pred_check_branch
            %427 = sbr.rel target = $region112
          $region111: #{conv_block_forward.2} parent=85 // pred_region
            _
          $region112: #{conv_block_forward.2} parent=85 // pred_fallthru
            _
        $region86: #{conv_block_forward.2} parent=81 // pred_fallthru
          _
        // Predicated region
        $region87: #{conv_block_forward.2} parent=81 // pred_check
          _
        $region88: #{conv_block_forward.2} parent=81 // pred_check_branch
          %401 = sbr.rel target = $region90
        $region89: #{conv_block_forward.2} parent=81 // pred_region
          %s403 = ssub.s32 256, 1
          loop: start=0, step=1, limit=1
          $region91: #{conv_block_forward.2} parent=89 // loop_pre_header
            _
          $region92: #{conv_block_forward.2} parent=89 // loop_header
            %s405 = sphi 0, %s409
            %p406 = scmp.ge.s32.totalorder %s405, 1
            %s410 = sphi %s395, %s395
            %s411 = sphi %s396, %s396
          $region93: #{conv_block_forward.2} parent=89 // loop_header_branch
            %408 = sbr.rel (%p406) target = $region97
          $region94: #{conv_block_forward.2} parent=89 // loop_body
            %v412 = vld [vmem:[%s410] sm:%s403]
            %413 = vst [vmem:[%s411] sm:%s403] %v412
          $region95: #{conv_block_forward.2} parent=89 // loop_footer
            %s409 = sadd.s32 1, %s405
          $region96: #{conv_block_forward.2} parent=89 // loop_footer_branch
            %404 = sbr.rel target = $region92
          $region97: #{conv_block_forward.2} parent=89 // loop_exit
            _
        $region90: #{conv_block_forward.2} parent=81 // pred_fallthru
          _
        // Predicated region
        $region113: #{conv_block_forward.2} parent=81 // pred_check
          _
        $region114: #{conv_block_forward.2} parent=81 // pred_check_branch
          %430 = sbr.rel (0) target = $region116
        $region115: #{conv_block_forward.2} parent=81 // pred_region
          %431 = vsyncadd %s397, 128
        $region116: #{conv_block_forward.2} parent=81 // pred_fallthru
          _
      $region82: #{conv_block_forward.2} parent=39 // pred_fallthru
        _
      %v432 = vld [vmem:[%s4] sm:$0x1]
      %v433 = vld [vmem:[%s5] sm:$0x1]
      %v434 = vld [vmem:[%s322] sm:$0xf]
      %v435 = vld [vmem:[%s322 + $0x4] sm:$0xf]
      %v436 = vld [vmem:[%s322 + $0x8] sm:$0xf]
      %v437 = vld [vmem:[%s322 + $0xc] sm:$0xf]
      %v438 = vld [vmem:[%s322 + $0x10] sm:$0xf]
      %v439 = vld [vmem:[%s322 + $0x14] sm:$0xf]
      %v440 = vld [vmem:[%s322 + $0x18] sm:$0xf]
      %v441 = vld [vmem:[%s322 + $0x1c] sm:$0xf]
      %v442 = vld [vmem:[%s322 + $0x20] sm:$0xf]
      %v443 = vld [vmem:[%s322 + $0x24] sm:$0xf]
      %v444 = vld [vmem:[%s322 + $0x28] sm:$0xf]
      %v445 = vld [vmem:[%s322 + $0x2c] sm:$0xf]
      %v446 = vld [vmem:[%s322 + $0x30] sm:$0xf]
      %v447 = vld [vmem:[%s322 + $0x34] sm:$0xf]
      %v448 = vld [vmem:[%s322 + $0x38] sm:$0xf]
      %v449 = vld [vmem:[%s322 + $0x3c] sm:$0xf]
      %v450 = vld [vmem:[%s322 + $0x40] sm:$0xf]
      %v451 = vld [vmem:[%s322 + $0x44] sm:$0xf]
      %v452 = vld [vmem:[%s322 + $0x48] sm:$0xf]
      %v453 = vld [vmem:[%s322 + $0x4c] sm:$0xf]
      %v454 = vld [vmem:[%s322 + $0x50] sm:$0xf]
      %v455 = vld [vmem:[%s322 + $0x54] sm:$0xf]
      %v456 = vld [vmem:[%s322 + $0x58] sm:$0xf]
      %v457 = vld [vmem:[%s322 + $0x5c] sm:$0xf]
      %v458 = vld [vmem:[%s322 + $0x60] sm:$0xf]
      %v459 = vld [vmem:[%s322 + $0x64] sm:$0xf]
      %v460 = vld [vmem:[%s322 + $0x68] sm:$0xf]
      %v461 = vld [vmem:[%s322 + $0x6c] sm:$0xf]
      %v462 = vld [vmem:[%s322 + $0x70] sm:$0xf]
      %v463 = vld [vmem:[%s322 + $0x74] sm:$0xf]
      %v464 = vld [vmem:[%s322 + $0x78] sm:$0xf]
      %v465 = vld [vmem:[%s322 + $0x7c] sm:$0xf]
      %v466 = vunpack.c.l.bf16 %v434
      %v467 = vunpack.c.l.bf16 %v435
      %v468 = vunpack.c.l.bf16 %v436
      %v469 = vunpack.c.l.bf16 %v437
      %v470 = vunpack.c.l.bf16 %v438
      %v471 = vunpack.c.l.bf16 %v439
      %v472 = vunpack.c.l.bf16 %v440
      %v473 = vunpack.c.l.bf16 %v441
      %v474 = vunpack.c.l.bf16 %v442
      %v475 = vunpack.c.l.bf16 %v443
      %v476 = vunpack.c.l.bf16 %v444
      %v477 = vunpack.c.l.bf16 %v445
      %v478 = vunpack.c.l.bf16 %v446
      %v479 = vunpack.c.l.bf16 %v447
      %v480 = vunpack.c.l.bf16 %v448
      %v481 = vunpack.c.l.bf16 %v449
      %v482 = vunpack.c.l.bf16 %v450
      %v483 = vunpack.c.l.bf16 %v451
      %v484 = vunpack.c.l.bf16 %v452
      %v485 = vunpack.c.l.bf16 %v453
      %v486 = vunpack.c.l.bf16 %v454
      %v487 = vunpack.c.l.bf16 %v455
      %v488 = vunpack.c.l.bf16 %v456
      %v489 = vunpack.c.l.bf16 %v457
      %v490 = vunpack.c.l.bf16 %v458
      %v491 = vunpack.c.l.bf16 %v459
      %v492 = vunpack.c.l.bf16 %v460
      %v493 = vunpack.c.l.bf16 %v461
      %v494 = vunpack.c.l.bf16 %v462
      %v495 = vunpack.c.l.bf16 %v463
      %v496 = vunpack.c.l.bf16 %v464
      %v497 = vunpack.c.l.bf16 %v465
      %v499 = vperm.slane %v432, 0
      %v501 = vmul.f32 %v466, %v499
      %v502 = vmul.f32 %v467, %v499
      %v503 = vmul.f32 %v468, %v499
      %v504 = vmul.f32 %v469, %v499
      %v505 = vmul.f32 %v470, %v499
      %v506 = vmul.f32 %v471, %v499
      %v507 = vmul.f32 %v472, %v499
      %v508 = vmul.f32 %v473, %v499
      %v509 = vmul.f32 %v474, %v499
      %v510 = vmul.f32 %v475, %v499
      %v511 = vmul.f32 %v476, %v499
      %v512 = vmul.f32 %v477, %v499
      %v513 = vmul.f32 %v478, %v499
      %v514 = vmul.f32 %v479, %v499
      %v515 = vmul.f32 %v480, %v499
      %v516 = vmul.f32 %v481, %v499
      %v517 = vmul.f32 %v482, %v499
      %v518 = vmul.f32 %v483, %v499
      %v519 = vmul.f32 %v484, %v499
      %v520 = vmul.f32 %v485, %v499
      %v521 = vmul.f32 %v486, %v499
      %v522 = vmul.f32 %v487, %v499
      %v523 = vmul.f32 %v488, %v499
      %v524 = vmul.f32 %v489, %v499
      %v525 = vmul.f32 %v490, %v499
      %v526 = vmul.f32 %v491, %v499
      %v527 = vmul.f32 %v492, %v499
      %v528 = vmul.f32 %v493, %v499
      %v529 = vmul.f32 %v494, %v499
      %v530 = vmul.f32 %v495, %v499
      %v531 = vmul.f32 %v496, %v499
      %v532 = vmul.f32 %v497, %v499
      %v534 = vperm.slane %v433, 0
      %v536 = vadd.f32 %v501, %v534
      %v537 = vadd.f32 %v502, %v534
      %v538 = vadd.f32 %v503, %v534
      %v539 = vadd.f32 %v504, %v534
      %v540 = vadd.f32 %v505, %v534
      %v541 = vadd.f32 %v506, %v534
      %v542 = vadd.f32 %v507, %v534
      %v543 = vadd.f32 %v508, %v534
      %v544 = vadd.f32 %v509, %v534
      %v545 = vadd.f32 %v510, %v534
      %v546 = vadd.f32 %v511, %v534
      %v547 = vadd.f32 %v512, %v534
      %v548 = vadd.f32 %v513, %v534
      %v549 = vadd.f32 %v514, %v534
      %v550 = vadd.f32 %v515, %v534
      %v551 = vadd.f32 %v516, %v534
      %v552 = vadd.f32 %v517, %v534
      %v553 = vadd.f32 %v518, %v534
      %v554 = vadd.f32 %v519, %v534
      %v555 = vadd.f32 %v520, %v534
      %v556 = vadd.f32 %v521, %v534
      %v557 = vadd.f32 %v522, %v534
      %v558 = vadd.f32 %v523, %v534
      %v559 = vadd.f32 %v524, %v534
      %v560 = vadd.f32 %v525, %v534
      %v561 = vadd.f32 %v526, %v534
      %v562 = vadd.f32 %v527, %v534
      %v563 = vadd.f32 %v528, %v534
      %v564 = vadd.f32 %v529, %v534
      %v565 = vadd.f32 %v530, %v534
      %v566 = vadd.f32 %v531, %v534
      %v567 = vadd.f32 %v532, %v534
      // Predicated region
      $region117: #{conv_block_forward.2} parent=39 // pred_check
        %p568 = pneg %p342
      $region118: #{conv_block_forward.2} parent=39 // pred_check_branch
        %570 = sbr.rel (%p568) target = $region120
      $region119: #{conv_block_forward.2} parent=39 // pred_region
        %s571 = smul.u32 4, 2
        %s572 = smul.u32 %s571, 1
        %s573 = sshll.u32 %s572, 4
        %574 = dma.done [#allocation3], %s573
      $region120: #{conv_block_forward.2} parent=39 // pred_fallthru
        _
      // Predicated region
      $region121: #{conv_block_forward.2} parent=39 // pred_check
        %p575 = pneg %p386
      $region122: #{conv_block_forward.2} parent=39 // pred_check_branch
        %577 = sbr.rel (%p575) target = $region124
      $region123: #{conv_block_forward.2} parent=39 // pred_region
        %s578 = scalar_lea.sflag [#allocation3], 1
        %s579 = smul.u32 4, 2
        %s580 = smul.u32 %s579, 1
        %s581 = sshll.u32 %s580, 4
        %582 = dma.done %s578, %s581
      $region124: #{conv_block_forward.2} parent=39 // pred_fallthru
        _
      %v583 = vld [vmem:[#allocation2] sm:$0xf]
      %v584 = vld [vmem:[#allocation2 + $0x4] sm:$0xf]
      %v585 = vunpack.c.l.bf16 %v583
      %v586 = vunpack.c.l.bf16 %v584
      %v587 = vmul.f32 %v585, %v499
      %v588 = vmul.f32 %v586, %v499
      %v589 = vadd.f32 %v587, %v534
      %v590 = vadd.f32 %v588, %v534
      %s591 = scalar_select %p342, 1, 0
      %v592 = vstv %s591
      %vm593 = vcmp.eq.s32.totalorder %v592, 1
      %v594 = vsel %vm593, %v589, 0.0
      %v595 = vsel %vm593, %v590, 0.0
      %s596 = scalar_lea.vmem [#allocation2], 8
      %v597 = vld [vmem:[%s596] sm:$0xf]
      %v598 = vld [vmem:[%s596 + $0x4] sm:$0xf]
      %v599 = vunpack.c.l.bf16 %v597
      %v600 = vunpack.c.l.bf16 %v598
      %v601 = vmul.f32 %v599, %v499
      %v602 = vmul.f32 %v600, %v499
      %v603 = vadd.f32 %v601, %v534
      %v604 = vadd.f32 %v602, %v534
      %s605 = scalar_select %p386, 1, 0
      %v606 = vstv %s605
      %vm607 = vcmp.eq.s32.totalorder %v606, 1
      %v608 = vsel %vm607, %v603, 0.0
      %v609 = vsel %vm607, %v604, 0.0
      %v610 = vrot.slane %v594, 7
      %v611 = vrot.slane %v595, 7
      %v612 = vrot.slane %v536, 7
      %v613 = vrot.slane %v537, 7
      %v614 = vrot.slane %v538, 7
      %v615 = vrot.slane %v539, 7
      %v616 = vrot.slane %v540, 7
      %v617 = vrot.slane %v541, 7
      %v618 = vrot.slane %v542, 7
      %v619 = vrot.slane %v543, 7
      %v620 = vrot.slane %v544, 7
      %v621 = vrot.slane %v545, 7
      %v622 = vrot.slane %v546, 7
      %v623 = vrot.slane %v547, 7
      %v624 = vrot.slane %v548, 7
      %v625 = vrot.slane %v549, 7
      %v626 = vrot.slane %v550, 7
      %v627 = vrot.slane %v551, 7
      %v628 = vrot.slane %v552, 7
      %v629 = vrot.slane %v553, 7
      %v630 = vrot.slane %v554, 7
      %v631 = vrot.slane %v555, 7
      %v632 = vrot.slane %v556, 7
      %v633 = vrot.slane %v557, 7
      %v634 = vrot.slane %v558, 7
      %v635 = vrot.slane %v559, 7
      %v636 = vrot.slane %v560, 7
      %v637 = vrot.slane %v561, 7
      %v638 = vrot.slane %v562, 7
      %v639 = vrot.slane %v563, 7
      %v640 = vrot.slane %v564, 7
      %v641 = vrot.slane %v565, 7
      %v642 = vrot.slane %v566, 7
      %v643 = vrot.slane %v567, 7
      %v644 = vrot.slane %v608, 7
      %v645 = vrot.slane %v609, 7
      %v646 = vlaneseq
      %v647 = vshrl.u32 %v646, 7
      %vm648 = vcmp.lt.s32.totalorder %v647, 1
      %v649 = vsel %vm648, %v644, %v645
      %v650 = vsel %vm648, %v643, %v644
      %v651 = vsel %vm648, %v642, %v643
      %v652 = vsel %vm648, %v641, %v642
      %v653 = vsel %vm648, %v640, %v641
      %v654 = vsel %vm648, %v639, %v640
      %v655 = vsel %vm648, %v638, %v639
      %v656 = vsel %vm648, %v637, %v638
      %v657 = vsel %vm648, %v636, %v637
      %v658 = vsel %vm648, %v635, %v636
      %v659 = vsel %vm648, %v634, %v635
      %v660 = vsel %vm648, %v633, %v634
      %v661 = vsel %vm648, %v632, %v633
      %v662 = vsel %vm648, %v631, %v632
      %v663 = vsel %vm648, %v630, %v631
      %v664 = vsel %vm648, %v629, %v630
      %v665 = vsel %vm648, %v628, %v629
      %v666 = vsel %vm648, %v627, %v628
      %v667 = vsel %vm648, %v626, %v627
      %v668 = vsel %vm648, %v625, %v626
      %v669 = vsel %vm648, %v624, %v625
      %v670 = vsel %vm648, %v623, %v624
      %v671 = vsel %vm648, %v622, %v623
      %v672 = vsel %vm648, %v621, %v622
      %v673 = vsel %vm648, %v620, %v621
      %v674 = vsel %vm648, %v619, %v620
      %v675 = vsel %vm648, %v618, %v619
      %v676 = vsel %vm648, %v617, %v618
      %v677 = vsel %vm648, %v616, %v617
      %v678 = vsel %vm648, %v615, %v616
      %v679 = vsel %vm648, %v614, %v615
      %v680 = vsel %vm648, %v613, %v614
      %v681 = vsel %vm648, %v612, %v613
      %v682 = vsel %vm648, %v611, %v612
      %v683 = vsel %vm648, %v610, %v611
      %v684 = vsel %vm648, %v645, %v610
      %v685 = vrot.slane %v594, 1
      %v686 = vrot.slane %v595, 1
      %v687 = vrot.slane %v536, 1
      %v688 = vrot.slane %v537, 1
      %v689 = vrot.slane %v538, 1
      %v690 = vrot.slane %v539, 1
      %v691 = vrot.slane %v540, 1
      %v692 = vrot.slane %v541, 1
      %v693 = vrot.slane %v542, 1
      %v694 = vrot.slane %v543, 1
      %v695 = vrot.slane %v544, 1
      %v696 = vrot.slane %v545, 1
      %v697 = vrot.slane %v546, 1
      %v698 = vrot.slane %v547, 1
      %v699 = vrot.slane %v548, 1
      %v700 = vrot.slane %v549, 1
      %v701 = vrot.slane %v550, 1
      %v702 = vrot.slane %v551, 1
      %v703 = vrot.slane %v552, 1
      %v704 = vrot.slane %v553, 1
      %v705 = vrot.slane %v554, 1
      %v706 = vrot.slane %v555, 1
      %v707 = vrot.slane %v556, 1
      %v708 = vrot.slane %v557, 1
      %v709 = vrot.slane %v558, 1
      %v710 = vrot.slane %v559, 1
      %v711 = vrot.slane %v560, 1
      %v712 = vrot.slane %v561, 1
      %v713 = vrot.slane %v562, 1
      %v714 = vrot.slane %v563, 1
      %v715 = vrot.slane %v564, 1
      %v716 = vrot.slane %v565, 1
      %v717 = vrot.slane %v566, 1
      %v718 = vrot.slane %v567, 1
      %v719 = vrot.slane %v608, 1
      %v720 = vrot.slane %v609, 1
      %vm721 = vcmp.lt.s32.totalorder %v647, 7
      %v722 = vsel %vm721, %v719, %v720
      %v723 = vsel %vm721, %v718, %v719
      %v724 = vsel %vm721, %v717, %v718
      %v725 = vsel %vm721, %v716, %v717
      %v726 = vsel %vm721, %v715, %v716
      %v727 = vsel %vm721, %v714, %v715
      %v728 = vsel %vm721, %v713, %v714
      %v729 = vsel %vm721, %v712, %v713
      %v730 = vsel %vm721, %v711, %v712
      %v731 = vsel %vm721, %v710, %v711
      %v732 = vsel %vm721, %v709, %v710
      %v733 = vsel %vm721, %v708, %v709
      %v734 = vsel %vm721, %v707, %v708
      %v735 = vsel %vm721, %v706, %v707
      %v736 = vsel %vm721, %v705, %v706
      %v737 = vsel %vm721, %v704, %v705
      %v738 = vsel %vm721, %v703, %v704
      %v739 = vsel %vm721, %v702, %v703
      %v740 = vsel %vm721, %v701, %v702
      %v741 = vsel %vm721, %v700, %v701
      %v742 = vsel %vm721, %v699, %v700
      %v743 = vsel %vm721, %v698, %v699
      %v744 = vsel %vm721, %v697, %v698
      %v745 = vsel %vm721, %v696, %v697
      %v746 = vsel %vm721, %v695, %v696
      %v747 = vsel %vm721, %v694, %v695
      %v748 = vsel %vm721, %v693, %v694
      %v749 = vsel %vm721, %v692, %v693
      %v750 = vsel %vm721, %v691, %v692
      %v751 = vsel %vm721, %v690, %v691
      %v752 = vsel %vm721, %v689, %v690
      %v753 = vsel %vm721, %v688, %v689
      %v754 = vsel %vm721, %v687, %v688
      %v755 = vsel %vm721, %v686, %v687
      %v756 = vsel %vm721, %v685, %v686
      %v757 = vsel %vm721, %v720, %v685
      %v758 = vadd.s32 %v647, 8
      %v759 = vadd.s32 %v647, 16
      %v760 = vadd.s32 %v647, 24
      %v761 = vadd.s32 %v647, 32
      %v762 = vadd.s32 %v647, 40
      %v763 = vadd.s32 %v647, 48
      %v764 = vadd.s32 %v647, 56
      %v765 = vadd.s32 %v647, 64
      %v766 = vadd.s32 %v647, 72
      %v767 = vadd.s32 %v647, 80
      %v768 = vadd.s32 %v647, 88
      %v769 = vadd.s32 %v647, 96
      %v770 = vadd.s32 %v647, 104
      %v771 = vadd.s32 %v647, 112
      %v772 = vadd.s32 %v647, 120
      %v773 = vadd.s32 %v647, 128
      %v774 = vadd.s32 %v647, 136
      %v775 = vadd.s32 %v647, 144
      %v776 = vadd.s32 %v647, 152
      %v777 = vadd.s32 %v647, 160
      %v778 = vadd.s32 %v647, 168
      %v779 = vadd.s32 %v647, 176
      %v780 = vadd.s32 %v647, 184
      %v781 = vadd.s32 %v647, 192
      %v782 = vadd.s32 %v647, 200
      %v783 = vadd.s32 %v647, 208
      %v784 = vadd.s32 %v647, 216
      %v785 = vadd.s32 %v647, 224
      %v786 = vadd.s32 %v647, 232
      %v787 = vadd.s32 %v647, 240
      %v788 = vadd.s32 %v647, 248
      %v789 = vadd.s32 %v647, 256
      %v790 = vadd.s32 %v647, 264
      %v791 = vadd.s32 %v647, 272
      %v792 = vadd.s32 %v647, 280
      %vm793 = vcmp.lt.s32.totalorder %v647, 0
      %v794 = vsub.s32 0, %v647
      %v795 = vsel %vm793, %v794, %v647
      %v796 = vshrl.u32 %v795, 4
      %v797 = vand.u32 %v795, 15
      %v798 = vsub.s32 0, %v797
      %v799 = vsel %vm793, %v798, %v797
      %vm800 = vcmp.lt.s32.totalorder %v758, 0
      %v801 = vsub.s32 0, %v758
      %v802 = vsel %vm800, %v801, %v758
      %v803 = vshrl.u32 %v802, 4
      %v804 = vand.u32 %v802, 15
      %v805 = vsub.s32 0, %v804
      %v806 = vsel %vm800, %v805, %v804
      %vm807 = vcmp.lt.s32.totalorder %v759, 0
      %v808 = vsub.s32 0, %v759
      %v809 = vsel %vm807, %v808, %v759
      %v810 = vshrl.u32 %v809, 4
      %v811 = vand.u32 %v809, 15
      %v812 = vsub.s32 0, %v811
      %v813 = vsel %vm807, %v812, %v811
      %vm814 = vcmp.lt.s32.totalorder %v760, 0
      %v815 = vsub.s32 0, %v760
      %v816 = vsel %vm814, %v815, %v760
      %v817 = vshrl.u32 %v816, 4
      %v818 = vand.u32 %v816, 15
      %v819 = vsub.s32 0, %v818
      %v820 = vsel %vm814, %v819, %v818
      %vm821 = vcmp.lt.s32.totalorder %v761, 0
      %v822 = vsub.s32 0, %v761
      %v823 = vsel %vm821, %v822, %v761
      %v824 = vshrl.u32 %v823, 4
      %v825 = vand.u32 %v823, 15
      %v826 = vsub.s32 0, %v825
      %v827 = vsel %vm821, %v826, %v825
      %vm828 = vcmp.lt.s32.totalorder %v762, 0
      %v829 = vsub.s32 0, %v762
      %v830 = vsel %vm828, %v829, %v762
      %v831 = vshrl.u32 %v830, 4
      %v832 = vand.u32 %v830, 15
      %v833 = vsub.s32 0, %v832
      %v834 = vsel %vm828, %v833, %v832
      %vm835 = vcmp.lt.s32.totalorder %v763, 0
      %v836 = vsub.s32 0, %v763
      %v837 = vsel %vm835, %v836, %v763
      %v838 = vshrl.u32 %v837, 4
      %v839 = vand.u32 %v837, 15
      %v840 = vsub.s32 0, %v839
      %v841 = vsel %vm835, %v840, %v839
      %vm842 = vcmp.lt.s32.totalorder %v764, 0
      %v843 = vsub.s32 0, %v764
      %v844 = vsel %vm842, %v843, %v764
      %v845 = vshrl.u32 %v844, 4
      %v846 = vand.u32 %v844, 15
      %v847 = vsub.s32 0, %v846
      %v848 = vsel %vm842, %v847, %v846
      %vm849 = vcmp.lt.s32.totalorder %v765, 0
      %v850 = vsub.s32 0, %v765
      %v851 = vsel %vm849, %v850, %v765
      %v852 = vshrl.u32 %v851, 4
      %v853 = vand.u32 %v851, 15
      %v854 = vsub.s32 0, %v853
      %v855 = vsel %vm849, %v854, %v853
      %vm856 = vcmp.lt.s32.totalorder %v766, 0
      %v857 = vsub.s32 0, %v766
      %v858 = vsel %vm856, %v857, %v766
      %v859 = vshrl.u32 %v858, 4
      %v860 = vand.u32 %v858, 15
      %v861 = vsub.s32 0, %v860
      %v862 = vsel %vm856, %v861, %v860
      %vm863 = vcmp.lt.s32.totalorder %v767, 0
      %v864 = vsub.s32 0, %v767
      %v865 = vsel %vm863, %v864, %v767
      %v866 = vshrl.u32 %v865, 4
      %v867 = vand.u32 %v865, 15
      %v868 = vsub.s32 0, %v867
      %v869 = vsel %vm863, %v868, %v867
      %vm870 = vcmp.lt.s32.totalorder %v768, 0
      %v871 = vsub.s32 0, %v768
      %v872 = vsel %vm870, %v871, %v768
      %v873 = vshrl.u32 %v872, 4
      %v874 = vand.u32 %v872, 15
      %v875 = vsub.s32 0, %v874
      %v876 = vsel %vm870, %v875, %v874
      %vm877 = vcmp.lt.s32.totalorder %v769, 0
      %v878 = vsub.s32 0, %v769
      %v879 = vsel %vm877, %v878, %v769
      %v880 = vshrl.u32 %v879, 4
      %v881 = vand.u32 %v879, 15
      %v882 = vsub.s32 0, %v881
      %v883 = vsel %vm877, %v882, %v881
      %vm884 = vcmp.lt.s32.totalorder %v770, 0
      %v885 = vsub.s32 0, %v770
      %v886 = vsel %vm884, %v885, %v770
      %v887 = vshrl.u32 %v886, 4
      %v888 = vand.u32 %v886, 15
      %v889 = vsub.s32 0, %v888
      %v890 = vsel %vm884, %v889, %v888
      %vm891 = vcmp.lt.s32.totalorder %v771, 0
      %v892 = vsub.s32 0, %v771
      %v893 = vsel %vm891, %v892, %v771
      %v894 = vshrl.u32 %v893, 4
      %v895 = vand.u32 %v893, 15
      %v896 = vsub.s32 0, %v895
      %v897 = vsel %vm891, %v896, %v895
      %vm898 = vcmp.lt.s32.totalorder %v772, 0
      %v899 = vsub.s32 0, %v772
      %v900 = vsel %vm898, %v899, %v772
      %v901 = vshrl.u32 %v900, 4
      %v902 = vand.u32 %v900, 15
      %v903 = vsub.s32 0, %v902
      %v904 = vsel %vm898, %v903, %v902
      %vm905 = vcmp.lt.s32.totalorder %v773, 0
      %v906 = vsub.s32 0, %v773
      %v907 = vsel %vm905, %v906, %v773
      %v908 = vshrl.u32 %v907, 4
      %v909 = vand.u32 %v907, 15
      %v910 = vsub.s32 0, %v909
      %v911 = vsel %vm905, %v910, %v909
      %vm912 = vcmp.lt.s32.totalorder %v774, 0
      %v913 = vsub.s32 0, %v774
      %v914 = vsel %vm912, %v913, %v774
      %v915 = vshrl.u32 %v914, 4
      %v916 = vand.u32 %v914, 15
      %v917 = vsub.s32 0, %v916
      %v918 = vsel %vm912, %v917, %v916
      %vm919 = vcmp.lt.s32.totalorder %v775, 0
      %v920 = vsub.s32 0, %v775
      %v921 = vsel %vm919, %v920, %v775
      %v922 = vshrl.u32 %v921, 4
      %v923 = vand.u32 %v921, 15
      %v924 = vsub.s32 0, %v923
      %v925 = vsel %vm919, %v924, %v923
      %vm926 = vcmp.lt.s32.totalorder %v776, 0
      %v927 = vsub.s32 0, %v776
      %v928 = vsel %vm926, %v927, %v776
      %v929 = vshrl.u32 %v928, 4
      %v930 = vand.u32 %v928, 15
      %v931 = vsub.s32 0, %v930
      %v932 = vsel %vm926, %v931, %v930
      %vm933 = vcmp.lt.s32.totalorder %v777, 0
      %v934 = vsub.s32 0, %v777
      %v935 = vsel %vm933, %v934, %v777
      %v936 = vshrl.u32 %v935, 4
      %v937 = vand.u32 %v935, 15
      %v938 = vsub.s32 0, %v937
      %v939 = vsel %vm933, %v938, %v937
      %vm940 = vcmp.lt.s32.totalorder %v778, 0
      %v941 = vsub.s32 0, %v778
      %v942 = vsel %vm940, %v941, %v778
      %v943 = vshrl.u32 %v942, 4
      %v944 = vand.u32 %v942, 15
      %v945 = vsub.s32 0, %v944
      %v946 = vsel %vm940, %v945, %v944
      %vm947 = vcmp.lt.s32.totalorder %v779, 0
      %v948 = vsub.s32 0, %v779
      %v949 = vsel %vm947, %v948, %v779
      %v950 = vshrl.u32 %v949, 4
      %v951 = vand.u32 %v949, 15
      %v952 = vsub.s32 0, %v951
      %v953 = vsel %vm947, %v952, %v951
      %vm954 = vcmp.lt.s32.totalorder %v780, 0
      %v955 = vsub.s32 0, %v780
      %v956 = vsel %vm954, %v955, %v780
      %v957 = vshrl.u32 %v956, 4
      %v958 = vand.u32 %v956, 15
      %v959 = vsub.s32 0, %v958
      %v960 = vsel %vm954, %v959, %v958
      %vm961 = vcmp.lt.s32.totalorder %v781, 0
      %v962 = vsub.s32 0, %v781
      %v963 = vsel %vm961, %v962, %v781
      %v964 = vshrl.u32 %v963, 4
      %v965 = vand.u32 %v963, 15
      %v966 = vsub.s32 0, %v965
      %v967 = vsel %vm961, %v966, %v965
      %vm968 = vcmp.lt.s32.totalorder %v782, 0
      %v969 = vsub.s32 0, %v782
      %v970 = vsel %vm968, %v969, %v782
      %v971 = vshrl.u32 %v970, 4
      %v972 = vand.u32 %v970, 15
      %v973 = vsub.s32 0, %v972
      %v974 = vsel %vm968, %v973, %v972
      %vm975 = vcmp.lt.s32.totalorder %v783, 0
      %v976 = vsub.s32 0, %v783
      %v977 = vsel %vm975, %v976, %v783
      %v978 = vshrl.u32 %v977, 4
      %v979 = vand.u32 %v977, 15
      %v980 = vsub.s32 0, %v979
      %v981 = vsel %vm975, %v980, %v979
      %vm982 = vcmp.lt.s32.totalorder %v784, 0
      %v983 = vsub.s32 0, %v784
      %v984 = vsel %vm982, %v983, %v784
      %v985 = vshrl.u32 %v984, 4
      %v986 = vand.u32 %v984, 15
      %v987 = vsub.s32 0, %v986
      %v988 = vsel %vm982, %v987, %v986
      %vm989 = vcmp.lt.s32.totalorder %v785, 0
      %v990 = vsub.s32 0, %v785
      %v991 = vsel %vm989, %v990, %v785
      %v992 = vshrl.u32 %v991, 4
      %v993 = vand.u32 %v991, 15
      %v994 = vsub.s32 0, %v993
      %v995 = vsel %vm989, %v994, %v993
      %vm996 = vcmp.lt.s32.totalorder %v786, 0
      %v997 = vsub.s32 0, %v786
      %v998 = vsel %vm996, %v997, %v786
      %v999 = vshrl.u32 %v998, 4
      %v1000 = vand.u32 %v998, 15
      %v1001 = vsub.s32 0, %v1000
      %v1002 = vsel %vm996, %v1001, %v1000
      %vm1003 = vcmp.lt.s32.totalorder %v787, 0
      %v1004 = vsub.s32 0, %v787
      %v1005 = vsel %vm1003, %v1004, %v787
      %v1006 = vshrl.u32 %v1005, 4
      %v1007 = vand.u32 %v1005, 15
      %v1008 = vsub.s32 0, %v1007
      %v1009 = vsel %vm1003, %v1008, %v1007
      %vm1010 = vcmp.lt.s32.totalorder %v788, 0
      %v1011 = vsub.s32 0, %v788
      %v1012 = vsel %vm1010, %v1011, %v788
      %v1013 = vshrl.u32 %v1012, 4
      %v1014 = vand.u32 %v1012, 15
      %v1015 = vsub.s32 0, %v1014
      %v1016 = vsel %vm1010, %v1015, %v1014
      %vm1017 = vcmp.lt.s32.totalorder %v789, 0
      %v1018 = vsub.s32 0, %v789
      %v1019 = vsel %vm1017, %v1018, %v789
      %v1020 = vshrl.u32 %v1019, 4
      %v1021 = vand.u32 %v1019, 15
      %v1022 = vsub.s32 0, %v1021
      %v1023 = vsel %vm1017, %v1022, %v1021
      %vm1024 = vcmp.lt.s32.totalorder %v790, 0
      %v1025 = vsub.s32 0, %v790
      %v1026 = vsel %vm1024, %v1025, %v790
      %v1027 = vshrl.u32 %v1026, 4
      %v1028 = vand.u32 %v1026, 15
      %v1029 = vsub.s32 0, %v1028
      %v1030 = vsel %vm1024, %v1029, %v1028
      %vm1031 = vcmp.lt.s32.totalorder %v791, 0
      %v1032 = vsub.s32 0, %v791
      %v1033 = vsel %vm1031, %v1032, %v791
      %v1034 = vshrl.u32 %v1033, 4
      %v1035 = vand.u32 %v1033, 15
      %v1036 = vsub.s32 0, %v1035
      %v1037 = vsel %vm1031, %v1036, %v1035
      %vm1038 = vcmp.lt.s32.totalorder %v792, 0
      %v1039 = vsub.s32 0, %v792
      %v1040 = vsel %vm1038, %v1039, %v792
      %v1041 = vshrl.u32 %v1040, 4
      %v1042 = vand.u32 %v1040, 15
      %v1043 = vsub.s32 0, %v1042
      %v1044 = vsel %vm1038, %v1043, %v1042
      %vm1045 = vcmp.ne.s32.totalorder %v799, 0
      %vm1046 = vcmp.ne.s32.totalorder %v806, 0
      %vm1047 = vcmp.ne.s32.totalorder %v813, 0
      %vm1048 = vcmp.ne.s32.totalorder %v820, 0
      %vm1049 = vcmp.ne.s32.totalorder %v827, 0
      %vm1050 = vcmp.ne.s32.totalorder %v834, 0
      %vm1051 = vcmp.ne.s32.totalorder %v841, 0
      %vm1052 = vcmp.ne.s32.totalorder %v848, 0
      %vm1053 = vcmp.ne.s32.totalorder %v855, 0
      %vm1054 = vcmp.ne.s32.totalorder %v862, 0
      %vm1055 = vcmp.ne.s32.totalorder %v869, 0
      %vm1056 = vcmp.ne.s32.totalorder %v876, 0
      %vm1057 = vcmp.ne.s32.totalorder %v883, 0
      %vm1058 = vcmp.ne.s32.totalorder %v890, 0
      %vm1059 = vcmp.ne.s32.totalorder %v897, 0
      %vm1060 = vcmp.ne.s32.totalorder %v904, 0
      %vm1061 = vcmp.ne.s32.totalorder %v911, 0
      %vm1062 = vcmp.ne.s32.totalorder %v918, 0
      %vm1063 = vcmp.ne.s32.totalorder %v925, 0
      %vm1064 = vcmp.ne.s32.totalorder %v932, 0
      %vm1065 = vcmp.ne.s32.totalorder %v939, 0
      %vm1066 = vcmp.ne.s32.totalorder %v946, 0
      %vm1067 = vcmp.ne.s32.totalorder %v953, 0
      %vm1068 = vcmp.ne.s32.totalorder %v960, 0
      %vm1069 = vcmp.ne.s32.totalorder %v967, 0
      %vm1070 = vcmp.ne.s32.totalorder %v974, 0
      %vm1071 = vcmp.ne.s32.totalorder %v981, 0
      %vm1072 = vcmp.ne.s32.totalorder %v988, 0
      %vm1073 = vcmp.ne.s32.totalorder %v995, 0
      %vm1074 = vcmp.ne.s32.totalorder %v1002, 0
      %vm1075 = vcmp.ne.s32.totalorder %v1009, 0
      %vm1076 = vcmp.ne.s32.totalorder %v1016, 0
      %vm1077 = vcmp.ne.s32.totalorder %v1023, 0
      %vm1078 = vcmp.ne.s32.totalorder %v1030, 0
      %vm1079 = vcmp.ne.s32.totalorder %v1037, 0
      %vm1080 = vcmp.ne.s32.totalorder %v1044, 0
      %vm1081 = vcmp.lt.s32.totalorder %v799, 0
      %vm1082 = vcmp.lt.s32.totalorder %v806, 0
      %vm1083 = vcmp.lt.s32.totalorder %v813, 0
      %vm1084 = vcmp.lt.s32.totalorder %v820, 0
      %vm1085 = vcmp.lt.s32.totalorder %v827, 0
      %vm1086 = vcmp.lt.s32.totalorder %v834, 0
      %vm1087 = vcmp.lt.s32.totalorder %v841, 0
      %vm1088 = vcmp.lt.s32.totalorder %v848, 0
      %vm1089 = vcmp.lt.s32.totalorder %v855, 0
      %vm1090 = vcmp.lt.s32.totalorder %v862, 0
      %vm1091 = vcmp.lt.s32.totalorder %v869, 0
      %vm1092 = vcmp.lt.s32.totalorder %v876, 0
      %vm1093 = vcmp.lt.s32.totalorder %v883, 0
      %vm1094 = vcmp.lt.s32.totalorder %v890, 0
      %vm1095 = vcmp.lt.s32.totalorder %v897, 0
      %vm1096 = vcmp.lt.s32.totalorder %v904, 0
      %vm1097 = vcmp.lt.s32.totalorder %v911, 0
      %vm1098 = vcmp.lt.s32.totalorder %v918, 0
      %vm1099 = vcmp.lt.s32.totalorder %v925, 0
      %vm1100 = vcmp.lt.s32.totalorder %v932, 0
      %vm1101 = vcmp.lt.s32.totalorder %v939, 0
      %vm1102 = vcmp.lt.s32.totalorder %v946, 0
      %vm1103 = vcmp.lt.s32.totalorder %v953, 0
      %vm1104 = vcmp.lt.s32.totalorder %v960, 0
      %vm1105 = vcmp.lt.s32.totalorder %v967, 0
      %vm1106 = vcmp.lt.s32.totalorder %v974, 0
      %vm1107 = vcmp.lt.s32.totalorder %v981, 0
      %vm1108 = vcmp.lt.s32.totalorder %v988, 0
      %vm1109 = vcmp.lt.s32.totalorder %v995, 0
      %vm1110 = vcmp.lt.s32.totalorder %v1002, 0
      %vm1111 = vcmp.lt.s32.totalorder %v1009, 0
      %vm1112 = vcmp.lt.s32.totalorder %v1016, 0
      %vm1113 = vcmp.lt.s32.totalorder %v1023, 0
      %vm1114 = vcmp.lt.s32.totalorder %v1030, 0
      %vm1115 = vcmp.lt.s32.totalorder %v1037, 0
      %vm1116 = vcmp.lt.s32.totalorder %v1044, 0
      %vm1117 = vmand %vm1081, %vm1045
      %vm1118 = vmand %vm1082, %vm1046
      %vm1119 = vmand %vm1083, %vm1047
      %vm1120 = vmand %vm1084, %vm1048
      %vm1121 = vmand %vm1085, %vm1049
      %vm1122 = vmand %vm1086, %vm1050
      %vm1123 = vmand %vm1087, %vm1051
      %vm1124 = vmand %vm1088, %vm1052
      %vm1125 = vmand %vm1089, %vm1053
      %vm1126 = vmand %vm1090, %vm1054
      %vm1127 = vmand %vm1091, %vm1055
      %vm1128 = vmand %vm1092, %vm1056
      %vm1129 = vmand %vm1093, %vm1057
      %vm1130 = vmand %vm1094, %vm1058
      %vm1131 = vmand %vm1095, %vm1059
      %vm1132 = vmand %vm1096, %vm1060
      %vm1133 = vmand %vm1097, %vm1061
      %vm1134 = vmand %vm1098, %vm1062
      %vm1135 = vmand %vm1099, %vm1063
      %vm1136 = vmand %vm1100, %vm1064
      %vm1137 = vmand %vm1101, %vm1065
      %vm1138 = vmand %vm1102, %vm1066
      %vm1139 = vmand %vm1103, %vm1067
      %vm1140 = vmand %vm1104, %vm1068
      %vm1141 = vmand %vm1105, %vm1069
      %vm1142 = vmand %vm1106, %vm1070
      %vm1143 = vmand %vm1107, %vm1071
      %vm1144 = vmand %vm1108, %vm1072
      %vm1145 = vmand %vm1109, %vm1073
      %vm1146 = vmand %vm1110, %vm1074
      %vm1147 = vmand %vm1111, %vm1075
      %vm1148 = vmand %vm1112, %vm1076
      %vm1149 = vmand %vm1113, %vm1077
      %vm1150 = vmand %vm1114, %vm1078
      %vm1151 = vmand %vm1115, %vm1079
      %vm1152 = vmand %vm1116, %vm1080
      %v1153 = vadd.s32 %v799, 16
      %v1154 = vadd.s32 %v806, 16
      %v1155 = vadd.s32 %v813, 16
      %v1156 = vadd.s32 %v820, 16
      %v1157 = vadd.s32 %v827, 16
      %v1158 = vadd.s32 %v834, 16
      %v1159 = vadd.s32 %v841, 16
      %v1160 = vadd.s32 %v848, 16
      %v1161 = vadd.s32 %v855, 16
      %v1162 = vadd.s32 %v862, 16
      %v1163 = vadd.s32 %v869, 16
      %v1164 = vadd.s32 %v876, 16
      %v1165 = vadd.s32 %v883, 16
      %v1166 = vadd.s32 %v890, 16
      %v1167 = vadd.s32 %v897, 16
      %v1168 = vadd.s32 %v904, 16
      %v1169 = vadd.s32 %v911, 16
      %v1170 = vadd.s32 %v918, 16
      %v1171 = vadd.s32 %v925, 16
      %v1172 = vadd.s32 %v932, 16
      %v1173 = vadd.s32 %v939, 16
      %v1174 = vadd.s32 %v946, 16
      %v1175 = vadd.s32 %v953, 16
      %v1176 = vadd.s32 %v960, 16
      %v1177 = vadd.s32 %v967, 16
      %v1178 = vadd.s32 %v974, 16
      %v1179 = vadd.s32 %v981, 16
      %v1180 = vadd.s32 %v988, 16
      %v1181 = vadd.s32 %v995, 16
      %v1182 = vadd.s32 %v1002, 16
      %v1183 = vadd.s32 %v1009, 16
      %v1184 = vadd.s32 %v1016, 16
      %v1185 = vadd.s32 %v1023, 16
      %v1186 = vadd.s32 %v1030, 16
      %v1187 = vadd.s32 %v1037, 16
      %v1188 = vadd.s32 %v1044, 16
      %v1189 = vsel %vm1117, %v1153, %v799
      %v1190 = vsel %vm1118, %v1154, %v806
      %v1191 = vsel %vm1119, %v1155, %v813
      %v1192 = vsel %vm1120, %v1156, %v820
      %v1193 = vsel %vm1121, %v1157, %v827
      %v1194 = vsel %vm1122, %v1158, %v834
      %v1195 = vsel %vm1123, %v1159, %v841
      %v1196 = vsel %vm1124, %v1160, %v848
      %v1197 = vsel %vm1125, %v1161, %v855
      %v1198 = vsel %vm1126, %v1162, %v862
      %v1199 = vsel %vm1127, %v1163, %v869
      %v1200 = vsel %vm1128, %v1164, %v876
      %v1201 = vsel %vm1129, %v1165, %v883
      %v1202 = vsel %vm1130, %v1166, %v890
      %v1203 = vsel %vm1131, %v1167, %v897
      %v1204 = vsel %vm1132, %v1168, %v904
      %v1205 = vsel %vm1133, %v1169, %v911
      %v1206 = vsel %vm1134, %v1170, %v918
      %v1207 = vsel %vm1135, %v1171, %v925
      %v1208 = vsel %vm1136, %v1172, %v932
      %v1209 = vsel %vm1137, %v1173, %v939
      %v1210 = vsel %vm1138, %v1174, %v946
      %v1211 = vsel %vm1139, %v1175, %v953
      %v1212 = vsel %vm1140, %v1176, %v960
      %v1213 = vsel %vm1141, %v1177, %v967
      %v1214 = vsel %vm1142, %v1178, %v974
      %v1215 = vsel %vm1143, %v1179, %v981
      %v1216 = vsel %vm1144, %v1180, %v988
      %v1217 = vsel %vm1145, %v1181, %v995
      %v1218 = vsel %vm1146, %v1182, %v1002
      %v1219 = vsel %vm1147, %v1183, %v1009
      %v1220 = vsel %vm1148, %v1184, %v1016
      %v1221 = vsel %vm1149, %v1185, %v1023
      %v1222 = vsel %vm1150, %v1186, %v1030
      %v1223 = vsel %vm1151, %v1187, %v1037
      %v1224 = vsel %vm1152, %v1188, %v1044
      %vm1225 = vcmp.eq.s32.totalorder %v1189, 0
      %vm1226 = vcmp.eq.s32.totalorder %v1190, 0
      %vm1227 = vcmp.eq.s32.totalorder %v1191, 0
      %vm1228 = vcmp.eq.s32.totalorder %v1192, 0
      %vm1229 = vcmp.eq.s32.totalorder %v1193, 0
      %vm1230 = vcmp.eq.s32.totalorder %v1194, 0
      %vm1231 = vcmp.eq.s32.totalorder %v1195, 0
      %vm1232 = vcmp.eq.s32.totalorder %v1196, 0
      %vm1233 = vcmp.eq.s32.totalorder %v1197, 0
      %vm1234 = vcmp.eq.s32.totalorder %v1198, 0
      %vm1235 = vcmp.eq.s32.totalorder %v1199, 0
      %vm1236 = vcmp.eq.s32.totalorder %v1200, 0
      %vm1237 = vcmp.eq.s32.totalorder %v1201, 0
      %vm1238 = vcmp.eq.s32.totalorder %v1202, 0
      %vm1239 = vcmp.eq.s32.totalorder %v1203, 0
      %vm1240 = vcmp.eq.s32.totalorder %v1204, 0
      %vm1241 = vcmp.eq.s32.totalorder %v1205, 0
      %vm1242 = vcmp.eq.s32.totalorder %v1206, 0
      %vm1243 = vcmp.eq.s32.totalorder %v1207, 0
      %vm1244 = vcmp.eq.s32.totalorder %v1208, 0
      %vm1245 = vcmp.eq.s32.totalorder %v1209, 0
      %vm1246 = vcmp.eq.s32.totalorder %v1210, 0
      %vm1247 = vcmp.eq.s32.totalorder %v1211, 0
      %vm1248 = vcmp.eq.s32.totalorder %v1212, 0
      %vm1249 = vcmp.eq.s32.totalorder %v1213, 0
      %vm1250 = vcmp.eq.s32.totalorder %v1214, 0
      %vm1251 = vcmp.eq.s32.totalorder %v1215, 0
      %vm1252 = vcmp.eq.s32.totalorder %v1216, 0
      %vm1253 = vcmp.eq.s32.totalorder %v1217, 0
      %vm1254 = vcmp.eq.s32.totalorder %v1218, 0
      %vm1255 = vcmp.eq.s32.totalorder %v1219, 0
      %vm1256 = vcmp.eq.s32.totalorder %v1220, 0
      %vm1257 = vcmp.eq.s32.totalorder %v1221, 0
      %vm1258 = vcmp.eq.s32.totalorder %v1222, 0
      %vm1259 = vcmp.eq.s32.totalorder %v1223, 0
      %vm1260 = vcmp.eq.s32.totalorder %v1224, 0
      %v1261 = vsel %vm1225, 1, 0
      %v1262 = vsel %vm1226, 1, 0
      %v1263 = vsel %vm1227, 1, 0
      %v1264 = vsel %vm1228, 1, 0
      %v1265 = vsel %vm1229, 1, 0
      %v1266 = vsel %vm1230, 1, 0
      %v1267 = vsel %vm1231, 1, 0
      %v1268 = vsel %vm1232, 1, 0
      %v1269 = vsel %vm1233, 1, 0
      %v1270 = vsel %vm1234, 1, 0
      %v1271 = vsel %vm1235, 1, 0
      %v1272 = vsel %vm1236, 1, 0
      %v1273 = vsel %vm1237, 1, 0
      %v1274 = vsel %vm1238, 1, 0
      %v1275 = vsel %vm1239, 1, 0
      %v1276 = vsel %vm1240, 1, 0
      %v1277 = vsel %vm1241, 1, 0
      %v1278 = vsel %vm1242, 1, 0
      %v1279 = vsel %vm1243, 1, 0
      %v1280 = vsel %vm1244, 1, 0
      %v1281 = vsel %vm1245, 1, 0
      %v1282 = vsel %vm1246, 1, 0
      %v1283 = vsel %vm1247, 1, 0
      %v1284 = vsel %vm1248, 1, 0
      %v1285 = vsel %vm1249, 1, 0
      %v1286 = vsel %vm1250, 1, 0
      %v1287 = vsel %vm1251, 1, 0
      %v1288 = vsel %vm1252, 1, 0
      %v1289 = vsel %vm1253, 1, 0
      %v1290 = vsel %vm1254, 1, 0
      %v1291 = vsel %vm1255, 1, 0
      %v1292 = vsel %vm1256, 1, 0
      %v1293 = vsel %vm1257, 1, 0
      %v1294 = vsel %vm1258, 1, 0
      %v1295 = vsel %vm1259, 1, 0
      %v1296 = vsel %vm1260, 1, 0
      %vm1297 = vcmp.eq.s32.totalorder %v1261, 1
      %vm1298 = vcmp.eq.s32.totalorder %v1262, 1
      %vm1299 = vcmp.eq.s32.totalorder %v1263, 1
      %vm1300 = vcmp.eq.s32.totalorder %v1264, 1
      %vm1301 = vcmp.eq.s32.totalorder %v1265, 1
      %vm1302 = vcmp.eq.s32.totalorder %v1266, 1
      %vm1303 = vcmp.eq.s32.totalorder %v1267, 1
      %vm1304 = vcmp.eq.s32.totalorder %v1268, 1
      %vm1305 = vcmp.eq.s32.totalorder %v1269, 1
      %vm1306 = vcmp.eq.s32.totalorder %v1270, 1
      %vm1307 = vcmp.eq.s32.totalorder %v1271, 1
      %vm1308 = vcmp.eq.s32.totalorder %v1272, 1
      %vm1309 = vcmp.eq.s32.totalorder %v1273, 1
      %vm1310 = vcmp.eq.s32.totalorder %v1274, 1
      %vm1311 = vcmp.eq.s32.totalorder %v1275, 1
      %vm1312 = vcmp.eq.s32.totalorder %v1276, 1
      %vm1313 = vcmp.eq.s32.totalorder %v1277, 1
      %vm1314 = vcmp.eq.s32.totalorder %v1278, 1
      %vm1315 = vcmp.eq.s32.totalorder %v1279, 1
      %vm1316 = vcmp.eq.s32.totalorder %v1280, 1
      %vm1317 = vcmp.eq.s32.totalorder %v1281, 1
      %vm1318 = vcmp.eq.s32.totalorder %v1282, 1
      %vm1319 = vcmp.eq.s32.totalorder %v1283, 1
      %vm1320 = vcmp.eq.s32.totalorder %v1284, 1
      %vm1321 = vcmp.eq.s32.totalorder %v1285, 1
      %vm1322 = vcmp.eq.s32.totalorder %v1286, 1
      %vm1323 = vcmp.eq.s32.totalorder %v1287, 1
      %vm1324 = vcmp.eq.s32.totalorder %v1288, 1
      %vm1325 = vcmp.eq.s32.totalorder %v1289, 1
      %vm1326 = vcmp.eq.s32.totalorder %v1290, 1
      %vm1327 = vcmp.eq.s32.totalorder %v1291, 1
      %vm1328 = vcmp.eq.s32.totalorder %v1292, 1
      %vm1329 = vcmp.eq.s32.totalorder %v1293, 1
      %vm1330 = vcmp.eq.s32.totalorder %v1294, 1
      %vm1331 = vcmp.eq.s32.totalorder %v1295, 1
      %vm1332 = vcmp.eq.s32.totalorder %v1296, 1
      %v1333 = vsel %vm1297, 0.0, %v684
      %v1334 = vsel %vm1298, 0.0, %v683
      %v1335 = vsel %vm1299, 0.0, %v682
      %v1336 = vsel %vm1300, 0.0, %v681
      %v1337 = vsel %vm1301, 0.0, %v680
      %v1338 = vsel %vm1302, 0.0, %v679
      %v1339 = vsel %vm1303, 0.0, %v678
      %v1340 = vsel %vm1304, 0.0, %v677
      %v1341 = vsel %vm1305, 0.0, %v676
      %v1342 = vsel %vm1306, 0.0, %v675
      %v1343 = vsel %vm1307, 0.0, %v674
      %v1344 = vsel %vm1308, 0.0, %v673
      %v1345 = vsel %vm1309, 0.0, %v672
      %v1346 = vsel %vm1310, 0.0, %v671
      %v1347 = vsel %vm1311, 0.0, %v670
      %v1348 = vsel %vm1312, 0.0, %v669
      %v1349 = vsel %vm1313, 0.0, %v668
      %v1350 = vsel %vm1314, 0.0, %v667
      %v1351 = vsel %vm1315, 0.0, %v666
      %v1352 = vsel %vm1316, 0.0, %v665
      %v1353 = vsel %vm1317, 0.0, %v664
      %v1354 = vsel %vm1318, 0.0, %v663
      %v1355 = vsel %vm1319, 0.0, %v662
      %v1356 = vsel %vm1320, 0.0, %v661
      %v1357 = vsel %vm1321, 0.0, %v660
      %v1358 = vsel %vm1322, 0.0, %v659
      %v1359 = vsel %vm1323, 0.0, %v658
      %v1360 = vsel %vm1324, 0.0, %v657
      %v1361 = vsel %vm1325, 0.0, %v656
      %v1362 = vsel %vm1326, 0.0, %v655
      %v1363 = vsel %vm1327, 0.0, %v654
      %v1364 = vsel %vm1328, 0.0, %v653
      %v1365 = vsel %vm1329, 0.0, %v652
      %v1366 = vsel %vm1330, 0.0, %v651
      %v1367 = vsel %vm1331, 0.0, %v650
      %v1368 = vsel %vm1332, 0.0, %v649
      %vm1369 = vcmp.eq.s32.totalorder %v1189, 15
      %vm1370 = vcmp.eq.s32.totalorder %v1190, 15
      %vm1371 = vcmp.eq.s32.totalorder %v1191, 15
      %vm1372 = vcmp.eq.s32.totalorder %v1192, 15
      %vm1373 = vcmp.eq.s32.totalorder %v1193, 15
      %vm1374 = vcmp.eq.s32.totalorder %v1194, 15
      %vm1375 = vcmp.eq.s32.totalorder %v1195, 15
      %vm1376 = vcmp.eq.s32.totalorder %v1196, 15
      %vm1377 = vcmp.eq.s32.totalorder %v1197, 15
      %vm1378 = vcmp.eq.s32.totalorder %v1198, 15
      %vm1379 = vcmp.eq.s32.totalorder %v1199, 15
      %vm1380 = vcmp.eq.s32.totalorder %v1200, 15
      %vm1381 = vcmp.eq.s32.totalorder %v1201, 15
      %vm1382 = vcmp.eq.s32.totalorder %v1202, 15
      %vm1383 = vcmp.eq.s32.totalorder %v1203, 15
      %vm1384 = vcmp.eq.s32.totalorder %v1204, 15
      %vm1385 = vcmp.eq.s32.totalorder %v1205, 15
      %vm1386 = vcmp.eq.s32.totalorder %v1206, 15
      %vm1387 = vcmp.eq.s32.totalorder %v1207, 15
      %vm1388 = vcmp.eq.s32.totalorder %v1208, 15
      %vm1389 = vcmp.eq.s32.totalorder %v1209, 15
      %vm1390 = vcmp.eq.s32.totalorder %v1210, 15
      %vm1391 = vcmp.eq.s32.totalorder %v1211, 15
      %vm1392 = vcmp.eq.s32.totalorder %v1212, 15
      %vm1393 = vcmp.eq.s32.totalorder %v1213, 15
      %vm1394 = vcmp.eq.s32.totalorder %v1214, 15
      %vm1395 = vcmp.eq.s32.totalorder %v1215, 15
      %vm1396 = vcmp.eq.s32.totalorder %v1216, 15
      %vm1397 = vcmp.eq.s32.totalorder %v1217, 15
      %vm1398 = vcmp.eq.s32.totalorder %v1218, 15
      %vm1399 = vcmp.eq.s32.totalorder %v1219, 15
      %vm1400 = vcmp.eq.s32.totalorder %v1220, 15
      %vm1401 = vcmp.eq.s32.totalorder %v1221, 15
      %vm1402 = vcmp.eq.s32.totalorder %v1222, 15
      %vm1403 = vcmp.eq.s32.totalorder %v1223, 15
      %vm1404 = vcmp.eq.s32.totalorder %v1224, 15
      %v1405 = vsel %vm1369, 1, 0
      %v1406 = vsel %vm1370, 1, 0
      %v1407 = vsel %vm1371, 1, 0
      %v1408 = vsel %vm1372, 1, 0
      %v1409 = vsel %vm1373, 1, 0
      %v1410 = vsel %vm1374, 1, 0
      %v1411 = vsel %vm1375, 1, 0
      %v1412 = vsel %vm1376, 1, 0
      %v1413 = vsel %vm1377, 1, 0
      %v1414 = vsel %vm1378, 1, 0
      %v1415 = vsel %vm1379, 1, 0
      %v1416 = vsel %vm1380, 1, 0
      %v1417 = vsel %vm1381, 1, 0
      %v1418 = vsel %vm1382, 1, 0
      %v1419 = vsel %vm1383, 1, 0
      %v1420 = vsel %vm1384, 1, 0
      %v1421 = vsel %vm1385, 1, 0
      %v1422 = vsel %vm1386, 1, 0
      %v1423 = vsel %vm1387, 1, 0
      %v1424 = vsel %vm1388, 1, 0
      %v1425 = vsel %vm1389, 1, 0
      %v1426 = vsel %vm1390, 1, 0
      %v1427 = vsel %vm1391, 1, 0
      %v1428 = vsel %vm1392, 1, 0
      %v1429 = vsel %vm1393, 1, 0
      %v1430 = vsel %vm1394, 1, 0
      %v1431 = vsel %vm1395, 1, 0
      %v1432 = vsel %vm1396, 1, 0
      %v1433 = vsel %vm1397, 1, 0
      %v1434 = vsel %vm1398, 1, 0
      %v1435 = vsel %vm1399, 1, 0
      %v1436 = vsel %vm1400, 1, 0
      %v1437 = vsel %vm1401, 1, 0
      %v1438 = vsel %vm1402, 1, 0
      %v1439 = vsel %vm1403, 1, 0
      %v1440 = vsel %vm1404, 1, 0
      %vm1441 = vcmp.eq.s32.totalorder %v1405, 1
      %vm1442 = vcmp.eq.s32.totalorder %v1406, 1
      %vm1443 = vcmp.eq.s32.totalorder %v1407, 1
      %vm1444 = vcmp.eq.s32.totalorder %v1408, 1
      %vm1445 = vcmp.eq.s32.totalorder %v1409, 1
      %vm1446 = vcmp.eq.s32.totalorder %v1410, 1
      %vm1447 = vcmp.eq.s32.totalorder %v1411, 1
      %vm1448 = vcmp.eq.s32.totalorder %v1412, 1
      %vm1449 = vcmp.eq.s32.totalorder %v1413, 1
      %vm1450 = vcmp.eq.s32.totalorder %v1414, 1
      %vm1451 = vcmp.eq.s32.totalorder %v1415, 1
      %vm1452 = vcmp.eq.s32.totalorder %v1416, 1
      %vm1453 = vcmp.eq.s32.totalorder %v1417, 1
      %vm1454 = vcmp.eq.s32.totalorder %v1418, 1
      %vm1455 = vcmp.eq.s32.totalorder %v1419, 1
      %vm1456 = vcmp.eq.s32.totalorder %v1420, 1
      %vm1457 = vcmp.eq.s32.totalorder %v1421, 1
      %vm1458 = vcmp.eq.s32.totalorder %v1422, 1
      %vm1459 = vcmp.eq.s32.totalorder %v1423, 1
      %vm1460 = vcmp.eq.s32.totalorder %v1424, 1
      %vm1461 = vcmp.eq.s32.totalorder %v1425, 1
      %vm1462 = vcmp.eq.s32.totalorder %v1426, 1
      %vm1463 = vcmp.eq.s32.totalorder %v1427, 1
      %vm1464 = vcmp.eq.s32.totalorder %v1428, 1
      %vm1465 = vcmp.eq.s32.totalorder %v1429, 1
      %vm1466 = vcmp.eq.s32.totalorder %v1430, 1
      %vm1467 = vcmp.eq.s32.totalorder %v1431, 1
      %vm1468 = vcmp.eq.s32.totalorder %v1432, 1
      %vm1469 = vcmp.eq.s32.totalorder %v1433, 1
      %vm1470 = vcmp.eq.s32.totalorder %v1434, 1
      %vm1471 = vcmp.eq.s32.totalorder %v1435, 1
      %vm1472 = vcmp.eq.s32.totalorder %v1436, 1
      %vm1473 = vcmp.eq.s32.totalorder %v1437, 1
      %vm1474 = vcmp.eq.s32.totalorder %v1438, 1
      %vm1475 = vcmp.eq.s32.totalorder %v1439, 1
      %vm1476 = vcmp.eq.s32.totalorder %v1440, 1
      %v1477 = vsel %vm1441, 0.0, %v756
      %v1478 = vsel %vm1442, 0.0, %v755
      %v1479 = vsel %vm1443, 0.0, %v754
      %v1480 = vsel %vm1444, 0.0, %v753
      %v1481 = vsel %vm1445, 0.0, %v752
      %v1482 = vsel %vm1446, 0.0, %v751
      %v1483 = vsel %vm1447, 0.0, %v750
      %v1484 = vsel %vm1448, 0.0, %v749
      %v1485 = vsel %vm1449, 0.0, %v748
      %v1486 = vsel %vm1450, 0.0, %v747
      %v1487 = vsel %vm1451, 0.0, %v746
      %v1488 = vsel %vm1452, 0.0, %v745
      %v1489 = vsel %vm1453, 0.0, %v744
      %v1490 = vsel %vm1454, 0.0, %v743
      %v1491 = vsel %vm1455, 0.0, %v742
      %v1492 = vsel %vm1456, 0.0, %v741
      %v1493 = vsel %vm1457, 0.0, %v740
      %v1494 = vsel %vm1458, 0.0, %v739
      %v1495 = vsel %vm1459, 0.0, %v738
      %v1496 = vsel %vm1460, 0.0, %v737
      %v1497 = vsel %vm1461, 0.0, %v736
      %v1498 = vsel %vm1462, 0.0, %v735
      %v1499 = vsel %vm1463, 0.0, %v734
      %v1500 = vsel %vm1464, 0.0, %v733
      %v1501 = vsel %vm1465, 0.0, %v732
      %v1502 = vsel %vm1466, 0.0, %v731
      %v1503 = vsel %vm1467, 0.0, %v730
      %v1504 = vsel %vm1468, 0.0, %v729
      %v1505 = vsel %vm1469, 0.0, %v728
      %v1506 = vsel %vm1470, 0.0, %v727
      %v1507 = vsel %vm1471, 0.0, %v726
      %v1508 = vsel %vm1472, 0.0, %v725
      %v1509 = vsel %vm1473, 0.0, %v724
      %v1510 = vsel %vm1474, 0.0, %v723
      %v1511 = vsel %vm1475, 0.0, %v722
      %v1512 = vsel %vm1476, 0.0, %v757
      %v1513 = vpack.c.bf16 %v1333, %v1333
      %v1514 = vpack.c.bf16 %v1334, %v1334
      %v1515 = vpack.c.bf16 %v1335, %v1335
      %v1516 = vpack.c.bf16 %v1336, %v1336
      %v1517 = vpack.c.bf16 %v1337, %v1337
      %v1518 = vpack.c.bf16 %v1338, %v1338
      %v1519 = vpack.c.bf16 %v1339, %v1339
      %v1520 = vpack.c.bf16 %v1340, %v1340
      %v1521 = vpack.c.bf16 %v1341, %v1341
      %v1522 = vpack.c.bf16 %v1342, %v1342
      %v1523 = vpack.c.bf16 %v1343, %v1343
      %v1524 = vpack.c.bf16 %v1344, %v1344
      %v1525 = vpack.c.bf16 %v1345, %v1345
      %v1526 = vpack.c.bf16 %v1346, %v1346
      %v1527 = vpack.c.bf16 %v1347, %v1347
      %v1528 = vpack.c.bf16 %v1348, %v1348
      %v1529 = vpack.c.bf16 %v1349, %v1349
      %v1530 = vpack.c.bf16 %v1350, %v1350
      %v1531 = vpack.c.bf16 %v1351, %v1351
      %v1532 = vpack.c.bf16 %v1352, %v1352
      %v1533 = vpack.c.bf16 %v1353, %v1353
      %v1534 = vpack.c.bf16 %v1354, %v1354
      %v1535 = vpack.c.bf16 %v1355, %v1355
      %v1536 = vpack.c.bf16 %v1356, %v1356
      %v1537 = vpack.c.bf16 %v1357, %v1357
      %v1538 = vpack.c.bf16 %v1358, %v1358
      %v1539 = vpack.c.bf16 %v1359, %v1359
      %v1540 = vpack.c.bf16 %v1360, %v1360
      %v1541 = vpack.c.bf16 %v1361, %v1361
      %v1542 = vpack.c.bf16 %v1362, %v1362
      %v1543 = vpack.c.bf16 %v1363, %v1363
      %v1544 = vpack.c.bf16 %v1364, %v1364
      %v1545 = vpack.c.bf16 %v1365, %v1365
      %v1546 = vpack.c.bf16 %v1366, %v1366
      %v1547 = vpack.c.bf16 %v1367, %v1367
      %v1548 = vpack.c.bf16 %v1368, %v1368
      %v1549 = vpack.c.bf16 %v594, %v594
      %v1550 = vpack.c.bf16 %v595, %v595
      %v1551 = vpack.c.bf16 %v536, %v536
      %v1552 = vpack.c.bf16 %v537, %v537
      %v1553 = vpack.c.bf16 %v538, %v538
      %v1554 = vpack.c.bf16 %v539, %v539
      %v1555 = vpack.c.bf16 %v540, %v540
      %v1556 = vpack.c.bf16 %v541, %v541
      %v1557 = vpack.c.bf16 %v542, %v542
      %v1558 = vpack.c.bf16 %v543, %v543
      %v1559 = vpack.c.bf16 %v544, %v544
      %v1560 = vpack.c.bf16 %v545, %v545
      %v1561 = vpack.c.bf16 %v546, %v546
      %v1562 = vpack.c.bf16 %v547, %v547
      %v1563 = vpack.c.bf16 %v548, %v548
      %v1564 = vpack.c.bf16 %v549, %v549
      %v1565 = vpack.c.bf16 %v550, %v550
      %v1566 = vpack.c.bf16 %v551, %v551
      %v1567 = vpack.c.bf16 %v552, %v552
      %v1568 = vpack.c.bf16 %v553, %v553
      %v1569 = vpack.c.bf16 %v554, %v554
      %v1570 = vpack.c.bf16 %v555, %v555
      %v1571 = vpack.c.bf16 %v556, %v556
      %v1572 = vpack.c.bf16 %v557, %v557
      %v1573 = vpack.c.bf16 %v558, %v558
      %v1574 = vpack.c.bf16 %v559, %v559
      %v1575 = vpack.c.bf16 %v560, %v560
      %v1576 = vpack.c.bf16 %v561, %v561
      %v1577 = vpack.c.bf16 %v562, %v562
      %v1578 = vpack.c.bf16 %v563, %v563
      %v1579 = vpack.c.bf16 %v564, %v564
      %v1580 = vpack.c.bf16 %v565, %v565
      %v1581 = vpack.c.bf16 %v566, %v566
      %v1582 = vpack.c.bf16 %v567, %v567
      %v1583 = vpack.c.bf16 %v608, %v608
      %v1584 = vpack.c.bf16 %v609, %v609
      %v1585 = vpack.c.bf16 %v1477, %v1477
      %v1586 = vpack.c.bf16 %v1478, %v1478
      %v1587 = vpack.c.bf16 %v1479, %v1479
      %v1588 = vpack.c.bf16 %v1480, %v1480
      %v1589 = vpack.c.bf16 %v1481, %v1481
      %v1590 = vpack.c.bf16 %v1482, %v1482
      %v1591 = vpack.c.bf16 %v1483, %v1483
      %v1592 = vpack.c.bf16 %v1484, %v1484
      %v1593 = vpack.c.bf16 %v1485, %v1485
      %v1594 = vpack.c.bf16 %v1486, %v1486
      %v1595 = vpack.c.bf16 %v1487, %v1487
      %v1596 = vpack.c.bf16 %v1488, %v1488
      %v1597 = vpack.c.bf16 %v1489, %v1489
      %v1598 = vpack.c.bf16 %v1490, %v1490
      %v1599 = vpack.c.bf16 %v1491, %v1491
      %v1600 = vpack.c.bf16 %v1492, %v1492
      %v1601 = vpack.c.bf16 %v1493, %v1493
      %v1602 = vpack.c.bf16 %v1494, %v1494
      %v1603 = vpack.c.bf16 %v1495, %v1495
      %v1604 = vpack.c.bf16 %v1496, %v1496
      %v1605 = vpack.c.bf16 %v1497, %v1497
      %v1606 = vpack.c.bf16 %v1498, %v1498
      %v1607 = vpack.c.bf16 %v1499, %v1499
      %v1608 = vpack.c.bf16 %v1500, %v1500
      %v1609 = vpack.c.bf16 %v1501, %v1501
      %v1610 = vpack.c.bf16 %v1502, %v1502
      %v1611 = vpack.c.bf16 %v1503, %v1503
      %v1612 = vpack.c.bf16 %v1504, %v1504
      %v1613 = vpack.c.bf16 %v1505, %v1505
      %v1614 = vpack.c.bf16 %v1506, %v1506
      %v1615 = vpack.c.bf16 %v1507, %v1507
      %v1616 = vpack.c.bf16 %v1508, %v1508
      %v1617 = vpack.c.bf16 %v1509, %v1509
      %v1618 = vpack.c.bf16 %v1510, %v1510
      %v1619 = vpack.c.bf16 %v1511, %v1511
      %v1620 = vpack.c.bf16 %v1512, %v1512
      %v1657 = vunpack.c.l.b16 %v1513
      %v1658 = vunpack.c.l.b16 %v1514
      %v1659 = vunpack.c.l.b16 %v1515
      %v1660 = vunpack.c.l.b16 %v1516
      %v1661 = vunpack.c.l.b16 %v1517
      %v1662 = vunpack.c.l.b16 %v1518
      %v1663 = vunpack.c.l.b16 %v1519
      %v1664 = vunpack.c.l.b16 %v1520
      %v1665 = vunpack.c.l.b16 %v1521
      %v1666 = vunpack.c.l.b16 %v1522
      %v1667 = vunpack.c.l.b16 %v1523
      %v1668 = vunpack.c.l.b16 %v1524
      %v1669 = vunpack.c.l.b16 %v1525
      %v1670 = vunpack.c.l.b16 %v1526
      %v1671 = vunpack.c.l.b16 %v1527
      %v1672 = vunpack.c.l.b16 %v1528
      %v1673 = vunpack.c.l.b16 %v1529
      %v1674 = vunpack.c.l.b16 %v1530
      %v1675 = vunpack.c.l.b16 %v1531
      %v1676 = vunpack.c.l.b16 %v1532
      %v1677 = vunpack.c.l.b16 %v1533
      %v1678 = vunpack.c.l.b16 %v1534
      %v1679 = vunpack.c.l.b16 %v1535
      %v1680 = vunpack.c.l.b16 %v1536
      %v1681 = vunpack.c.l.b16 %v1537
      %v1682 = vunpack.c.l.b16 %v1538
      %v1683 = vunpack.c.l.b16 %v1539
      %v1684 = vunpack.c.l.b16 %v1540
      %v1685 = vunpack.c.l.b16 %v1541
      %v1686 = vunpack.c.l.b16 %v1542
      %v1687 = vunpack.c.l.b16 %v1543
      %v1688 = vunpack.c.l.b16 %v1544
      %v1689 = vunpack.c.l.b16 %v1545
      %v1690 = vunpack.c.l.b16 %v1546
      %v1691 = vunpack.c.l.b16 %v1547
      %v1692 = vunpack.c.l.b16 %v1548
      %v1693 = vpack.c.b16 %v1658, %v1657
      %v1694 = vpack.c.b16 %v1660, %v1659
      %v1695 = vpack.c.b16 %v1662, %v1661
      %v1696 = vpack.c.b16 %v1664, %v1663
      %v1697 = vpack.c.b16 %v1666, %v1665
      %v1698 = vpack.c.b16 %v1668, %v1667
      %v1699 = vpack.c.b16 %v1670, %v1669
      %v1700 = vpack.c.b16 %v1672, %v1671
      %v1701 = vpack.c.b16 %v1674, %v1673
      %v1702 = vpack.c.b16 %v1676, %v1675
      %v1703 = vpack.c.b16 %v1678, %v1677
      %v1704 = vpack.c.b16 %v1680, %v1679
      %v1705 = vpack.c.b16 %v1682, %v1681
      %v1706 = vpack.c.b16 %v1684, %v1683
      %v1707 = vpack.c.b16 %v1686, %v1685
      %v1708 = vpack.c.b16 %v1688, %v1687
      %v1709 = vpack.c.b16 %v1690, %v1689
      %v1710 = vpack.c.b16 %v1692, %v1691
      %v1765 = vunpack.c.l.b16 %v1549
      %v1766 = vunpack.c.l.b16 %v1550
      %v1767 = vunpack.c.l.b16 %v1551
      %v1768 = vunpack.c.l.b16 %v1552
      %v1769 = vunpack.c.l.b16 %v1553
      %v1770 = vunpack.c.l.b16 %v1554
      %v1771 = vunpack.c.l.b16 %v1555
      %v1772 = vunpack.c.l.b16 %v1556
      %v1773 = vunpack.c.l.b16 %v1557
      %v1774 = vunpack.c.l.b16 %v1558
      %v1775 = vunpack.c.l.b16 %v1559
      %v1776 = vunpack.c.l.b16 %v1560
      %v1777 = vunpack.c.l.b16 %v1561
      %v1778 = vunpack.c.l.b16 %v1562
      %v1779 = vunpack.c.l.b16 %v1563
      %v1780 = vunpack.c.l.b16 %v1564
      %v1781 = vunpack.c.l.b16 %v1565
      %v1782 = vunpack.c.l.b16 %v1566
      %v1783 = vunpack.c.l.b16 %v1567
      %v1784 = vunpack.c.l.b16 %v1568
      %v1785 = vunpack.c.l.b16 %v1569
      %v1786 = vunpack.c.l.b16 %v1570
      %v1787 = vunpack.c.l.b16 %v1571
      %v1788 = vunpack.c.l.b16 %v1572
      %v1789 = vunpack.c.l.b16 %v1573
      %v1790 = vunpack.c.l.b16 %v1574
      %v1791 = vunpack.c.l.b16 %v1575
      %v1792 = vunpack.c.l.b16 %v1576
      %v1793 = vunpack.c.l.b16 %v1577
      %v1794 = vunpack.c.l.b16 %v1578
      %v1795 = vunpack.c.l.b16 %v1579
      %v1796 = vunpack.c.l.b16 %v1580
      %v1797 = vunpack.c.l.b16 %v1581
      %v1798 = vunpack.c.l.b16 %v1582
      %v1799 = vunpack.c.l.b16 %v1583
      %v1800 = vunpack.c.l.b16 %v1584
      %v1801 = vpack.c.b16 %v1766, %v1765
      %v1802 = vpack.c.b16 %v1768, %v1767
      %v1803 = vpack.c.b16 %v1770, %v1769
      %v1804 = vpack.c.b16 %v1772, %v1771
      %v1805 = vpack.c.b16 %v1774, %v1773
      %v1806 = vpack.c.b16 %v1776, %v1775
      %v1807 = vpack.c.b16 %v1778, %v1777
      %v1808 = vpack.c.b16 %v1780, %v1779
      %v1809 = vpack.c.b16 %v1782, %v1781
      %v1810 = vpack.c.b16 %v1784, %v1783
      %v1811 = vpack.c.b16 %v1786, %v1785
      %v1812 = vpack.c.b16 %v1788, %v1787
      %v1813 = vpack.c.b16 %v1790, %v1789
      %v1814 = vpack.c.b16 %v1792, %v1791
      %v1815 = vpack.c.b16 %v1794, %v1793
      %v1816 = vpack.c.b16 %v1796, %v1795
      %v1817 = vpack.c.b16 %v1798, %v1797
      %v1818 = vpack.c.b16 %v1800, %v1799
      %v1873 = vunpack.c.l.b16 %v1585
      %v1874 = vunpack.c.l.b16 %v1586
      %v1875 = vunpack.c.l.b16 %v1587
      %v1876 = vunpack.c.l.b16 %v1588
      %v1877 = vunpack.c.l.b16 %v1589
      %v1878 = vunpack.c.l.b16 %v1590
      %v1879 = vunpack.c.l.b16 %v1591
      %v1880 = vunpack.c.l.b16 %v1592
      %v1881 = vunpack.c.l.b16 %v1593
      %v1882 = vunpack.c.l.b16 %v1594
      %v1883 = vunpack.c.l.b16 %v1595
      %v1884 = vunpack.c.l.b16 %v1596
      %v1885 = vunpack.c.l.b16 %v1597
      %v1886 = vunpack.c.l.b16 %v1598
      %v1887 = vunpack.c.l.b16 %v1599
      %v1888 = vunpack.c.l.b16 %v1600
      %v1889 = vunpack.c.l.b16 %v1601
      %v1890 = vunpack.c.l.b16 %v1602
      %v1891 = vunpack.c.l.b16 %v1603
      %v1892 = vunpack.c.l.b16 %v1604
      %v1893 = vunpack.c.l.b16 %v1605
      %v1894 = vunpack.c.l.b16 %v1606
      %v1895 = vunpack.c.l.b16 %v1607
      %v1896 = vunpack.c.l.b16 %v1608
      %v1897 = vunpack.c.l.b16 %v1609
      %v1898 = vunpack.c.l.b16 %v1610
      %v1899 = vunpack.c.l.b16 %v1611
      %v1900 = vunpack.c.l.b16 %v1612
      %v1901 = vunpack.c.l.b16 %v1613
      %v1902 = vunpack.c.l.b16 %v1614
      %v1903 = vunpack.c.l.b16 %v1615
      %v1904 = vunpack.c.l.b16 %v1616
      %v1905 = vunpack.c.l.b16 %v1617
      %v1906 = vunpack.c.l.b16 %v1618
      %v1907 = vunpack.c.l.b16 %v1619
      %v1908 = vunpack.c.l.b16 %v1620
      %v1909 = vpack.c.b16 %v1874, %v1873
      %v1910 = vpack.c.b16 %v1876, %v1875
      %v1911 = vpack.c.b16 %v1878, %v1877
      %v1912 = vpack.c.b16 %v1880, %v1879
      %v1913 = vpack.c.b16 %v1882, %v1881
      %v1914 = vpack.c.b16 %v1884, %v1883
      %v1915 = vpack.c.b16 %v1886, %v1885
      %v1916 = vpack.c.b16 %v1888, %v1887
      %v1917 = vpack.c.b16 %v1890, %v1889
      %v1918 = vpack.c.b16 %v1892, %v1891
      %v1919 = vpack.c.b16 %v1894, %v1893
      %v1920 = vpack.c.b16 %v1896, %v1895
      %v1921 = vpack.c.b16 %v1898, %v1897
      %v1922 = vpack.c.b16 %v1900, %v1899
      %v1923 = vpack.c.b16 %v1902, %v1901
      %v1924 = vpack.c.b16 %v1904, %v1903
      %v1925 = vpack.c.b16 %v1906, %v1905
      %v1926 = vpack.c.b16 %v1908, %v1907
      %v1945 = vld [vmem:[%s2] sm:$0xf]
      %v1946 = vld [vmem:[%s2 + $0x4] sm:$0xf]
      %v1947 = vld [vmem:[%s2 + $0x8] sm:$0xf]
      %v1948 = vld [vmem:[%s2 + $0xc] sm:$0xf]
      %v1949 = vld [vmem:[%s2 + $0x10] sm:$0xf]
      %v1950 = vld [vmem:[%s2 + $0x14] sm:$0xf]
      %v1951 = vld [vmem:[%s2 + $0x18] sm:$0xf]
      %v1952 = vld [vmem:[%s2 + $0x1c] sm:$0xf]
      %v1953 = vld [vmem:[%s2 + $0x20] sm:$0xf]
      %v1954 = vld [vmem:[%s2 + $0x24] sm:$0xf]
      %v1955 = vld [vmem:[%s2 + $0x28] sm:$0xf]
      %v1956 = vld [vmem:[%s2 + $0x2c] sm:$0xf]
      %v1957 = vld [vmem:[%s2 + $0x30] sm:$0xf]
      %v1958 = vld [vmem:[%s2 + $0x34] sm:$0xf]
      %v1959 = vld [vmem:[%s2 + $0x38] sm:$0xf]
      %v1960 = vld [vmem:[%s2 + $0x3c] sm:$0xf]
      %v1961 = vld [vmem:[%s2 + $0x40] sm:$0xf]
      %v1962 = vld [vmem:[%s2 + $0x44] sm:$0xf]
      %v1963 = vld [vmem:[%s2 + $0x48] sm:$0xf]
      %v1964 = vld [vmem:[%s2 + $0x4c] sm:$0xf]
      %v1965 = vld [vmem:[%s2 + $0x50] sm:$0xf]
      %v1966 = vld [vmem:[%s2 + $0x54] sm:$0xf]
      %v1967 = vld [vmem:[%s2 + $0x58] sm:$0xf]
      %v1968 = vld [vmem:[%s2 + $0x5c] sm:$0xf]
      %v1969 = vld [vmem:[%s2 + $0x60] sm:$0xf]
      %v1970 = vld [vmem:[%s2 + $0x64] sm:$0xf]
      %v1971 = vld [vmem:[%s2 + $0x68] sm:$0xf]
      %v1972 = vld [vmem:[%s2 + $0x6c] sm:$0xf]
      %v1973 = vld [vmem:[%s2 + $0x70] sm:$0xf]
      %v1974 = vld [vmem:[%s2 + $0x74] sm:$0xf]
      %v1975 = vld [vmem:[%s2 + $0x78] sm:$0xf]
      %v1976 = vld [vmem:[%s2 + $0x7c] sm:$0xf]
      %v1977 = vld [vmem:[%s2 + $0x80] sm:$0xf]
      %v1978 = vld [vmem:[%s2 + $0x84] sm:$0xf]
      %v1979 = vld [vmem:[%s2 + $0x88] sm:$0xf]
      %v1980 = vld [vmem:[%s2 + $0x8c] sm:$0xf]
      %v1981 = vld [vmem:[%s2 + $0x90] sm:$0xf]
      %v1982 = vld [vmem:[%s2 + $0x94] sm:$0xf]
      %v1983 = vld [vmem:[%s2 + $0x98] sm:$0xf]
      %v1984 = vld [vmem:[%s2 + $0x9c] sm:$0xf]
      %v1985 = vld [vmem:[%s2 + $0xa0] sm:$0xf]
      %v1986 = vld [vmem:[%s2 + $0xa4] sm:$0xf]
      %v1987 = vld [vmem:[%s2 + $0xa8] sm:$0xf]
      %v1988 = vld [vmem:[%s2 + $0xac] sm:$0xf]
      %v1989 = vld [vmem:[%s2 + $0xb0] sm:$0xf]
      %v1990 = vld [vmem:[%s2 + $0xb4] sm:$0xf]
      %v1991 = vld [vmem:[%s2 + $0xb8] sm:$0xf]
      %v1992 = vld [vmem:[%s2 + $0xbc] sm:$0xf]
      %s1993 = scalar_lea.vmem %s2, 192
      %v1994 = vld [vmem:[%s1993] sm:$0xf]
      %v1995 = vld [vmem:[%s1993 + $0x4] sm:$0xf]
      %v1996 = vld [vmem:[%s1993 + $0x8] sm:$0xf]
      %v1997 = vld [vmem:[%s1993 + $0xc] sm:$0xf]
      %v1998 = vld [vmem:[%s1993 + $0x10] sm:$0xf]
      %v1999 = vld [vmem:[%s1993 + $0x14] sm:$0xf]
      %v2000 = vld [vmem:[%s1993 + $0x18] sm:$0xf]
      %v2001 = vld [vmem:[%s1993 + $0x1c] sm:$0xf]
      %v2002 = vld [vmem:[%s1993 + $0x20] sm:$0xf]
      %v2003 = vld [vmem:[%s1993 + $0x24] sm:$0xf]
      %v2004 = vld [vmem:[%s1993 + $0x28] sm:$0xf]
      %v2005 = vld [vmem:[%s1993 + $0x2c] sm:$0xf]
      %v2006 = vld [vmem:[%s1993 + $0x30] sm:$0xf]
      %v2007 = vld [vmem:[%s1993 + $0x34] sm:$0xf]
      %v2008 = vld [vmem:[%s1993 + $0x38] sm:$0xf]
      %v2009 = vld [vmem:[%s1993 + $0x3c] sm:$0xf]
      %v2010 = vld [vmem:[%s1993 + $0x40] sm:$0xf]
      %v2011 = vld [vmem:[%s1993 + $0x44] sm:$0xf]
      %v2012 = vld [vmem:[%s1993 + $0x48] sm:$0xf]
      %v2013 = vld [vmem:[%s1993 + $0x4c] sm:$0xf]
      %v2014 = vld [vmem:[%s1993 + $0x50] sm:$0xf]
      %v2015 = vld [vmem:[%s1993 + $0x54] sm:$0xf]
      %v2016 = vld [vmem:[%s1993 + $0x58] sm:$0xf]
      %v2017 = vld [vmem:[%s1993 + $0x5c] sm:$0xf]
      %v2018 = vld [vmem:[%s1993 + $0x60] sm:$0xf]
      %v2019 = vld [vmem:[%s1993 + $0x64] sm:$0xf]
      %v2020 = vld [vmem:[%s1993 + $0x68] sm:$0xf]
      %v2021 = vld [vmem:[%s1993 + $0x6c] sm:$0xf]
      %v2022 = vld [vmem:[%s1993 + $0x70] sm:$0xf]
      %v2023 = vld [vmem:[%s1993 + $0x74] sm:$0xf]
      %v2024 = vld [vmem:[%s1993 + $0x78] sm:$0xf]
      %v2025 = vld [vmem:[%s1993 + $0x7c] sm:$0xf]
      %v2026 = vld [vmem:[%s1993 + $0x80] sm:$0xf]
      %v2027 = vld [vmem:[%s1993 + $0x84] sm:$0xf]
      %v2028 = vld [vmem:[%s1993 + $0x88] sm:$0xf]
      %v2029 = vld [vmem:[%s1993 + $0x8c] sm:$0xf]
      %v2030 = vld [vmem:[%s1993 + $0x90] sm:$0xf]
      %v2031 = vld [vmem:[%s1993 + $0x94] sm:$0xf]
      %v2032 = vld [vmem:[%s1993 + $0x98] sm:$0xf]
      %v2033 = vld [vmem:[%s1993 + $0x9c] sm:$0xf]
      %v2034 = vld [vmem:[%s1993 + $0xa0] sm:$0xf]
      %v2035 = vld [vmem:[%s1993 + $0xa4] sm:$0xf]
      %v2036 = vld [vmem:[%s1993 + $0xa8] sm:$0xf]
      %v2037 = vld [vmem:[%s1993 + $0xac] sm:$0xf]
      %v2038 = vld [vmem:[%s1993 + $0xb0] sm:$0xf]
      %v2039 = vld [vmem:[%s1993 + $0xb4] sm:$0xf]
      %v2040 = vld [vmem:[%s1993 + $0xb8] sm:$0xf]
      %v2041 = vld [vmem:[%s1993 + $0xbc] sm:$0xf]
      %v2090 = vunpack.c.l.b16 %v1994
      %v2091 = vunpack.c.l.b16 %v1995
      %v2092 = vunpack.c.l.b16 %v1996
      %v2093 = vunpack.c.l.b16 %v1997
      %v2094 = vunpack.c.l.b16 %v1998
      %v2095 = vunpack.c.l.b16 %v1999
      %v2096 = vunpack.c.l.b16 %v2000
      %v2097 = vunpack.c.l.b16 %v2001
      %v2098 = vunpack.c.l.b16 %v2002
      %v2099 = vunpack.c.l.b16 %v2003
      %v2100 = vunpack.c.l.b16 %v2004
      %v2101 = vunpack.c.l.b16 %v2005
      %v2102 = vunpack.c.l.b16 %v2006
      %v2103 = vunpack.c.l.b16 %v2007
      %v2104 = vunpack.c.l.b16 %v2008
      %v2105 = vunpack.c.l.b16 %v2009
      %v2106 = vunpack.c.l.b16 %v2010
      %v2107 = vunpack.c.l.b16 %v2011
      %v2108 = vunpack.c.l.b16 %v2012
      %v2109 = vunpack.c.l.b16 %v2013
      %v2110 = vunpack.c.l.b16 %v2014
      %v2111 = vunpack.c.l.b16 %v2015
      %v2112 = vunpack.c.l.b16 %v2016
      %v2113 = vunpack.c.l.b16 %v2017
      %v2114 = vunpack.c.l.b16 %v2018
      %v2115 = vunpack.c.l.b16 %v2019
      %v2116 = vunpack.c.l.b16 %v2020
      %v2117 = vunpack.c.l.b16 %v2021
      %v2118 = vunpack.c.l.b16 %v2022
      %v2119 = vunpack.c.l.b16 %v2023
      %v2120 = vunpack.c.l.b16 %v2024
      %v2121 = vunpack.c.l.b16 %v2025
      %v2122 = vunpack.c.l.b16 %v2026
      %v2123 = vunpack.c.l.b16 %v2027
      %v2124 = vunpack.c.l.b16 %v2028
      %v2125 = vunpack.c.l.b16 %v2029
      %v2126 = vunpack.c.l.b16 %v2030
      %v2127 = vunpack.c.l.b16 %v2031
      %v2128 = vunpack.c.l.b16 %v2032
      %v2129 = vunpack.c.l.b16 %v2033
      %v2130 = vunpack.c.l.b16 %v2034
      %v2131 = vunpack.c.l.b16 %v2035
      %v2132 = vunpack.c.l.b16 %v2036
      %v2133 = vunpack.c.l.b16 %v2037
      %v2134 = vunpack.c.l.b16 %v2038
      %v2135 = vunpack.c.l.b16 %v2039
      %v2136 = vunpack.c.l.b16 %v2040
      %v2137 = vunpack.c.l.b16 %v2041
      %v2138 = vpack.c.b16 %v2091, %v2090
      %v2139 = vpack.c.b16 %v2093, %v2092
      %v2140 = vpack.c.b16 %v2095, %v2094
      %v2141 = vpack.c.b16 %v2097, %v2096
      %v2142 = vpack.c.b16 %v2099, %v2098
      %v2143 = vpack.c.b16 %v2101, %v2100
      %v2144 = vpack.c.b16 %v2103, %v2102
      %v2145 = vpack.c.b16 %v2105, %v2104
      %v2146 = vpack.c.b16 %v2107, %v2106
      %v2147 = vpack.c.b16 %v2109, %v2108
      %v2148 = vpack.c.b16 %v2111, %v2110
      %v2149 = vpack.c.b16 %v2113, %v2112
      %v2150 = vpack.c.b16 %v2115, %v2114
      %v2151 = vpack.c.b16 %v2117, %v2116
      %v2152 = vpack.c.b16 %v2119, %v2118
      %v2153 = vpack.c.b16 %v2121, %v2120
      %v2154 = vpack.c.b16 %v2123, %v2122
      %v2155 = vpack.c.b16 %v2125, %v2124
      %v2156 = vpack.c.b16 %v2127, %v2126
      %v2157 = vpack.c.b16 %v2129, %v2128
      %v2158 = vpack.c.b16 %v2131, %v2130
      %v2159 = vpack.c.b16 %v2133, %v2132
      %v2160 = vpack.c.b16 %v2135, %v2134
      %v2161 = vpack.c.b16 %v2137, %v2136
      %2186 = vmatpush.bf16.msra.mxu0 %v2145
      %2187 = vmatpush.bf16.msra.mxu0 %v2144
      %2188 = vmatpush.bf16.msra.mxu0 %v2143
      %2189 = vmatpush.bf16.msra.mxu0 %v2142
      %2190 = vmatpush.bf16.msra.mxu0 %v2141
      %2191 = vmatpush.bf16.msra.mxu0 %v2140
      %2192 = vmatpush.bf16.msra.mxu0 %v2139
      %2193 = vmatpush.bf16.msra.mxu0 %v2138
      %2194 = vmatmul.bf16.gmra.mxu0 %v1694
      %v2195 = vpop.f32.mrf.mxu0
      %v2196 = vadd.f32 0.0, %v2195
      %v2197 = vpop.f32.mrf.mxu0
      %v2198 = vadd.f32 0.0, %v2197
      %2199 = vmatmul.bf16.gmra.mxu0 %v1695
      %v2200 = vpop.f32.mrf.mxu0
      %v2201 = vadd.f32 0.0, %v2200
      %v2202 = vpop.f32.mrf.mxu0
      %v2203 = vadd.f32 0.0, %v2202
      %2204 = vmatmul.bf16.gmra.mxu0 %v1696
      %v2205 = vpop.f32.mrf.mxu0
      %v2206 = vadd.f32 0.0, %v2205
      %v2207 = vpop.f32.mrf.mxu0
      %v2208 = vadd.f32 0.0, %v2207
      %2209 = vmatmul.bf16.gmra.mxu0 %v1697
      %v2210 = vpop.f32.mrf.mxu0
      %v2211 = vadd.f32 0.0, %v2210
      %v2212 = vpop.f32.mrf.mxu0
      %v2213 = vadd.f32 0.0, %v2212
      %2214 = vmatmul.bf16.gmra.mxu0 %v1698
      %v2215 = vpop.f32.mrf.mxu0
      %v2216 = vadd.f32 0.0, %v2215
      %v2217 = vpop.f32.mrf.mxu0
      %v2218 = vadd.f32 0.0, %v2217
      %2219 = vmatmul.bf16.gmra.mxu0 %v1699
      %v2220 = vpop.f32.mrf.mxu0
      %v2221 = vadd.f32 0.0, %v2220
      %v2222 = vpop.f32.mrf.mxu0
      %v2223 = vadd.f32 0.0, %v2222
      %2224 = vmatmul.bf16.gmra.mxu0 %v1700
      %v2225 = vpop.f32.mrf.mxu0
      %v2226 = vadd.f32 0.0, %v2225
      %v2227 = vpop.f32.mrf.mxu0
      %v2228 = vadd.f32 0.0, %v2227
      %2229 = vmatmul.bf16.gmra.mxu0 %v1701
      %v2230 = vpop.f32.mrf.mxu0
      %v2231 = vadd.f32 0.0, %v2230
      %v2232 = vpop.f32.mrf.mxu0
      %v2233 = vadd.f32 0.0, %v2232
      %2234 = vmatmul.bf16.gmra.mxu0 %v1702
      %v2235 = vpop.f32.mrf.mxu0
      %v2236 = vadd.f32 0.0, %v2235
      %v2237 = vpop.f32.mrf.mxu0
      %v2238 = vadd.f32 0.0, %v2237
      %2239 = vmatmul.bf16.gmra.mxu0 %v1703
      %v2240 = vpop.f32.mrf.mxu0
      %v2241 = vadd.f32 0.0, %v2240
      %v2242 = vpop.f32.mrf.mxu0
      %v2243 = vadd.f32 0.0, %v2242
      %2244 = vmatmul.bf16.gmra.mxu0 %v1704
      %v2245 = vpop.f32.mrf.mxu0
      %v2246 = vadd.f32 0.0, %v2245
      %v2247 = vpop.f32.mrf.mxu0
      %v2248 = vadd.f32 0.0, %v2247
      %2249 = vmatmul.bf16.gmra.mxu0 %v1705
      %v2250 = vpop.f32.mrf.mxu0
      %v2251 = vadd.f32 0.0, %v2250
      %v2252 = vpop.f32.mrf.mxu0
      %v2253 = vadd.f32 0.0, %v2252
      %2254 = vmatmul.bf16.gmra.mxu0 %v1706
      %v2255 = vpop.f32.mrf.mxu0
      %v2256 = vadd.f32 0.0, %v2255
      %v2257 = vpop.f32.mrf.mxu0
      %v2258 = vadd.f32 0.0, %v2257
      %2259 = vmatmul.bf16.gmra.mxu0 %v1707
      %v2260 = vpop.f32.mrf.mxu0
      %v2261 = vadd.f32 0.0, %v2260
      %v2262 = vpop.f32.mrf.mxu0
      %v2263 = vadd.f32 0.0, %v2262
      %2264 = vmatmul.bf16.gmra.mxu0 %v1708
      %v2265 = vpop.f32.mrf.mxu0
      %v2266 = vadd.f32 0.0, %v2265
      %v2267 = vpop.f32.mrf.mxu0
      %v2268 = vadd.f32 0.0, %v2267
      %2269 = vmatmul.bf16.gmra.mxu0 %v1709
      %v2270 = vpop.f32.mrf.mxu0
      %v2271 = vadd.f32 0.0, %v2270
      %v2272 = vpop.f32.mrf.mxu0
      %v2273 = vadd.f32 0.0, %v2272
      %2274 = vdwg.mxu0
      %2275 = vmatpush.bf16.msra.mxu0 %v2153
      %2276 = vmatpush.bf16.msra.mxu0 %v2152
      %2277 = vmatpush.bf16.msra.mxu0 %v2151
      %2278 = vmatpush.bf16.msra.mxu0 %v2150
      %2279 = vmatpush.bf16.msra.mxu0 %v2149
      %2280 = vmatpush.bf16.msra.mxu0 %v2148
      %2281 = vmatpush.bf16.msra.mxu0 %v2147
      %2282 = vmatpush.bf16.msra.mxu0 %v2146
      %2283 = vmatmul.bf16.gmra.mxu0 %v1802
      %v2284 = vpop.f32.mrf.mxu0
      %v2285 = vadd.f32 %v2196, %v2284
      %v2286 = vpop.f32.mrf.mxu0
      %v2287 = vadd.f32 %v2198, %v2286
      %2288 = vmatmul.bf16.gmra.mxu0 %v1803
      %v2289 = vpop.f32.mrf.mxu0
      %v2290 = vadd.f32 %v2201, %v2289
      %v2291 = vpop.f32.mrf.mxu0
      %v2292 = vadd.f32 %v2203, %v2291
      %2293 = vmatmul.bf16.gmra.mxu0 %v1804
      %v2294 = vpop.f32.mrf.mxu0
      %v2295 = vadd.f32 %v2206, %v2294
      %v2296 = vpop.f32.mrf.mxu0
      %v2297 = vadd.f32 %v2208, %v2296
      %2298 = vmatmul.bf16.gmra.mxu0 %v1805
      %v2299 = vpop.f32.mrf.mxu0
      %v2300 = vadd.f32 %v2211, %v2299
      %v2301 = vpop.f32.mrf.mxu0
      %v2302 = vadd.f32 %v2213, %v2301
      %2303 = vmatmul.bf16.gmra.mxu0 %v1806
      %v2304 = vpop.f32.mrf.mxu0
      %v2305 = vadd.f32 %v2216, %v2304
      %v2306 = vpop.f32.mrf.mxu0
      %v2307 = vadd.f32 %v2218, %v2306
      %2308 = vmatmul.bf16.gmra.mxu0 %v1807
      %v2309 = vpop.f32.mrf.mxu0
      %v2310 = vadd.f32 %v2221, %v2309
      %v2311 = vpop.f32.mrf.mxu0
      %v2312 = vadd.f32 %v2223, %v2311
      %2313 = vmatmul.bf16.gmra.mxu0 %v1808
      %v2314 = vpop.f32.mrf.mxu0
      %v2315 = vadd.f32 %v2226, %v2314
      %v2316 = vpop.f32.mrf.mxu0
      %v2317 = vadd.f32 %v2228, %v2316
      %2318 = vmatmul.bf16.gmra.mxu0 %v1809
      %v2319 = vpop.f32.mrf.mxu0
      %v2320 = vadd.f32 %v2231, %v2319
      %v2321 = vpop.f32.mrf.mxu0
      %v2322 = vadd.f32 %v2233, %v2321
      %2323 = vmatmul.bf16.gmra.mxu0 %v1810
      %v2324 = vpop.f32.mrf.mxu0
      %v2325 = vadd.f32 %v2236, %v2324
      %v2326 = vpop.f32.mrf.mxu0
      %v2327 = vadd.f32 %v2238, %v2326
      %2328 = vmatmul.bf16.gmra.mxu0 %v1811
      %v2329 = vpop.f32.mrf.mxu0
      %v2330 = vadd.f32 %v2241, %v2329
      %v2331 = vpop.f32.mrf.mxu0
      %v2332 = vadd.f32 %v2243, %v2331
      %2333 = vmatmul.bf16.gmra.mxu0 %v1812
      %v2334 = vpop.f32.mrf.mxu0
      %v2335 = vadd.f32 %v2246, %v2334
      %v2336 = vpop.f32.mrf.mxu0
      %v2337 = vadd.f32 %v2248, %v2336
      %2338 = vmatmul.bf16.gmra.mxu0 %v1813
      %v2339 = vpop.f32.mrf.mxu0
      %v2340 = vadd.f32 %v2251, %v2339
      %v2341 = vpop.f32.mrf.mxu0
      %v2342 = vadd.f32 %v2253, %v2341
      %2343 = vmatmul.bf16.gmra.mxu0 %v1814
      %v2344 = vpop.f32.mrf.mxu0
      %v2345 = vadd.f32 %v2256, %v2344
      %v2346 = vpop.f32.mrf.mxu0
      %v2347 = vadd.f32 %v2258, %v2346
      %2348 = vmatmul.bf16.gmra.mxu0 %v1815
      %v2349 = vpop.f32.mrf.mxu0
      %v2350 = vadd.f32 %v2261, %v2349
      %v2351 = vpop.f32.mrf.mxu0
      %v2352 = vadd.f32 %v2263, %v2351
      %2353 = vmatmul.bf16.gmra.mxu0 %v1816
      %v2354 = vpop.f32.mrf.mxu0
      %v2355 = vadd.f32 %v2266, %v2354
      %v2356 = vpop.f32.mrf.mxu0
      %v2357 = vadd.f32 %v2268, %v2356
      %2358 = vmatmul.bf16.gmra.mxu0 %v1817
      %v2359 = vpop.f32.mrf.mxu0
      %v2360 = vadd.f32 %v2271, %v2359
      %v2361 = vpop.f32.mrf.mxu0
      %v2362 = vadd.f32 %v2273, %v2361
      %2363 = vdwg.mxu0
      %2364 = vmatpush.bf16.msra.mxu0 %v2161
      %2365 = vmatpush.bf16.msra.mxu0 %v2160
      %2366 = vmatpush.bf16.msra.mxu0 %v2159
      %2367 = vmatpush.bf16.msra.mxu0 %v2158
      %2368 = vmatpush.bf16.msra.mxu0 %v2157
      %2369 = vmatpush.bf16.msra.mxu0 %v2156
      %2370 = vmatpush.bf16.msra.mxu0 %v2155
      %2371 = vmatpush.bf16.msra.mxu0 %v2154
      %2372 = vmatmul.bf16.gmra.mxu0 %v1910
      %v2373 = vpop.f32.mrf.mxu0
      %v2374 = vadd.f32 %v2285, %v2373
      %v2375 = vpop.f32.mrf.mxu0
      %v2376 = vadd.f32 %v2287, %v2375
      %2377 = vmatmul.bf16.gmra.mxu0 %v1911
      %v2378 = vpop.f32.mrf.mxu0
      %v2379 = vadd.f32 %v2290, %v2378
      %v2380 = vpop.f32.mrf.mxu0
      %v2381 = vadd.f32 %v2292, %v2380
      %2382 = vmatmul.bf16.gmra.mxu0 %v1912
      %v2383 = vpop.f32.mrf.mxu0
      %v2384 = vadd.f32 %v2295, %v2383
      %v2385 = vpop.f32.mrf.mxu0
      %v2386 = vadd.f32 %v2297, %v2385
      %2387 = vmatmul.bf16.gmra.mxu0 %v1913
      %v2388 = vpop.f32.mrf.mxu0
      %v2389 = vadd.f32 %v2300, %v2388
      %v2390 = vpop.f32.mrf.mxu0
      %v2391 = vadd.f32 %v2302, %v2390
      %2392 = vmatmul.bf16.gmra.mxu0 %v1914
      %v2393 = vpop.f32.mrf.mxu0
      %v2394 = vadd.f32 %v2305, %v2393
      %v2395 = vpop.f32.mrf.mxu0
      %v2396 = vadd.f32 %v2307, %v2395
      %2397 = vmatmul.bf16.gmra.mxu0 %v1915
      %v2398 = vpop.f32.mrf.mxu0
      %v2399 = vadd.f32 %v2310, %v2398
      %v2400 = vpop.f32.mrf.mxu0
      %v2401 = vadd.f32 %v2312, %v2400
      %2402 = vmatmul.bf16.gmra.mxu0 %v1916
      %v2403 = vpop.f32.mrf.mxu0
      %v2404 = vadd.f32 %v2315, %v2403
      %v2405 = vpop.f32.mrf.mxu0
      %v2406 = vadd.f32 %v2317, %v2405
      %2407 = vmatmul.bf16.gmra.mxu0 %v1917
      %v2408 = vpop.f32.mrf.mxu0
      %v2409 = vadd.f32 %v2320, %v2408
      %v2410 = vpop.f32.mrf.mxu0
      %v2411 = vadd.f32 %v2322, %v2410
      %2412 = vmatmul.bf16.gmra.mxu0 %v1918
      %v2413 = vpop.f32.mrf.mxu0
      %v2414 = vadd.f32 %v2325, %v2413
      %v2415 = vpop.f32.mrf.mxu0
      %v2416 = vadd.f32 %v2327, %v2415
      %2417 = vmatmul.bf16.gmra.mxu0 %v1919
      %v2418 = vpop.f32.mrf.mxu0
      %v2419 = vadd.f32 %v2330, %v2418
      %v2420 = vpop.f32.mrf.mxu0
      %v2421 = vadd.f32 %v2332, %v2420
      %2422 = vmatmul.bf16.gmra.mxu0 %v1920
      %v2423 = vpop.f32.mrf.mxu0
      %v2424 = vadd.f32 %v2335, %v2423
      %v2425 = vpop.f32.mrf.mxu0
      %v2426 = vadd.f32 %v2337, %v2425
      %2427 = vmatmul.bf16.gmra.mxu0 %v1921
      %v2428 = vpop.f32.mrf.mxu0
      %v2429 = vadd.f32 %v2340, %v2428
      %v2430 = vpop.f32.mrf.mxu0
      %v2431 = vadd.f32 %v2342, %v2430
      %2432 = vmatmul.bf16.gmra.mxu0 %v1922
      %v2433 = vpop.f32.mrf.mxu0
      %v2434 = vadd.f32 %v2345, %v2433
      %v2435 = vpop.f32.mrf.mxu0
      %v2436 = vadd.f32 %v2347, %v2435
      %2437 = vmatmul.bf16.gmra.mxu0 %v1923
      %v2438 = vpop.f32.mrf.mxu0
      %v2439 = vadd.f32 %v2350, %v2438
      %v2440 = vpop.f32.mrf.mxu0
      %v2441 = vadd.f32 %v2352, %v2440
      %2442 = vmatmul.bf16.gmra.mxu0 %v1924
      %v2443 = vpop.f32.mrf.mxu0
      %v2444 = vadd.f32 %v2355, %v2443
      %v2445 = vpop.f32.mrf.mxu0
      %v2446 = vadd.f32 %v2357, %v2445
      %2447 = vmatmul.bf16.gmra.mxu0 %v1925
      %v2448 = vpop.f32.mrf.mxu0
      %v2449 = vadd.f32 %v2360, %v2448
      %v2450 = vpop.f32.mrf.mxu0
      %v2451 = vadd.f32 %v2362, %v2450
      %2452 = vdwg.mxu0
      %v2501 = vunpack.c.l.b16 %v1945
      %v2502 = vunpack.c.l.b16 %v1946
      %v2503 = vunpack.c.l.b16 %v1947
      %v2504 = vunpack.c.l.b16 %v1948
      %v2505 = vunpack.c.l.b16 %v1949
      %v2506 = vunpack.c.l.b16 %v1950
      %v2507 = vunpack.c.l.b16 %v1951
      %v2508 = vunpack.c.l.b16 %v1952
      %v2509 = vunpack.c.l.b16 %v1953
      %v2510 = vunpack.c.l.b16 %v1954
      %v2511 = vunpack.c.l.b16 %v1955
      %v2512 = vunpack.c.l.b16 %v1956
      %v2513 = vunpack.c.l.b16 %v1957
      %v2514 = vunpack.c.l.b16 %v1958
      %v2515 = vunpack.c.l.b16 %v1959
      %v2516 = vunpack.c.l.b16 %v1960
      %v2517 = vunpack.c.l.b16 %v1961
      %v2518 = vunpack.c.l.b16 %v1962
      %v2519 = vunpack.c.l.b16 %v1963
      %v2520 = vunpack.c.l.b16 %v1964
      %v2521 = vunpack.c.l.b16 %v1965
      %v2522 = vunpack.c.l.b16 %v1966
      %v2523 = vunpack.c.l.b16 %v1967
      %v2524 = vunpack.c.l.b16 %v1968
      %v2525 = vunpack.c.l.b16 %v1969
      %v2526 = vunpack.c.l.b16 %v1970
      %v2527 = vunpack.c.l.b16 %v1971
      %v2528 = vunpack.c.l.b16 %v1972
      %v2529 = vunpack.c.l.b16 %v1973
      %v2530 = vunpack.c.l.b16 %v1974
      %v2531 = vunpack.c.l.b16 %v1975
      %v2532 = vunpack.c.l.b16 %v1976
      %v2533 = vunpack.c.l.b16 %v1977
      %v2534 = vunpack.c.l.b16 %v1978
      %v2535 = vunpack.c.l.b16 %v1979
      %v2536 = vunpack.c.l.b16 %v1980
      %v2537 = vunpack.c.l.b16 %v1981
      %v2538 = vunpack.c.l.b16 %v1982
      %v2539 = vunpack.c.l.b16 %v1983
      %v2540 = vunpack.c.l.b16 %v1984
      %v2541 = vunpack.c.l.b16 %v1985
      %v2542 = vunpack.c.l.b16 %v1986
      %v2543 = vunpack.c.l.b16 %v1987
      %v2544 = vunpack.c.l.b16 %v1988
      %v2545 = vunpack.c.l.b16 %v1989
      %v2546 = vunpack.c.l.b16 %v1990
      %v2547 = vunpack.c.l.b16 %v1991
      %v2548 = vunpack.c.l.b16 %v1992
      %v2549 = vpack.c.b16 %v2502, %v2501
      %v2550 = vpack.c.b16 %v2504, %v2503
      %v2551 = vpack.c.b16 %v2506, %v2505
      %v2552 = vpack.c.b16 %v2508, %v2507
      %v2553 = vpack.c.b16 %v2510, %v2509
      %v2554 = vpack.c.b16 %v2512, %v2511
      %v2555 = vpack.c.b16 %v2514, %v2513
      %v2556 = vpack.c.b16 %v2516, %v2515
      %v2557 = vpack.c.b16 %v2518, %v2517
      %v2558 = vpack.c.b16 %v2520, %v2519
      %v2559 = vpack.c.b16 %v2522, %v2521
      %v2560 = vpack.c.b16 %v2524, %v2523
      %v2561 = vpack.c.b16 %v2526, %v2525
      %v2562 = vpack.c.b16 %v2528, %v2527
      %v2563 = vpack.c.b16 %v2530, %v2529
      %v2564 = vpack.c.b16 %v2532, %v2531
      %v2565 = vpack.c.b16 %v2534, %v2533
      %v2566 = vpack.c.b16 %v2536, %v2535
      %v2567 = vpack.c.b16 %v2538, %v2537
      %v2568 = vpack.c.b16 %v2540, %v2539
      %v2569 = vpack.c.b16 %v2542, %v2541
      %v2570 = vpack.c.b16 %v2544, %v2543
      %v2571 = vpack.c.b16 %v2546, %v2545
      %v2572 = vpack.c.b16 %v2548, %v2547
      %2597 = vmatpush.bf16.msra.mxu0 %v2556
      %2598 = vmatpush.bf16.msra.mxu0 %v2555
      %2599 = vmatpush.bf16.msra.mxu0 %v2554
      %2600 = vmatpush.bf16.msra.mxu0 %v2553
      %2601 = vmatpush.bf16.msra.mxu0 %v2552
      %2602 = vmatpush.bf16.msra.mxu0 %v2551
      %2603 = vmatpush.bf16.msra.mxu0 %v2550
      %2604 = vmatpush.bf16.msra.mxu0 %v2549
      %2605 = vmatmul.bf16.gmra.mxu0 %v1693
      %v2606 = vpop.f32.mrf.mxu0
      %v2607 = vadd.f32 %v2374, %v2606
      %v2608 = vpop.f32.mrf.mxu0
      %v2609 = vadd.f32 %v2376, %v2608
      %2610 = vmatmul.bf16.gmra.mxu0 %v1694
      %v2611 = vpop.f32.mrf.mxu0
      %v2612 = vadd.f32 %v2379, %v2611
      %v2613 = vpop.f32.mrf.mxu0
      %v2614 = vadd.f32 %v2381, %v2613
      %2615 = vmatmul.bf16.gmra.mxu0 %v1695
      %v2616 = vpop.f32.mrf.mxu0
      %v2617 = vadd.f32 %v2384, %v2616
      %v2618 = vpop.f32.mrf.mxu0
      %v2619 = vadd.f32 %v2386, %v2618
      %2620 = vmatmul.bf16.gmra.mxu0 %v1696
      %v2621 = vpop.f32.mrf.mxu0
      %v2622 = vadd.f32 %v2389, %v2621
      %v2623 = vpop.f32.mrf.mxu0
      %v2624 = vadd.f32 %v2391, %v2623
      %2625 = vmatmul.bf16.gmra.mxu0 %v1697
      %v2626 = vpop.f32.mrf.mxu0
      %v2627 = vadd.f32 %v2394, %v2626
      %v2628 = vpop.f32.mrf.mxu0
      %v2629 = vadd.f32 %v2396, %v2628
      %2630 = vmatmul.bf16.gmra.mxu0 %v1698
      %v2631 = vpop.f32.mrf.mxu0
      %v2632 = vadd.f32 %v2399, %v2631
      %v2633 = vpop.f32.mrf.mxu0
      %v2634 = vadd.f32 %v2401, %v2633
      %2635 = vmatmul.bf16.gmra.mxu0 %v1699
      %v2636 = vpop.f32.mrf.mxu0
      %v2637 = vadd.f32 %v2404, %v2636
      %v2638 = vpop.f32.mrf.mxu0
      %v2639 = vadd.f32 %v2406, %v2638
      %2640 = vmatmul.bf16.gmra.mxu0 %v1700
      %v2641 = vpop.f32.mrf.mxu0
      %v2642 = vadd.f32 %v2409, %v2641
      %v2643 = vpop.f32.mrf.mxu0
      %v2644 = vadd.f32 %v2411, %v2643
      %2645 = vmatmul.bf16.gmra.mxu0 %v1701
      %v2646 = vpop.f32.mrf.mxu0
      %v2647 = vadd.f32 %v2414, %v2646
      %v2648 = vpop.f32.mrf.mxu0
      %v2649 = vadd.f32 %v2416, %v2648
      %2650 = vmatmul.bf16.gmra.mxu0 %v1702
      %v2651 = vpop.f32.mrf.mxu0
      %v2652 = vadd.f32 %v2419, %v2651
      %v2653 = vpop.f32.mrf.mxu0
      %v2654 = vadd.f32 %v2421, %v2653
      %2655 = vmatmul.bf16.gmra.mxu0 %v1703
      %v2656 = vpop.f32.mrf.mxu0
      %v2657 = vadd.f32 %v2424, %v2656
      %v2658 = vpop.f32.mrf.mxu0
      %v2659 = vadd.f32 %v2426, %v2658
      %2660 = vmatmul.bf16.gmra.mxu0 %v1704
      %v2661 = vpop.f32.mrf.mxu0
      %v2662 = vadd.f32 %v2429, %v2661
      %v2663 = vpop.f32.mrf.mxu0
      %v2664 = vadd.f32 %v2431, %v2663
      %2665 = vmatmul.bf16.gmra.mxu0 %v1705
      %v2666 = vpop.f32.mrf.mxu0
      %v2667 = vadd.f32 %v2434, %v2666
      %v2668 = vpop.f32.mrf.mxu0
      %v2669 = vadd.f32 %v2436, %v2668
      %2670 = vmatmul.bf16.gmra.mxu0 %v1706
      %v2671 = vpop.f32.mrf.mxu0
      %v2672 = vadd.f32 %v2439, %v2671
      %v2673 = vpop.f32.mrf.mxu0
      %v2674 = vadd.f32 %v2441, %v2673
      %2675 = vmatmul.bf16.gmra.mxu0 %v1707
      %v2676 = vpop.f32.mrf.mxu0
      %v2677 = vadd.f32 %v2444, %v2676
      %v2678 = vpop.f32.mrf.mxu0
      %v2679 = vadd.f32 %v2446, %v2678
      %2680 = vmatmul.bf16.gmra.mxu0 %v1708
      %v2681 = vpop.f32.mrf.mxu0
      %v2682 = vadd.f32 %v2449, %v2681
      %v2683 = vpop.f32.mrf.mxu0
      %v2684 = vadd.f32 %v2451, %v2683
      %2685 = vdwg.mxu0
      %2686 = vmatpush.bf16.msra.mxu0 %v2564
      %2687 = vmatpush.bf16.msra.mxu0 %v2563
      %2688 = vmatpush.bf16.msra.mxu0 %v2562
      %2689 = vmatpush.bf16.msra.mxu0 %v2561
      %2690 = vmatpush.bf16.msra.mxu0 %v2560
      %2691 = vmatpush.bf16.msra.mxu0 %v2559
      %2692 = vmatpush.bf16.msra.mxu0 %v2558
      %2693 = vmatpush.bf16.msra.mxu0 %v2557
      %2694 = vmatmul.bf16.gmra.mxu0 %v1801
      %v2695 = vpop.f32.mrf.mxu0
      %v2696 = vadd.f32 %v2607, %v2695
      %v2697 = vpop.f32.mrf.mxu0
      %v2698 = vadd.f32 %v2609, %v2697
      %2699 = vmatmul.bf16.gmra.mxu0 %v1802
      %v2700 = vpop.f32.mrf.mxu0
      %v2701 = vadd.f32 %v2612, %v2700
      %v2702 = vpop.f32.mrf.mxu0
      %v2703 = vadd.f32 %v2614, %v2702
      %2704 = vmatmul.bf16.gmra.mxu0 %v1803
      %v2705 = vpop.f32.mrf.mxu0
      %v2706 = vadd.f32 %v2617, %v2705
      %v2707 = vpop.f32.mrf.mxu0
      %v2708 = vadd.f32 %v2619, %v2707
      %2709 = vmatmul.bf16.gmra.mxu0 %v1804
      %v2710 = vpop.f32.mrf.mxu0
      %v2711 = vadd.f32 %v2622, %v2710
      %v2712 = vpop.f32.mrf.mxu0
      %v2713 = vadd.f32 %v2624, %v2712
      %2714 = vmatmul.bf16.gmra.mxu0 %v1805
      %v2715 = vpop.f32.mrf.mxu0
      %v2716 = vadd.f32 %v2627, %v2715
      %v2717 = vpop.f32.mrf.mxu0
      %v2718 = vadd.f32 %v2629, %v2717
      %2719 = vmatmul.bf16.gmra.mxu0 %v1806
      %v2720 = vpop.f32.mrf.mxu0
      %v2721 = vadd.f32 %v2632, %v2720
      %v2722 = vpop.f32.mrf.mxu0
      %v2723 = vadd.f32 %v2634, %v2722
      %2724 = vmatmul.bf16.gmra.mxu0 %v1807
      %v2725 = vpop.f32.mrf.mxu0
      %v2726 = vadd.f32 %v2637, %v2725
      %v2727 = vpop.f32.mrf.mxu0
      %v2728 = vadd.f32 %v2639, %v2727
      %2729 = vmatmul.bf16.gmra.mxu0 %v1808
      %v2730 = vpop.f32.mrf.mxu0
      %v2731 = vadd.f32 %v2642, %v2730
      %v2732 = vpop.f32.mrf.mxu0
      %v2733 = vadd.f32 %v2644, %v2732
      %2734 = vmatmul.bf16.gmra.mxu0 %v1809
      %v2735 = vpop.f32.mrf.mxu0
      %v2736 = vadd.f32 %v2647, %v2735
      %v2737 = vpop.f32.mrf.mxu0
      %v2738 = vadd.f32 %v2649, %v2737
      %2739 = vmatmul.bf16.gmra.mxu0 %v1810
      %v2740 = vpop.f32.mrf.mxu0
      %v2741 = vadd.f32 %v2652, %v2740
      %v2742 = vpop.f32.mrf.mxu0
      %v2743 = vadd.f32 %v2654, %v2742
      %2744 = vmatmul.bf16.gmra.mxu0 %v1811
      %v2745 = vpop.f32.mrf.mxu0
      %v2746 = vadd.f32 %v2657, %v2745
      %v2747 = vpop.f32.mrf.mxu0
      %v2748 = vadd.f32 %v2659, %v2747
      %2749 = vmatmul.bf16.gmra.mxu0 %v1812
      %v2750 = vpop.f32.mrf.mxu0
      %v2751 = vadd.f32 %v2662, %v2750
      %v2752 = vpop.f32.mrf.mxu0
      %v2753 = vadd.f32 %v2664, %v2752
      %2754 = vmatmul.bf16.gmra.mxu0 %v1813
      %v2755 = vpop.f32.mrf.mxu0
      %v2756 = vadd.f32 %v2667, %v2755
      %v2757 = vpop.f32.mrf.mxu0
      %v2758 = vadd.f32 %v2669, %v2757
      %2759 = vmatmul.bf16.gmra.mxu0 %v1814
      %v2760 = vpop.f32.mrf.mxu0
      %v2761 = vadd.f32 %v2672, %v2760
      %v2762 = vpop.f32.mrf.mxu0
      %v2763 = vadd.f32 %v2674, %v2762
      %2764 = vmatmul.bf16.gmra.mxu0 %v1815
      %v2765 = vpop.f32.mrf.mxu0
      %v2766 = vadd.f32 %v2677, %v2765
      %v2767 = vpop.f32.mrf.mxu0
      %v2768 = vadd.f32 %v2679, %v2767
      %2769 = vmatmul.bf16.gmra.mxu0 %v1816
      %v2770 = vpop.f32.mrf.mxu0
      %v2771 = vadd.f32 %v2682, %v2770
      %v2772 = vpop.f32.mrf.mxu0
      %v2773 = vadd.f32 %v2684, %v2772
      %2774 = vdwg.mxu0
      %2775 = vmatpush.bf16.msra.mxu0 %v2572
      %2776 = vmatpush.bf16.msra.mxu0 %v2571
      %2777 = vmatpush.bf16.msra.mxu0 %v2570
      %2778 = vmatpush.bf16.msra.mxu0 %v2569
      %2779 = vmatpush.bf16.msra.mxu0 %v2568
      %2780 = vmatpush.bf16.msra.mxu0 %v2567
      %2781 = vmatpush.bf16.msra.mxu0 %v2566
      %2782 = vmatpush.bf16.msra.mxu0 %v2565
      %2783 = vmatmul.bf16.gmra.mxu0 %v1909
      %v2784 = vpop.f32.mrf.mxu0
      %v2785 = vadd.f32 %v2696, %v2784
      %v2786 = vpop.f32.mrf.mxu0
      %v2787 = vadd.f32 %v2698, %v2786
      %2788 = vmatmul.bf16.gmra.mxu0 %v1910
      %v2789 = vpop.f32.mrf.mxu0
      %v2790 = vadd.f32 %v2701, %v2789
      %v2791 = vpop.f32.mrf.mxu0
      %v2792 = vadd.f32 %v2703, %v2791
      %2793 = vmatmul.bf16.gmra.mxu0 %v1911
      %v2794 = vpop.f32.mrf.mxu0
      %v2795 = vadd.f32 %v2706, %v2794
      %v2796 = vpop.f32.mrf.mxu0
      %v2797 = vadd.f32 %v2708, %v2796
      %2798 = vmatmul.bf16.gmra.mxu0 %v1912
      %v2799 = vpop.f32.mrf.mxu0
      %v2800 = vadd.f32 %v2711, %v2799
      %v2801 = vpop.f32.mrf.mxu0
      %v2802 = vadd.f32 %v2713, %v2801
      %2803 = vmatmul.bf16.gmra.mxu0 %v1913
      %v2804 = vpop.f32.mrf.mxu0
      %v2805 = vadd.f32 %v2716, %v2804
      %v2806 = vpop.f32.mrf.mxu0
      %v2807 = vadd.f32 %v2718, %v2806
      %2808 = vmatmul.bf16.gmra.mxu0 %v1914
      %v2809 = vpop.f32.mrf.mxu0
      %v2810 = vadd.f32 %v2721, %v2809
      %v2811 = vpop.f32.mrf.mxu0
      %v2812 = vadd.f32 %v2723, %v2811
      %2813 = vmatmul.bf16.gmra.mxu0 %v1915
      %v2814 = vpop.f32.mrf.mxu0
      %v2815 = vadd.f32 %v2726, %v2814
      %v2816 = vpop.f32.mrf.mxu0
      %v2817 = vadd.f32 %v2728, %v2816
      %2818 = vmatmul.bf16.gmra.mxu0 %v1916
      %v2819 = vpop.f32.mrf.mxu0
      %v2820 = vadd.f32 %v2731, %v2819
      %v2821 = vpop.f32.mrf.mxu0
      %v2822 = vadd.f32 %v2733, %v2821
      %2823 = vmatmul.bf16.gmra.mxu0 %v1917
      %v2824 = vpop.f32.mrf.mxu0
      %v2825 = vadd.f32 %v2736, %v2824
      %v2826 = vpop.f32.mrf.mxu0
      %v2827 = vadd.f32 %v2738, %v2826
      %2828 = vmatmul.bf16.gmra.mxu0 %v1918
      %v2829 = vpop.f32.mrf.mxu0
      %v2830 = vadd.f32 %v2741, %v2829
      %v2831 = vpop.f32.mrf.mxu0
      %v2832 = vadd.f32 %v2743, %v2831
      %2833 = vmatmul.bf16.gmra.mxu0 %v1919
      %v2834 = vpop.f32.mrf.mxu0
      %v2835 = vadd.f32 %v2746, %v2834
      %v2836 = vpop.f32.mrf.mxu0
      %v2837 = vadd.f32 %v2748, %v2836
      %2838 = vmatmul.bf16.gmra.mxu0 %v1920
      %v2839 = vpop.f32.mrf.mxu0
      %v2840 = vadd.f32 %v2751, %v2839
      %v2841 = vpop.f32.mrf.mxu0
      %v2842 = vadd.f32 %v2753, %v2841
      %2843 = vmatmul.bf16.gmra.mxu0 %v1921
      %v2844 = vpop.f32.mrf.mxu0
      %v2845 = vadd.f32 %v2756, %v2844
      %v2846 = vpop.f32.mrf.mxu0
      %v2847 = vadd.f32 %v2758, %v2846
      %2848 = vmatmul.bf16.gmra.mxu0 %v1922
      %v2849 = vpop.f32.mrf.mxu0
      %v2850 = vadd.f32 %v2761, %v2849
      %v2851 = vpop.f32.mrf.mxu0
      %v2852 = vadd.f32 %v2763, %v2851
      %2853 = vmatmul.bf16.gmra.mxu0 %v1923
      %v2854 = vpop.f32.mrf.mxu0
      %v2855 = vadd.f32 %v2766, %v2854
      %v2856 = vpop.f32.mrf.mxu0
      %v2857 = vadd.f32 %v2768, %v2856
      %2858 = vmatmul.bf16.gmra.mxu0 %v1924
      %v2859 = vpop.f32.mrf.mxu0
      %v2860 = vadd.f32 %v2771, %v2859
      %v2861 = vpop.f32.mrf.mxu0
      %v2862 = vadd.f32 %v2773, %v2861
      %2863 = vdwg.mxu0
      %s2864 = scalar_lea.vmem %s2, 384
      %v2865 = vld [vmem:[%s2864] sm:$0xf]
      %v2866 = vld [vmem:[%s2864 + $0x4] sm:$0xf]
      %v2867 = vld [vmem:[%s2864 + $0x8] sm:$0xf]
      %v2868 = vld [vmem:[%s2864 + $0xc] sm:$0xf]
      %v2869 = vld [vmem:[%s2864 + $0x10] sm:$0xf]
      %v2870 = vld [vmem:[%s2864 + $0x14] sm:$0xf]
      %v2871 = vld [vmem:[%s2864 + $0x18] sm:$0xf]
      %v2872 = vld [vmem:[%s2864 + $0x1c] sm:$0xf]
      %v2873 = vld [vmem:[%s2864 + $0x20] sm:$0xf]
      %v2874 = vld [vmem:[%s2864 + $0x24] sm:$0xf]
      %v2875 = vld [vmem:[%s2864 + $0x28] sm:$0xf]
      %v2876 = vld [vmem:[%s2864 + $0x2c] sm:$0xf]
      %v2877 = vld [vmem:[%s2864 + $0x30] sm:$0xf]
      %v2878 = vld [vmem:[%s2864 + $0x34] sm:$0xf]
      %v2879 = vld [vmem:[%s2864 + $0x38] sm:$0xf]
      %v2880 = vld [vmem:[%s2864 + $0x3c] sm:$0xf]
      %v2881 = vld [vmem:[%s2864 + $0x40] sm:$0xf]
      %v2882 = vld [vmem:[%s2864 + $0x44] sm:$0xf]
      %v2883 = vld [vmem:[%s2864 + $0x48] sm:$0xf]
      %v2884 = vld [vmem:[%s2864 + $0x4c] sm:$0xf]
      %v2885 = vld [vmem:[%s2864 + $0x50] sm:$0xf]
      %v2886 = vld [vmem:[%s2864 + $0x54] sm:$0xf]
      %v2887 = vld [vmem:[%s2864 + $0x58] sm:$0xf]
      %v2888 = vld [vmem:[%s2864 + $0x5c] sm:$0xf]
      %v2889 = vld [vmem:[%s2864 + $0x60] sm:$0xf]
      %v2890 = vld [vmem:[%s2864 + $0x64] sm:$0xf]
      %v2891 = vld [vmem:[%s2864 + $0x68] sm:$0xf]
      %v2892 = vld [vmem:[%s2864 + $0x6c] sm:$0xf]
      %v2893 = vld [vmem:[%s2864 + $0x70] sm:$0xf]
      %v2894 = vld [vmem:[%s2864 + $0x74] sm:$0xf]
      %v2895 = vld [vmem:[%s2864 + $0x78] sm:$0xf]
      %v2896 = vld [vmem:[%s2864 + $0x7c] sm:$0xf]
      %v2897 = vld [vmem:[%s2864 + $0x80] sm:$0xf]
      %v2898 = vld [vmem:[%s2864 + $0x84] sm:$0xf]
      %v2899 = vld [vmem:[%s2864 + $0x88] sm:$0xf]
      %v2900 = vld [vmem:[%s2864 + $0x8c] sm:$0xf]
      %v2901 = vld [vmem:[%s2864 + $0x90] sm:$0xf]
      %v2902 = vld [vmem:[%s2864 + $0x94] sm:$0xf]
      %v2903 = vld [vmem:[%s2864 + $0x98] sm:$0xf]
      %v2904 = vld [vmem:[%s2864 + $0x9c] sm:$0xf]
      %v2905 = vld [vmem:[%s2864 + $0xa0] sm:$0xf]
      %v2906 = vld [vmem:[%s2864 + $0xa4] sm:$0xf]
      %v2907 = vld [vmem:[%s2864 + $0xa8] sm:$0xf]
      %v2908 = vld [vmem:[%s2864 + $0xac] sm:$0xf]
      %v2909 = vld [vmem:[%s2864 + $0xb0] sm:$0xf]
      %v2910 = vld [vmem:[%s2864 + $0xb4] sm:$0xf]
      %v2911 = vld [vmem:[%s2864 + $0xb8] sm:$0xf]
      %v2912 = vld [vmem:[%s2864 + $0xbc] sm:$0xf]
      %v2961 = vunpack.c.l.b16 %v2865
      %v2962 = vunpack.c.l.b16 %v2866
      %v2963 = vunpack.c.l.b16 %v2867
      %v2964 = vunpack.c.l.b16 %v2868
      %v2965 = vunpack.c.l.b16 %v2869
      %v2966 = vunpack.c.l.b16 %v2870
      %v2967 = vunpack.c.l.b16 %v2871
      %v2968 = vunpack.c.l.b16 %v2872
      %v2969 = vunpack.c.l.b16 %v2873
      %v2970 = vunpack.c.l.b16 %v2874
      %v2971 = vunpack.c.l.b16 %v2875
      %v2972 = vunpack.c.l.b16 %v2876
      %v2973 = vunpack.c.l.b16 %v2877
      %v2974 = vunpack.c.l.b16 %v2878
      %v2975 = vunpack.c.l.b16 %v2879
      %v2976 = vunpack.c.l.b16 %v2880
      %v2977 = vunpack.c.l.b16 %v2881
      %v2978 = vunpack.c.l.b16 %v2882
      %v2979 = vunpack.c.l.b16 %v2883
      %v2980 = vunpack.c.l.b16 %v2884
      %v2981 = vunpack.c.l.b16 %v2885
      %v2982 = vunpack.c.l.b16 %v2886
      %v2983 = vunpack.c.l.b16 %v2887
      %v2984 = vunpack.c.l.b16 %v2888
      %v2985 = vunpack.c.l.b16 %v2889
      %v2986 = vunpack.c.l.b16 %v2890
      %v2987 = vunpack.c.l.b16 %v2891
      %v2988 = vunpack.c.l.b16 %v2892
      %v2989 = vunpack.c.l.b16 %v2893
      %v2990 = vunpack.c.l.b16 %v2894
      %v2991 = vunpack.c.l.b16 %v2895
      %v2992 = vunpack.c.l.b16 %v2896
      %v2993 = vunpack.c.l.b16 %v2897
      %v2994 = vunpack.c.l.b16 %v2898
      %v2995 = vunpack.c.l.b16 %v2899
      %v2996 = vunpack.c.l.b16 %v2900
      %v2997 = vunpack.c.l.b16 %v2901
      %v2998 = vunpack.c.l.b16 %v2902
      %v2999 = vunpack.c.l.b16 %v2903
      %v3000 = vunpack.c.l.b16 %v2904
      %v3001 = vunpack.c.l.b16 %v2905
      %v3002 = vunpack.c.l.b16 %v2906
      %v3003 = vunpack.c.l.b16 %v2907
      %v3004 = vunpack.c.l.b16 %v2908
      %v3005 = vunpack.c.l.b16 %v2909
      %v3006 = vunpack.c.l.b16 %v2910
      %v3007 = vunpack.c.l.b16 %v2911
      %v3008 = vunpack.c.l.b16 %v2912
      %v3009 = vpack.c.b16 %v2962, %v2961
      %v3010 = vpack.c.b16 %v2964, %v2963
      %v3011 = vpack.c.b16 %v2966, %v2965
      %v3012 = vpack.c.b16 %v2968, %v2967
      %v3013 = vpack.c.b16 %v2970, %v2969
      %v3014 = vpack.c.b16 %v2972, %v2971
      %v3015 = vpack.c.b16 %v2974, %v2973
      %v3016 = vpack.c.b16 %v2976, %v2975
      %v3017 = vpack.c.b16 %v2978, %v2977
      %v3018 = vpack.c.b16 %v2980, %v2979
      %v3019 = vpack.c.b16 %v2982, %v2981
      %v3020 = vpack.c.b16 %v2984, %v2983
      %v3021 = vpack.c.b16 %v2986, %v2985
      %v3022 = vpack.c.b16 %v2988, %v2987
      %v3023 = vpack.c.b16 %v2990, %v2989
      %v3024 = vpack.c.b16 %v2992, %v2991
      %v3025 = vpack.c.b16 %v2994, %v2993
      %v3026 = vpack.c.b16 %v2996, %v2995
      %v3027 = vpack.c.b16 %v2998, %v2997
      %v3028 = vpack.c.b16 %v3000, %v2999
      %v3029 = vpack.c.b16 %v3002, %v3001
      %v3030 = vpack.c.b16 %v3004, %v3003
      %v3031 = vpack.c.b16 %v3006, %v3005
      %v3032 = vpack.c.b16 %v3008, %v3007
      %3057 = vmatpush.bf16.msra.mxu0 %v3016
      %3058 = vmatpush.bf16.msra.mxu0 %v3015
      %3059 = vmatpush.bf16.msra.mxu0 %v3014
      %3060 = vmatpush.bf16.msra.mxu0 %v3013
      %3061 = vmatpush.bf16.msra.mxu0 %v3012
      %3062 = vmatpush.bf16.msra.mxu0 %v3011
      %3063 = vmatpush.bf16.msra.mxu0 %v3010
      %3064 = vmatpush.bf16.msra.mxu0 %v3009
      %3065 = vmatmul.bf16.gmra.mxu0 %v1695
      %v3066 = vpop.f32.mrf.mxu0
      %v3067 = vadd.f32 0.0, %v3066
      %v3068 = vpop.f32.mrf.mxu0
      %v3069 = vadd.f32 0.0, %v3068
      %3070 = vmatmul.bf16.gmra.mxu0 %v1696
      %v3071 = vpop.f32.mrf.mxu0
      %v3072 = vadd.f32 0.0, %v3071
      %v3073 = vpop.f32.mrf.mxu0
      %v3074 = vadd.f32 0.0, %v3073
      %3075 = vmatmul.bf16.gmra.mxu0 %v1697
      %v3076 = vpop.f32.mrf.mxu0
      %v3077 = vadd.f32 0.0, %v3076
      %v3078 = vpop.f32.mrf.mxu0
      %v3079 = vadd.f32 0.0, %v3078
      %3080 = vmatmul.bf16.gmra.mxu0 %v1698
      %v3081 = vpop.f32.mrf.mxu0
      %v3082 = vadd.f32 0.0, %v3081
      %v3083 = vpop.f32.mrf.mxu0
      %v3084 = vadd.f32 0.0, %v3083
      %3085 = vmatmul.bf16.gmra.mxu0 %v1699
      %v3086 = vpop.f32.mrf.mxu0
      %v3087 = vadd.f32 0.0, %v3086
      %v3088 = vpop.f32.mrf.mxu0
      %v3089 = vadd.f32 0.0, %v3088
      %3090 = vmatmul.bf16.gmra.mxu0 %v1700
      %v3091 = vpop.f32.mrf.mxu0
      %v3092 = vadd.f32 0.0, %v3091
      %v3093 = vpop.f32.mrf.mxu0
      %v3094 = vadd.f32 0.0, %v3093
      %3095 = vmatmul.bf16.gmra.mxu0 %v1701
      %v3096 = vpop.f32.mrf.mxu0
      %v3097 = vadd.f32 0.0, %v3096
      %v3098 = vpop.f32.mrf.mxu0
      %v3099 = vadd.f32 0.0, %v3098
      %3100 = vmatmul.bf16.gmra.mxu0 %v1702
      %v3101 = vpop.f32.mrf.mxu0
      %v3102 = vadd.f32 0.0, %v3101
      %v3103 = vpop.f32.mrf.mxu0
      %v3104 = vadd.f32 0.0, %v3103
      %3105 = vmatmul.bf16.gmra.mxu0 %v1703
      %v3106 = vpop.f32.mrf.mxu0
      %v3107 = vadd.f32 0.0, %v3106
      %v3108 = vpop.f32.mrf.mxu0
      %v3109 = vadd.f32 0.0, %v3108
      %3110 = vmatmul.bf16.gmra.mxu0 %v1704
      %v3111 = vpop.f32.mrf.mxu0
      %v3112 = vadd.f32 0.0, %v3111
      %v3113 = vpop.f32.mrf.mxu0
      %v3114 = vadd.f32 0.0, %v3113
      %3115 = vmatmul.bf16.gmra.mxu0 %v1705
      %v3116 = vpop.f32.mrf.mxu0
      %v3117 = vadd.f32 0.0, %v3116
      %v3118 = vpop.f32.mrf.mxu0
      %v3119 = vadd.f32 0.0, %v3118
      %3120 = vmatmul.bf16.gmra.mxu0 %v1706
      %v3121 = vpop.f32.mrf.mxu0
      %v3122 = vadd.f32 0.0, %v3121
      %v3123 = vpop.f32.mrf.mxu0
      %v3124 = vadd.f32 0.0, %v3123
      %3125 = vmatmul.bf16.gmra.mxu0 %v1707
      %v3126 = vpop.f32.mrf.mxu0
      %v3127 = vadd.f32 0.0, %v3126
      %v3128 = vpop.f32.mrf.mxu0
      %v3129 = vadd.f32 0.0, %v3128
      %3130 = vmatmul.bf16.gmra.mxu0 %v1708
      %v3131 = vpop.f32.mrf.mxu0
      %v3132 = vadd.f32 0.0, %v3131
      %v3133 = vpop.f32.mrf.mxu0
      %v3134 = vadd.f32 0.0, %v3133
      %3135 = vmatmul.bf16.gmra.mxu0 %v1709
      %v3136 = vpop.f32.mrf.mxu0
      %v3137 = vadd.f32 0.0, %v3136
      %v3138 = vpop.f32.mrf.mxu0
      %v3139 = vadd.f32 0.0, %v3138
      %3140 = vmatmul.bf16.gmra.mxu0 %v1710
      %v3141 = vpop.f32.mrf.mxu0
      %v3142 = vadd.f32 0.0, %v3141
      %v3143 = vpop.f32.mrf.mxu0
      %v3144 = vadd.f32 0.0, %v3143
      %3145 = vdwg.mxu0
      %3146 = vmatpush.bf16.msra.mxu0 %v3024
      %3147 = vmatpush.bf16.msra.mxu0 %v3023
      %3148 = vmatpush.bf16.msra.mxu0 %v3022
      %3149 = vmatpush.bf16.msra.mxu0 %v3021
      %3150 = vmatpush.bf16.msra.mxu0 %v3020
      %3151 = vmatpush.bf16.msra.mxu0 %v3019
      %3152 = vmatpush.bf16.msra.mxu0 %v3018
      %3153 = vmatpush.bf16.msra.mxu0 %v3017
      %3154 = vmatmul.bf16.gmra.mxu0 %v1803
      %v3155 = vpop.f32.mrf.mxu0
      %v3156 = vadd.f32 %v3067, %v3155
      %v3157 = vpop.f32.mrf.mxu0
      %v3158 = vadd.f32 %v3069, %v3157
      %3159 = vmatmul.bf16.gmra.mxu0 %v1804
      %v3160 = vpop.f32.mrf.mxu0
      %v3161 = vadd.f32 %v3072, %v3160
      %v3162 = vpop.f32.mrf.mxu0
      %v3163 = vadd.f32 %v3074, %v3162
      %3164 = vmatmul.bf16.gmra.mxu0 %v1805
      %v3165 = vpop.f32.mrf.mxu0
      %v3166 = vadd.f32 %v3077, %v3165
      %v3167 = vpop.f32.mrf.mxu0
      %v3168 = vadd.f32 %v3079, %v3167
      %3169 = vmatmul.bf16.gmra.mxu0 %v1806
      %v3170 = vpop.f32.mrf.mxu0
      %v3171 = vadd.f32 %v3082, %v3170
      %v3172 = vpop.f32.mrf.mxu0
      %v3173 = vadd.f32 %v3084, %v3172
      %3174 = vmatmul.bf16.gmra.mxu0 %v1807
      %v3175 = vpop.f32.mrf.mxu0
      %v3176 = vadd.f32 %v3087, %v3175
      %v3177 = vpop.f32.mrf.mxu0
      %v3178 = vadd.f32 %v3089, %v3177
      %3179 = vmatmul.bf16.gmra.mxu0 %v1808
      %v3180 = vpop.f32.mrf.mxu0
      %v3181 = vadd.f32 %v3092, %v3180
      %v3182 = vpop.f32.mrf.mxu0
      %v3183 = vadd.f32 %v3094, %v3182
      %3184 = vmatmul.bf16.gmra.mxu0 %v1809
      %v3185 = vpop.f32.mrf.mxu0
      %v3186 = vadd.f32 %v3097, %v3185
      %v3187 = vpop.f32.mrf.mxu0
      %v3188 = vadd.f32 %v3099, %v3187
      %3189 = vmatmul.bf16.gmra.mxu0 %v1810
      %v3190 = vpop.f32.mrf.mxu0
      %v3191 = vadd.f32 %v3102, %v3190
      %v3192 = vpop.f32.mrf.mxu0
      %v3193 = vadd.f32 %v3104, %v3192
      %3194 = vmatmul.bf16.gmra.mxu0 %v1811
      %v3195 = vpop.f32.mrf.mxu0
      %v3196 = vadd.f32 %v3107, %v3195
      %v3197 = vpop.f32.mrf.mxu0
      %v3198 = vadd.f32 %v3109, %v3197
      %3199 = vmatmul.bf16.gmra.mxu0 %v1812
      %v3200 = vpop.f32.mrf.mxu0
      %v3201 = vadd.f32 %v3112, %v3200
      %v3202 = vpop.f32.mrf.mxu0
      %v3203 = vadd.f32 %v3114, %v3202
      %3204 = vmatmul.bf16.gmra.mxu0 %v1813
      %v3205 = vpop.f32.mrf.mxu0
      %v3206 = vadd.f32 %v3117, %v3205
      %v3207 = vpop.f32.mrf.mxu0
      %v3208 = vadd.f32 %v3119, %v3207
      %3209 = vmatmul.bf16.gmra.mxu0 %v1814
      %v3210 = vpop.f32.mrf.mxu0
      %v3211 = vadd.f32 %v3122, %v3210
      %v3212 = vpop.f32.mrf.mxu0
      %v3213 = vadd.f32 %v3124, %v3212
      %3214 = vmatmul.bf16.gmra.mxu0 %v1815
      %v3215 = vpop.f32.mrf.mxu0
      %v3216 = vadd.f32 %v3127, %v3215
      %v3217 = vpop.f32.mrf.mxu0
      %v3218 = vadd.f32 %v3129, %v3217
      %3219 = vmatmul.bf16.gmra.mxu0 %v1816
      %v3220 = vpop.f32.mrf.mxu0
      %v3221 = vadd.f32 %v3132, %v3220
      %v3222 = vpop.f32.mrf.mxu0
      %v3223 = vadd.f32 %v3134, %v3222
      %3224 = vmatmul.bf16.gmra.mxu0 %v1817
      %v3225 = vpop.f32.mrf.mxu0
      %v3226 = vadd.f32 %v3137, %v3225
      %v3227 = vpop.f32.mrf.mxu0
      %v3228 = vadd.f32 %v3139, %v3227
      %3229 = vmatmul.bf16.gmra.mxu0 %v1818
      %v3230 = vpop.f32.mrf.mxu0
      %v3231 = vadd.f32 %v3142, %v3230
      %v3232 = vpop.f32.mrf.mxu0
      %v3233 = vadd.f32 %v3144, %v3232
      %3234 = vdwg.mxu0
      %3235 = vmatpush.bf16.msra.mxu0 %v3032
      %3236 = vmatpush.bf16.msra.mxu0 %v3031
      %3237 = vmatpush.bf16.msra.mxu0 %v3030
      %3238 = vmatpush.bf16.msra.mxu0 %v3029
      %3239 = vmatpush.bf16.msra.mxu0 %v3028
      %3240 = vmatpush.bf16.msra.mxu0 %v3027
      %3241 = vmatpush.bf16.msra.mxu0 %v3026
      %3242 = vmatpush.bf16.msra.mxu0 %v3025
      %3243 = vmatmul.bf16.gmra.mxu0 %v1911
      %v3244 = vpop.f32.mrf.mxu0
      %v3245 = vadd.f32 %v3156, %v3244
      %v3246 = vpop.f32.mrf.mxu0
      %v3247 = vadd.f32 %v3158, %v3246
      %3248 = vmatmul.bf16.gmra.mxu0 %v1912
      %v3249 = vpop.f32.mrf.mxu0
      %v3250 = vadd.f32 %v3161, %v3249
      %v3251 = vpop.f32.mrf.mxu0
      %v3252 = vadd.f32 %v3163, %v3251
      %3253 = vmatmul.bf16.gmra.mxu0 %v1913
      %v3254 = vpop.f32.mrf.mxu0
      %v3255 = vadd.f32 %v3166, %v3254
      %v3256 = vpop.f32.mrf.mxu0
      %v3257 = vadd.f32 %v3168, %v3256
      %3258 = vmatmul.bf16.gmra.mxu0 %v1914
      %v3259 = vpop.f32.mrf.mxu0
      %v3260 = vadd.f32 %v3171, %v3259
      %v3261 = vpop.f32.mrf.mxu0
      %v3262 = vadd.f32 %v3173, %v3261
      %3263 = vmatmul.bf16.gmra.mxu0 %v1915
      %v3264 = vpop.f32.mrf.mxu0
      %v3265 = vadd.f32 %v3176, %v3264
      %v3266 = vpop.f32.mrf.mxu0
      %v3267 = vadd.f32 %v3178, %v3266
      %3268 = vmatmul.bf16.gmra.mxu0 %v1916
      %v3269 = vpop.f32.mrf.mxu0
      %v3270 = vadd.f32 %v3181, %v3269
      %v3271 = vpop.f32.mrf.mxu0
      %v3272 = vadd.f32 %v3183, %v3271
      %3273 = vmatmul.bf16.gmra.mxu0 %v1917
      %v3274 = vpop.f32.mrf.mxu0
      %v3275 = vadd.f32 %v3186, %v3274
      %v3276 = vpop.f32.mrf.mxu0
      %v3277 = vadd.f32 %v3188, %v3276
      %3278 = vmatmul.bf16.gmra.mxu0 %v1918
      %v3279 = vpop.f32.mrf.mxu0
      %v3280 = vadd.f32 %v3191, %v3279
      %v3281 = vpop.f32.mrf.mxu0
      %v3282 = vadd.f32 %v3193, %v3281
      %3283 = vmatmul.bf16.gmra.mxu0 %v1919
      %v3284 = vpop.f32.mrf.mxu0
      %v3285 = vadd.f32 %v3196, %v3284
      %v3286 = vpop.f32.mrf.mxu0
      %v3287 = vadd.f32 %v3198, %v3286
      %3288 = vmatmul.bf16.gmra.mxu0 %v1920
      %v3289 = vpop.f32.mrf.mxu0
      %v3290 = vadd.f32 %v3201, %v3289
      %v3291 = vpop.f32.mrf.mxu0
      %v3292 = vadd.f32 %v3203, %v3291
      %3293 = vmatmul.bf16.gmra.mxu0 %v1921
      %v3294 = vpop.f32.mrf.mxu0
      %v3295 = vadd.f32 %v3206, %v3294
      %v3296 = vpop.f32.mrf.mxu0
      %v3297 = vadd.f32 %v3208, %v3296
      %3298 = vmatmul.bf16.gmra.mxu0 %v1922
      %v3299 = vpop.f32.mrf.mxu0
      %v3300 = vadd.f32 %v3211, %v3299
      %v3301 = vpop.f32.mrf.mxu0
      %v3302 = vadd.f32 %v3213, %v3301
      %3303 = vmatmul.bf16.gmra.mxu0 %v1923
      %v3304 = vpop.f32.mrf.mxu0
      %v3305 = vadd.f32 %v3216, %v3304
      %v3306 = vpop.f32.mrf.mxu0
      %v3307 = vadd.f32 %v3218, %v3306
      %3308 = vmatmul.bf16.gmra.mxu0 %v1924
      %v3309 = vpop.f32.mrf.mxu0
      %v3310 = vadd.f32 %v3221, %v3309
      %v3311 = vpop.f32.mrf.mxu0
      %v3312 = vadd.f32 %v3223, %v3311
      %3313 = vmatmul.bf16.gmra.mxu0 %v1925
      %v3314 = vpop.f32.mrf.mxu0
      %v3315 = vadd.f32 %v3226, %v3314
      %v3316 = vpop.f32.mrf.mxu0
      %v3317 = vadd.f32 %v3228, %v3316
      %3318 = vmatmul.bf16.gmra.mxu0 %v1926
      %v3319 = vpop.f32.mrf.mxu0
      %v3320 = vadd.f32 %v3231, %v3319
      %v3321 = vpop.f32.mrf.mxu0
      %v3322 = vadd.f32 %v3233, %v3321
      %3323 = vdwg.mxu0
      %v3324 = vadd.f32 %v2785, %v3245
      %v3325 = vadd.f32 %v2787, %v3247
      %v3326 = vadd.f32 %v2790, %v3250
      %v3327 = vadd.f32 %v2792, %v3252
      %v3328 = vadd.f32 %v2795, %v3255
      %v3329 = vadd.f32 %v2797, %v3257
      %v3330 = vadd.f32 %v2800, %v3260
      %v3331 = vadd.f32 %v2802, %v3262
      %v3332 = vadd.f32 %v2805, %v3265
      %v3333 = vadd.f32 %v2807, %v3267
      %v3334 = vadd.f32 %v2810, %v3270
      %v3335 = vadd.f32 %v2812, %v3272
      %v3336 = vadd.f32 %v2815, %v3275
      %v3337 = vadd.f32 %v2817, %v3277
      %v3338 = vadd.f32 %v2820, %v3280
      %v3339 = vadd.f32 %v2822, %v3282
      %v3340 = vadd.f32 %v2825, %v3285
      %v3341 = vadd.f32 %v2827, %v3287
      %v3342 = vadd.f32 %v2830, %v3290
      %v3343 = vadd.f32 %v2832, %v3292
      %v3344 = vadd.f32 %v2835, %v3295
      %v3345 = vadd.f32 %v2837, %v3297
      %v3346 = vadd.f32 %v2840, %v3300
      %v3347 = vadd.f32 %v2842, %v3302
      %v3348 = vadd.f32 %v2845, %v3305
      %v3349 = vadd.f32 %v2847, %v3307
      %v3350 = vadd.f32 %v2850, %v3310
      %v3351 = vadd.f32 %v2852, %v3312
      %v3352 = vadd.f32 %v2855, %v3315
      %v3353 = vadd.f32 %v2857, %v3317
      %v3354 = vadd.f32 %v2860, %v3320
      %v3355 = vadd.f32 %v2862, %v3322
      %v3356 = vld [vmem:[%s3] sm:$0x1]
      %v3358 = vperm.slane %v3356, 0
      %v3360 = vadd.f32 %v3324, %v3358
      %v3361 = vadd.f32 %v3325, %v3358
      %v3362 = vadd.f32 %v3326, %v3358
      %v3363 = vadd.f32 %v3327, %v3358
      %v3364 = vadd.f32 %v3328, %v3358
      %v3365 = vadd.f32 %v3329, %v3358
      %v3366 = vadd.f32 %v3330, %v3358
      %v3367 = vadd.f32 %v3331, %v3358
      %v3368 = vadd.f32 %v3332, %v3358
      %v3369 = vadd.f32 %v3333, %v3358
      %v3370 = vadd.f32 %v3334, %v3358
      %v3371 = vadd.f32 %v3335, %v3358
      %v3372 = vadd.f32 %v3336, %v3358
      %v3373 = vadd.f32 %v3337, %v3358
      %v3374 = vadd.f32 %v3338, %v3358
      %v3375 = vadd.f32 %v3339, %v3358
      %v3376 = vadd.f32 %v3340, %v3358
      %v3377 = vadd.f32 %v3341, %v3358
      %v3378 = vadd.f32 %v3342, %v3358
      %v3379 = vadd.f32 %v3343, %v3358
      %v3380 = vadd.f32 %v3344, %v3358
      %v3381 = vadd.f32 %v3345, %v3358
      %v3382 = vadd.f32 %v3346, %v3358
      %v3383 = vadd.f32 %v3347, %v3358
      %v3384 = vadd.f32 %v3348, %v3358
      %v3385 = vadd.f32 %v3349, %v3358
      %v3386 = vadd.f32 %v3350, %v3358
      %v3387 = vadd.f32 %v3351, %v3358
      %v3388 = vadd.f32 %v3352, %v3358
      %v3389 = vadd.f32 %v3353, %v3358
      %v3390 = vadd.f32 %v3354, %v3358
      %v3391 = vadd.f32 %v3355, %v3358
      %v3392 = vmax.f32 %v3360, 0.0
      %v3393 = vmax.f32 %v3361, 0.0
      %v3394 = vmax.f32 %v3362, 0.0
      %v3395 = vmax.f32 %v3363, 0.0
      %v3396 = vmax.f32 %v3364, 0.0
      %v3397 = vmax.f32 %v3365, 0.0
      %v3398 = vmax.f32 %v3366, 0.0
      %v3399 = vmax.f32 %v3367, 0.0
      %v3400 = vmax.f32 %v3368, 0.0
      %v3401 = vmax.f32 %v3369, 0.0
      %v3402 = vmax.f32 %v3370, 0.0
      %v3403 = vmax.f32 %v3371, 0.0
      %v3404 = vmax.f32 %v3372, 0.0
      %v3405 = vmax.f32 %v3373, 0.0
      %v3406 = vmax.f32 %v3374, 0.0
      %v3407 = vmax.f32 %v3375, 0.0
      %v3408 = vmax.f32 %v3376, 0.0
      %v3409 = vmax.f32 %v3377, 0.0
      %v3410 = vmax.f32 %v3378, 0.0
      %v3411 = vmax.f32 %v3379, 0.0
      %v3412 = vmax.f32 %v3380, 0.0
      %v3413 = vmax.f32 %v3381, 0.0
      %v3414 = vmax.f32 %v3382, 0.0
      %v3415 = vmax.f32 %v3383, 0.0
      %v3416 = vmax.f32 %v3384, 0.0
      %v3417 = vmax.f32 %v3385, 0.0
      %v3418 = vmax.f32 %v3386, 0.0
      %v3419 = vmax.f32 %v3387, 0.0
      %v3420 = vmax.f32 %v3388, 0.0
      %v3421 = vmax.f32 %v3389, 0.0
      %v3422 = vmax.f32 %v3390, 0.0
      %v3423 = vmax.f32 %v3391, 0.0
      %v3424 = vpack.c.bf16 %v3392, %v3392
      %v3425 = vpack.c.bf16 %v3393, %v3393
      %v3426 = vpack.c.bf16 %v3394, %v3394
      %v3427 = vpack.c.bf16 %v3395, %v3395
      %v3428 = vpack.c.bf16 %v3396, %v3396
      %v3429 = vpack.c.bf16 %v3397, %v3397
      %v3430 = vpack.c.bf16 %v3398, %v3398
      %v3431 = vpack.c.bf16 %v3399, %v3399
      %v3432 = vpack.c.bf16 %v3400, %v3400
      %v3433 = vpack.c.bf16 %v3401, %v3401
      %v3434 = vpack.c.bf16 %v3402, %v3402
      %v3435 = vpack.c.bf16 %v3403, %v3403
      %v3436 = vpack.c.bf16 %v3404, %v3404
      %v3437 = vpack.c.bf16 %v3405, %v3405
      %v3438 = vpack.c.bf16 %v3406, %v3406
      %v3439 = vpack.c.bf16 %v3407, %v3407
      %v3440 = vpack.c.bf16 %v3408, %v3408
      %v3441 = vpack.c.bf16 %v3409, %v3409
      %v3442 = vpack.c.bf16 %v3410, %v3410
      %v3443 = vpack.c.bf16 %v3411, %v3411
      %v3444 = vpack.c.bf16 %v3412, %v3412
      %v3445 = vpack.c.bf16 %v3413, %v3413
      %v3446 = vpack.c.bf16 %v3414, %v3414
      %v3447 = vpack.c.bf16 %v3415, %v3415
      %v3448 = vpack.c.bf16 %v3416, %v3416
      %v3449 = vpack.c.bf16 %v3417, %v3417
      %v3450 = vpack.c.bf16 %v3418, %v3418
      %v3451 = vpack.c.bf16 %v3419, %v3419
      %v3452 = vpack.c.bf16 %v3420, %v3420
      %v3453 = vpack.c.bf16 %v3421, %v3421
      %v3454 = vpack.c.bf16 %v3422, %v3422
      %v3455 = vpack.c.bf16 %v3423, %v3423
      %3456 = vst [vmem:[%s333] sm:$0xf] %v3424
      %3457 = vst [vmem:[%s333 + $0x4] sm:$0xf] %v3425
      %3458 = vst [vmem:[%s333 + $0x8] sm:$0xf] %v3426
      %3459 = vst [vmem:[%s333 + $0xc] sm:$0xf] %v3427
      %3460 = vst [vmem:[%s333 + $0x10] sm:$0xf] %v3428
      %3461 = vst [vmem:[%s333 + $0x14] sm:$0xf] %v3429
      %3462 = vst [vmem:[%s333 + $0x18] sm:$0xf] %v3430
      %3463 = vst [vmem:[%s333 + $0x1c] sm:$0xf] %v3431
      %3464 = vst [vmem:[%s333 + $0x20] sm:$0xf] %v3432
      %3465 = vst [vmem:[%s333 + $0x24] sm:$0xf] %v3433
      %3466 = vst [vmem:[%s333 + $0x28] sm:$0xf] %v3434
      %3467 = vst [vmem:[%s333 + $0x2c] sm:$0xf] %v3435
      %3468 = vst [vmem:[%s333 + $0x30] sm:$0xf] %v3436
      %3469 = vst [vmem:[%s333 + $0x34] sm:$0xf] %v3437
      %3470 = vst [vmem:[%s333 + $0x38] sm:$0xf] %v3438
      %3471 = vst [vmem:[%s333 + $0x3c] sm:$0xf] %v3439
      %3472 = vst [vmem:[%s333 + $0x40] sm:$0xf] %v3440
      %3473 = vst [vmem:[%s333 + $0x44] sm:$0xf] %v3441
      %3474 = vst [vmem:[%s333 + $0x48] sm:$0xf] %v3442
      %3475 = vst [vmem:[%s333 + $0x4c] sm:$0xf] %v3443
      %3476 = vst [vmem:[%s333 + $0x50] sm:$0xf] %v3444
      %3477 = vst [vmem:[%s333 + $0x54] sm:$0xf] %v3445
      %3478 = vst [vmem:[%s333 + $0x58] sm:$0xf] %v3446
      %3479 = vst [vmem:[%s333 + $0x5c] sm:$0xf] %v3447
      %3480 = vst [vmem:[%s333 + $0x60] sm:$0xf] %v3448
      %3481 = vst [vmem:[%s333 + $0x64] sm:$0xf] %v3449
      %3482 = vst [vmem:[%s333 + $0x68] sm:$0xf] %v3450
      %3483 = vst [vmem:[%s333 + $0x6c] sm:$0xf] %v3451
      %3484 = vst [vmem:[%s333 + $0x70] sm:$0xf] %v3452
      %3485 = vst [vmem:[%s333 + $0x74] sm:$0xf] %v3453
      %3486 = vst [vmem:[%s333 + $0x78] sm:$0xf] %v3454
      %3487 = vst [vmem:[%s333 + $0x7c] sm:$0xf] %v3455
      %p3488 = scmp.eq.s32.totalorder %s25, 0
      // Predicated region
      $region125: #{conv_block_forward.2} parent=39 // pred_check
        %p3489 = pneg %p3488
      $region126: #{conv_block_forward.2} parent=39 // pred_check_branch
        %3491 = sbr.rel (%p3489) target = $region128
      $region127: #{conv_block_forward.2} parent=39 // pred_region
        %3492 = vst [vmem:[%s337] sm:$0x1] 0.0
        %3493 = vst [vmem:[%s340] sm:$0x1] 0.0
      $region128: #{conv_block_forward.2} parent=39 // pred_fallthru
        _
      %v3494 = vld [vmem:[%s337] sm:$0x1]
      %v3495 = vadd.f32 %v3392, %v3393
      %v3496 = vadd.f32 %v3495, %v3394
      %v3497 = vadd.f32 %v3496, %v3395
      %v3498 = vadd.f32 %v3497, %v3396
      %v3499 = vadd.f32 %v3498, %v3397
      %v3500 = vadd.f32 %v3499, %v3398
      %v3501 = vadd.f32 %v3500, %v3399
      %v3502 = vadd.f32 %v3501, %v3400
      %v3503 = vadd.f32 %v3502, %v3401
      %v3504 = vadd.f32 %v3503, %v3402
      %v3505 = vadd.f32 %v3504, %v3403
      %v3506 = vadd.f32 %v3505, %v3404
      %v3507 = vadd.f32 %v3506, %v3405
      %v3508 = vadd.f32 %v3507, %v3406
      %v3509 = vadd.f32 %v3508, %v3407
      %v3510 = vadd.f32 %v3509, %v3408
      %v3511 = vadd.f32 %v3510, %v3409
      %v3512 = vadd.f32 %v3511, %v3410
      %v3513 = vadd.f32 %v3512, %v3411
      %v3514 = vadd.f32 %v3513, %v3412
      %v3515 = vadd.f32 %v3514, %v3413
      %v3516 = vadd.f32 %v3515, %v3414
      %v3517 = vadd.f32 %v3516, %v3415
      %v3518 = vadd.f32 %v3517, %v3416
      %v3519 = vadd.f32 %v3518, %v3417
      %v3520 = vadd.f32 %v3519, %v3418
      %v3521 = vadd.f32 %v3520, %v3419
      %v3522 = vadd.f32 %v3521, %v3420
      %v3523 = vadd.f32 %v3522, %v3421
      %v3524 = vadd.f32 %v3523, %v3422
      %v3525 = vadd.f32 %v3524, %v3423
      %v3526 = vrot.slane %v3525, 4
      %v3527 = vadd.f32 %v3525, %v3526
      %v3528 = vrot.slane %v3527, 2
      %v3529 = vadd.f32 %v3527, %v3528
      %v3530 = vrot.slane %v3529, 1
      %v3531 = vadd.f32 %v3529, %v3530
      %v3532 = vadd.f32 %v3494, %v3531
      %3533 = vst [vmem:[%s337] sm:$0x1] %v3532
      %v3534 = vld [vmem:[%s340] sm:$0x1]
      %v3535 = vmul.f32 %v3392, %v3392
      %v3536 = vmul.f32 %v3393, %v3393
      %v3537 = vmul.f32 %v3394, %v3394
      %v3538 = vmul.f32 %v3395, %v3395
      %v3539 = vmul.f32 %v3396, %v3396
      %v3540 = vmul.f32 %v3397, %v3397
      %v3541 = vmul.f32 %v3398, %v3398
      %v3542 = vmul.f32 %v3399, %v3399
      %v3543 = vmul.f32 %v3400, %v3400
      %v3544 = vmul.f32 %v3401, %v3401
      %v3545 = vmul.f32 %v3402, %v3402
      %v3546 = vmul.f32 %v3403, %v3403
      %v3547 = vmul.f32 %v3404, %v3404
      %v3548 = vmul.f32 %v3405, %v3405
      %v3549 = vmul.f32 %v3406, %v3406
      %v3550 = vmul.f32 %v3407, %v3407
      %v3551 = vmul.f32 %v3408, %v3408
      %v3552 = vmul.f32 %v3409, %v3409
      %v3553 = vmul.f32 %v3410, %v3410
      %v3554 = vmul.f32 %v3411, %v3411
      %v3555 = vmul.f32 %v3412, %v3412
      %v3556 = vmul.f32 %v3413, %v3413
      %v3557 = vmul.f32 %v3414, %v3414
      %v3558 = vmul.f32 %v3415, %v3415
      %v3559 = vmul.f32 %v3416, %v3416
      %v3560 = vmul.f32 %v3417, %v3417
      %v3561 = vmul.f32 %v3418, %v3418
      %v3562 = vmul.f32 %v3419, %v3419
      %v3563 = vmul.f32 %v3420, %v3420
      %v3564 = vmul.f32 %v3421, %v3421
      %v3565 = vmul.f32 %v3422, %v3422
      %v3566 = vmul.f32 %v3423, %v3423
      %v3567 = vadd.f32 %v3535, %v3536
      %v3568 = vadd.f32 %v3567, %v3537
      %v3569 = vadd.f32 %v3568, %v3538
      %v3570 = vadd.f32 %v3569, %v3539
      %v3571 = vadd.f32 %v3570, %v3540
      %v3572 = vadd.f32 %v3571, %v3541
      %v3573 = vadd.f32 %v3572, %v3542
      %v3574 = vadd.f32 %v3573, %v3543
      %v3575 = vadd.f32 %v3574, %v3544
      %v3576 = vadd.f32 %v3575, %v3545
      %v3577 = vadd.f32 %v3576, %v3546
      %v3578 = vadd.f32 %v3577, %v3547
      %v3579 = vadd.f32 %v3578, %v3548
      %v3580 = vadd.f32 %v3579, %v3549
      %v3581 = vadd.f32 %v3580, %v3550
      %v3582 = vadd.f32 %v3581, %v3551
      %v3583 = vadd.f32 %v3582, %v3552
      %v3584 = vadd.f32 %v3583, %v3553
      %v3585 = vadd.f32 %v3584, %v3554
      %v3586 = vadd.f32 %v3585, %v3555
      %v3587 = vadd.f32 %v3586, %v3556
      %v3588 = vadd.f32 %v3587, %v3557
      %v3589 = vadd.f32 %v3588, %v3558
      %v3590 = vadd.f32 %v3589, %v3559
      %v3591 = vadd.f32 %v3590, %v3560
      %v3592 = vadd.f32 %v3591, %v3561
      %v3593 = vadd.f32 %v3592, %v3562
      %v3594 = vadd.f32 %v3593, %v3563
      %v3595 = vadd.f32 %v3594, %v3564
      %v3596 = vadd.f32 %v3595, %v3565
      %v3597 = vadd.f32 %v3596, %v3566
      %v3598 = vrot.slane %v3597, 4
      %v3599 = vadd.f32 %v3597, %v3598
      %v3600 = vrot.slane %v3599, 2
      %v3601 = vadd.f32 %v3599, %v3600
      %v3602 = vrot.slane %v3601, 1
      %v3603 = vadd.f32 %v3601, %v3602
      %v3604 = vadd.f32 %v3534, %v3603
      %3605 = vst [vmem:[%s340] sm:$0x1] %v3604
      %s3606 = smul.u32 16, %s25
      %p3607 = scmp.lt.s32.totalorder %s24, 1
      %s3608 = scalar_select %p3607, %s24, 1
      %p3609 = scmp.lt.s32.totalorder %s3606, 15
      %s3610 = scalar_select %p3609, %s3606, 15
      %s3611 = smul.addr %s3610, 2
      %s3612 = smul.addr %s3608, 32
      %s3613 = sadd.s32 %s3611, %s3612
      %s3614 = smul.addr %s3613, 4
      %s3615 = scalar_lea.vmem %s6, %s3614
      %p3616 = scmp.lt.s32.totalorder %s24, 1
      %s3617 = scalar_select %p3616, %s24, 1
      %s3618 = scalar_lea.vmem %s7, %s3617
      %p3619 = scmp.lt.s32.totalorder %s24, 1
      %s3620 = scalar_select %p3619, %s24, 1
      %s3621 = scalar_lea.vmem %s8, %s3620
      // Predicated region
      $region129: #{conv_block_forward.2} parent=39 // pred_check
        %p3622 = pneg %p164
      $region130: #{conv_block_forward.2} parent=39 // pred_check_branch
        %3624 = sbr.rel (%p3622) target = $region132
      $region131: #{conv_block_forward.2} parent=39 // pred_region
        %s3625 = smul.u32 16, %s25
      $region132: #{conv_block_forward.2} parent=39 // pred_fallthru
        _
      // Predicated region
      $region133: #{conv_block_forward.2} parent=39 // pred_check
        %p3626 = pneg %p190
      $region134: #{conv_block_forward.2} parent=39 // pred_check_branch
        %3628 = sbr.rel (%p3626) target = $region136
      $region135: #{conv_block_forward.2} parent=39 // pred_region
        _
      $region136: #{conv_block_forward.2} parent=39 // pred_fallthru
        _
      // Predicated region
      $region137: #{conv_block_forward.2} parent=39 // pred_check
        %p3629 = pneg %p216
      $region138: #{conv_block_forward.2} parent=39 // pred_check_branch
        %3631 = sbr.rel (%p3629) target = $region140
      $region139: #{conv_block_forward.2} parent=39 // pred_region
        _
      $region140: #{conv_block_forward.2} parent=39 // pred_fallthru
        _
    $region40: #{conv_block_forward.2} parent=5 // pred_fallthru
      _
    %p3632 = scmp.le.s32.totalorder 2, %s15
    // Predicated region
    $region141: #{conv_block_forward.2} parent=5 // pred_check
      %p3633 = pneg %p3632
    $region142: #{conv_block_forward.2} parent=5 // pred_check_branch
      %3635 = sbr.rel (%p3633) target = $region144
    $region143: #{conv_block_forward.2} parent=5 // pred_region
      %s3636 = ssub.s32 %s15, 2
      // Predicated region
      $region145: #{conv_block_forward.2} parent=143 // pred_check
        %p3637 = pneg %p170
      $region146: #{conv_block_forward.2} parent=143 // pred_check_branch
        %3639 = sbr.rel (%p3637) target = $region148
      $region147: #{conv_block_forward.2} parent=143 // pred_region
        %s3640 = smul.u32 16, %s27
        %p3641 = scmp.lt.s32.totalorder %s26, 1
        %s3642 = scalar_select %p3641, %s26, 1
        %p3643 = scmp.lt.s32.totalorder %s3640, 15
        %s3644 = scalar_select %p3643, %s3640, 15
        %s3645 = smul.addr %s3644, 2
        %s3646 = smul.addr %s3642, 32
        %s3647 = sadd.s32 %s3645, %s3646
        %s3648 = smul.addr %s3647, 4
        %s3649 = scalar_lea.vmem %s6, %s3648
      $region148: #{conv_block_forward.2} parent=143 // pred_fallthru
        _
      // Predicated region
      $region149: #{conv_block_forward.2} parent=143 // pred_check
        %p3650 = pneg %p196
      $region150: #{conv_block_forward.2} parent=143 // pred_check_branch
        %3652 = sbr.rel (%p3650) target = $region152
      $region151: #{conv_block_forward.2} parent=143 // pred_region
        %p3653 = scmp.lt.s32.totalorder %s26, 1
        %s3654 = scalar_select %p3653, %s26, 1
        %s3655 = scalar_lea.vmem %s7, %s3654
      $region152: #{conv_block_forward.2} parent=143 // pred_fallthru
        _
      // Predicated region
      $region153: #{conv_block_forward.2} parent=143 // pred_check
        %p3656 = pneg %p222
      $region154: #{conv_block_forward.2} parent=143 // pred_check_branch
        %3658 = sbr.rel (%p3656) target = $region156
      $region155: #{conv_block_forward.2} parent=143 // pred_region
        %p3659 = scmp.lt.s32.totalorder %s26, 1
        %s3660 = scalar_select %p3659, %s26, 1
        %s3661 = scalar_lea.vmem %s8, %s3660
      $region156: #{conv_block_forward.2} parent=143 // pred_fallthru
        _
    $region144: #{conv_block_forward.2} parent=5 // pred_fallthru
      _
  $region6: #{conv_block_forward.2} parent=0 // loop_footer
    %s19 = sadd.s32 1, %s15
  $region7: #{conv_block_forward.2} parent=0 // loop_footer_branch
    %14 = sbr.rel target = $region3
  $region8: #{conv_block_forward.2} parent=0 // loop_exit
    _
  %3662 = vsyncmov [#allocation3]
  %s3663 = vpop.sfrf %3662
  %p3664 = scmp.eq.s32.totalorder %s3663, 0
  %p3665 = pneg %p3664
  %3667 = shalt.err (%p3665)
  %s3668 = scalar_lea.sflag [#allocation3], 1
  %3669 = vsyncmov %s3668
  %s3670 = vpop.sfrf %3669
  %p3671 = scmp.eq.s32.totalorder %s3670, 0
  %p3672 = pneg %p3671
  %3674 = shalt.err (%p3672)

</llo_original>
